<compile_context>
chip_gen: v7x
topology: tpu7x:2x2x1
jax: 0.10.0
libtpu: 0.0.40
codegen_flags: <defaults>
</compile_context>

<pallas_src>
import numpy as np
import jax
import jax.numpy as jnp
from jax.experimental import pallas as pl
from jax.experimental.pallas import tpu as pltpu

# ---- module constants (from the PyTorch source) ----
BATCH = 4
CHANNELS = 1
K_LATENT = 20
KERNEL = 5
POOL = 2
WIDTH = 28

W_O1 = (WIDTH - KERNEL) + 1          # 24
W_O2 = W_O1 // POOL                  # 12
W_O3 = (W_O2 - KERNEL) + 1           # 8
W_O4 = W_O3 // POOL                  # 4
FLAT = 6 * CHANNELS * W_O4 * W_O4    # 96
IN_FLAT = CHANNELS * WIDTH * WIDTH   # 784


# --------------------------------------------------------------------------
# init-time parameter preprocessing (numpy, runs once, outside jit)
# --------------------------------------------------------------------------
def _conv_matrix(w, H, W):
    """Dense M (Cin*H*W, Cout*Ho*Wo) s.t. flat(conv2d(x)) = flat(x) @ M.
    w: (Cout, Cin, k, k); valid conv, stride 1 (PyTorch cross-correlation)."""
    Cout, Cin, k, _ = w.shape
    Ho, Wo = H - k + 1, W - k + 1
    Sh = (np.arange(H)[None, None, :] ==
          (np.arange(Ho)[None, :, None] + np.arange(k)[:, None, None])).astype(np.float32)
    Sw = (np.arange(W)[None, None, :] ==
          (np.arange(Wo)[None, :, None] + np.arange(k)[:, None, None])).astype(np.float32)
    M = np.einsum('ocij,iyp,jxq->cpqoyx', w, Sh, Sw)
    return M.reshape(Cin * H * W, Cout * Ho * Wo)


def _conv_pool00_matrix(w, H, W):
    """(Cin*H*W, Cout*(Ho//2)*(Wo//2)) matrix producing the (0,0) 2x2-maxpool
    candidate of a valid stride-1 conv (conv output at even rows / even cols).
    The other 3 pool candidates are obtained by spatially shifting the INPUT
    (rows of this matrix corresponding to out-of-window positions are all-zero,
    which is what makes the in-kernel zero-padded shift exact)."""
    Cout = w.shape[0]
    Ho, Wo = H - w.shape[2] + 1, W - w.shape[3] + 1
    M = _conv_matrix(w, H, W).reshape(-1, Cout, Ho, Wo)
    return np.ascontiguousarray(
        M[:, :, ::2, ::2].reshape(-1, Cout * (Ho // 2) * (Wo // 2)))


def _deconv_matrix(w, H, W):
    """Dense (Cin*H*W, Cout*(H+k-1)*(W+k-1)) for ConvTranspose2d (stride 1, pad 0).
    w: (Cin, Cout, k, k) as in PyTorch."""
    Cin, Cout, k, _ = w.shape
    Ho, Wo = H + k - 1, W + k - 1
    Th = (np.arange(Ho)[None, None, :] ==
          (np.arange(H)[:, None, None] + np.arange(k)[None, :, None])).astype(np.float32)
    Tw = (np.arange(Wo)[None, None, :] ==
          (np.arange(W)[:, None, None] + np.arange(k)[None, :, None])).astype(np.float32)
    M = np.einsum('cdij,hip,wjq->chwdpq', w, Th, Tw)
    return M.reshape(Cin * H * W, Cout * Ho * Wo)


def _bilinear_matrix(n_in):
    """1-D interpolation matrix (2n, n), PyTorch bilinear align_corners=False."""
    n_out = 2 * n_in
    M = np.zeros((n_out, n_in), np.float32)
    for i in range(n_out):
        s = max((i + 0.5) * 0.5 - 0.5, 0.0)
        i0 = min(int(np.floor(s)), n_in - 1)
        i1 = min(i0 + 1, n_in - 1)
        w1 = s - i0
        M[i, i0] += 1.0 - w1
        M[i, i1] += w1
    return M


def _upsample_matrix(C, H, W):
    """Dense (C*H*W, C*2H*2W): flat 2x bilinear upsample (row-vector convention)."""
    K = np.kron(np.eye(C, dtype=np.float32),
                np.kron(_bilinear_matrix(H), _bilinear_matrix(W)))
    return np.ascontiguousarray(K.T)


def preprocess_params(p):
    """Turn raw PyTorch-shaped params into matmul-ready matrices/biases.
    Large matmul operands -> bf16 (MXU-native, half the DMA); biases -> f32."""
    pn = {k_: np.asarray(v, np.float32) for k_, v in p.items()}
    bf16, f32 = {}, {}
    # encoder: conv+bias+ReLU+maxpool folded into ONE matrix per layer
    bf16["A"] = _conv_pool00_matrix(pn["conv1_w"], WIDTH, WIDTH)     # (784, 288)
    f32["b1"] = np.repeat(pn["conv1_b"], W_O2 * W_O2)[None, :]       # (1, 288)
    bf16["B"] = _conv_pool00_matrix(pn["conv2_w"], W_O2, W_O2)       # (288, 96)
    f32["b2"] = np.repeat(pn["conv2_b"], W_O4 * W_O4)[None, :]       # (1, 96)
    # FC stack (PyTorch Linear: y = x @ W^T + b)
    for i in range(1, 7):
        bf16[f"w{i}"] = np.ascontiguousarray(pn[f"fc{i}_w"].T)
        f32[f"c{i}"] = pn[f"fc{i}_b"][None, :]
    # decoder: (bilinear 2x upsample) o (ConvTranspose2d) folded into one matrix
    U1 = _upsample_matrix(6 * CHANNELS, W_O4, W_O4)                  # (96, 384)
    bf16["D1"] = U1 @ _deconv_matrix(pn["deconv1_w"], 2 * W_O4, 2 * W_O4)  # (96, 288)
    f32["e1"] = np.repeat(pn["deconv1_b"], W_O2 * W_O2)[None, :]     # (1, 288)
    U2 = _upsample_matrix(2 * CHANNELS, W_O2, W_O2)                  # (288, 1152)
    bf16["D2"] = U2 @ _deconv_matrix(pn["deconv2_w"], 2 * W_O2, 2 * W_O2)  # (288, 784)
    f32["e2"] = np.repeat(pn["deconv2_b"], WIDTH * WIDTH)[None, :]   # (1, 784)

    pp = {k_: jnp.asarray(v, jnp.bfloat16) for k_, v in bf16.items()}
    pp.update({k_: jnp.asarray(v, jnp.float32) for k_, v in f32.items()})
    return pp


# --------------------------------------------------------------------------
# The single fused Pallas kernel
# --------------------------------------------------------------------------
def _shift_lanes(v, k):
    """v'[:, p] = v[:, p + k] for p < N - k, zero-filled tail.
    The tail positions only ever multiply all-zero rows of the folded conv
    matrix, so the fill value never contributes (exact)."""
    pad = jnp.zeros((v.shape[0], k), dtype=v.dtype)
    return jnp.concatenate([v[:, k:], pad], axis=1)


def _conv_pool_relu(x, m_ref, b_ref, row_stride):
    """valid conv (stride 1) + per-channel bias + ReLU + 2x2 maxpool, folded
    into ONE (4B, K) @ (K, N) bf16 MXU pass.  The 4 pool candidates are 4
    spatially shifted copies of the flat input stacked along sublanes; the
    pool max is taken over the 4 row groups afterwards (per-channel bias and
    ReLU are monotone / constant over the window, so they commute with it)."""
    b = x.shape[0]
    xs = jnp.concatenate(
        [x,                                    # pool candidate (0, 0)
         _shift_lanes(x, 1),                   # pool candidate (0, 1)
         _shift_lanes(x, row_stride),          # pool candidate (1, 0)
         _shift_lanes(x, row_stride + 1)],     # pool candidate (1, 1)
        axis=0).astype(jnp.bfloat16)           # (4B, K)
    y = jnp.dot(xs, m_ref[...], preferred_element_type=jnp.float32)   # (4B, N) f32
    y = jnp.maximum(jnp.maximum(y[0 * b:1 * b], y[1 * b:2 * b]),
                    jnp.maximum(y[2 * b:3 * b], y[3 * b:4 * b]))       # (B, N)
    return jnp.maximum(y + b_ref[...], 0.0)


def _autoencoder_kernel(x_ref, a_ref, b1_ref, bm_ref, b2_ref,
                        w1_ref, c1_ref, w2_ref, c2_ref, w3_ref, c3_ref,
                        w4_ref, c4_ref, w5_ref, c5_ref, w6_ref, c6_ref,
                        d1_ref, e1_ref, d2_ref, e2_ref,
                        o_ref):
    def mm(v, w_ref, c_ref):                    # bf16 MXU dot, f32 accumulate
        return jnp.dot(v.astype(jnp.bfloat16), w_ref[...],
                       preferred_element_type=jnp.float32) + c_ref[...]

    x = x_ref[...]                                               # (B, 784) f32

    # encoder: conv1/conv2, each fused conv+bias+ReLU+2x2 maxpool in one dot
    h = _conv_pool_relu(x, a_ref, b1_ref, WIDTH)                 # (B, 288)
    h = _conv_pool_relu(h, bm_ref, b2_ref, W_O2)                 # (B, 96)

    # FC encoder / decoder stack (fc3 has no ReLU)
    h = jnp.maximum(mm(h, w1_ref, c1_ref), 0.0)                  # (B, 40)
    h = jnp.maximum(mm(h, w2_ref, c2_ref), 0.0)                  # (B, 30)
    z = mm(h, w3_ref, c3_ref)                                    # (B, 20)
    h = jnp.maximum(mm(z, w4_ref, c4_ref), 0.0)                  # (B, 30)
    h = jnp.maximum(mm(h, w5_ref, c5_ref), 0.0)                  # (B, 40)
    h = jnp.maximum(mm(h, w6_ref, c6_ref), 0.0)                  # (B, 96)

    # decoder: (upsample 2x o deconv1 + ReLU), (upsample 2x o deconv2 + ReLU)
    h = jnp.maximum(mm(h, d1_ref, e1_ref), 0.0)                  # (B, 288)
    o_ref[...] = jnp.maximum(mm(h, d2_ref, e2_ref), 0.0)         # (B, 784)


def autoencoder_forward(x, pp):
    B = x.shape[0]
    x_flat = x.reshape(B, IN_FLAT).astype(jnp.float32)

    args = (x_flat, pp["A"], pp["b1"], pp["B"], pp["b2"],
            pp["w1"], pp["c1"], pp["w2"], pp["c2"], pp["w3"], pp["c3"],
            pp["w4"], pp["c4"], pp["w5"], pp["c5"], pp["w6"], pp["c6"],
            pp["D1"], pp["e1"], pp["D2"], pp["e2"])

    # full-array blocks, single grid point: everything resident in VMEM
    # (total constants ~1 MiB bf16, so default scoped-VMEM limits are plenty)
    in_specs = [pl.BlockSpec(a.shape, lambda i: (0, 0)) for a in args]

    flops = 0
    for name, reps in (("A", 4), ("B", 4), ("w1", 1), ("w2", 1), ("w3", 1),
                       ("w4", 1), ("w5", 1), ("w6", 1), ("D1", 1), ("D2", 1)):
        m = pp[name]
        flops += 2 * B * reps * m.shape[0] * m.shape[1]
    bytes_accessed = (sum(int(a.size) * a.dtype.itemsize for a in args)
                      + B * IN_FLAT * 4)

    out = pl.pallas_call(
        _autoencoder_kernel,
        out_shape=jax.ShapeDtypeStruct((B, IN_FLAT), jnp.float32),
        grid=(1,),
        in_specs=in_specs,
        out_specs=pl.BlockSpec((B, IN_FLAT), lambda i: (0, 0)),
        compiler_params=pltpu.CompilerParams(
            dimension_semantics=("arbitrary",)),
        cost_estimate=pl.CostEstimate(flops=flops, transcendentals=0,
                                      bytes_accessed=bytes_accessed),
    )(*args)
    return out.reshape(B, CHANNELS, WIDTH, WIDTH)


# --------------------------------------------------------------------------
# Pure-JAX reference (lax conv ops) for an end-to-end correctness check
# --------------------------------------------------------------------------
def _reference_forward(x, p):
    relu = lambda v: jnp.maximum(v, 0.0)

    def conv2d(v, w, b):
        y = jax.lax.conv_general_dilated(
            v, w, window_strides=(1, 1), padding='VALID',
            dimension_numbers=('NCHW', 'OIHW', 'NCHW'))
        return y + b[None, :, None, None]

    def maxpool2(v):
        return jax.lax.reduce_window(v, -jnp.inf, jax.lax.max,
                                     (1, 1, 2, 2), (1, 1, 2, 2), 'VALID')

    def deconv2d(v, w, b):
        # ConvTranspose2d(stride=1, pad=0) == full cross-correlation with the
        # spatially flipped, channel-swapped kernel.
        wf = jnp.flip(w, axis=(2, 3)).transpose(1, 0, 2, 3)
        y = jax.lax.conv_general_dilated(
            v, wf, window_strides=(1, 1),
            padding=((KERNEL - 1, KERNEL - 1), (KERNEL - 1, KERNEL - 1)),
            dimension_numbers=('NCHW', 'OIHW', 'NCHW'))
        return y + b[None, :, None, None]

    def upsample2(v):
        Mh = jnp.asarray(_bilinear_matrix(v.shape[2]))
        Mw = jnp.asarray(_bilinear_matrix(v.shape[3]))
        return jnp.einsum('ph,bchw,qw->bcpq', Mh, v, Mw)

    B = x.shape[0]
    h = maxpool2(relu(conv2d(x, p['conv1_w'], p['conv1_b'])))
    h = maxpool2(relu(conv2d(h, p['conv2_w'], p['conv2_b'])))
    h = h.reshape(B, -1)
    h = relu(h @ p['fc1_w'].T + p['fc1_b'])
    h = relu(h @ p['fc2_w'].T + p['fc2_b'])
    h = h @ p['fc3_w'].T + p['fc3_b']
    h = relu(h @ p['fc4_w'].T + p['fc4_b'])
    h = relu(h @ p['fc5_w'].T + p['fc5_b'])
    h = relu(h @ p['fc6_w'].T + p['fc6_b'])
    h = h.reshape(B, 6 * CHANNELS, W_O4, W_O4)
    h = relu(deconv2d(upsample2(h), p['deconv1_w'], p['deconv1_b']))
    h = relu(deconv2d(upsample2(h), p['deconv2_w'], p['deconv2_b']))
    return h


# --------------------------------------------------------------------------
# Parameters (raw PyTorch-shaped) + main
# --------------------------------------------------------------------------
def init_params(key):
    shapes = {
        "conv1_w": (2 * CHANNELS, CHANNELS, KERNEL, KERNEL), "conv1_b": (2 * CHANNELS,),
        "conv2_w": (6 * CHANNELS, 2 * CHANNELS, KERNEL, KERNEL), "conv2_b": (6 * CHANNELS,),
        "fc1_w": (40 * CHANNELS, FLAT), "fc1_b": (40 * CHANNELS,),
        "fc2_w": (30 * CHANNELS, 40 * CHANNELS), "fc2_b": (30 * CHANNELS,),
        "fc3_w": (K_LATENT, 30 * CHANNELS), "fc3_b": (K_LATENT,),
        "fc4_w": (30 * CHANNELS, K_LATENT), "fc4_b": (30 * CHANNELS,),
        "fc5_w": (40 * CHANNELS, 30 * CHANNELS), "fc5_b": (40 * CHANNELS,),
        "fc6_w": (FLAT, 40 * CHANNELS), "fc6_b": (FLAT,),
        "deconv1_w": (6 * CHANNELS, 2 * CHANNELS, KERNEL, KERNEL), "deconv1_b": (2 * CHANNELS,),
        "deconv2_w": (2 * CHANNELS, CHANNELS, KERNEL, KERNEL), "deconv2_b": (CHANNELS,),
    }
    params = {}
    keys = jax.random.split(key, len(shapes))
    for k_, (name, shp) in zip(keys, sorted(shapes.items())):
        params[name] = 0.1 * jax.random.normal(k_, shp, dtype=jnp.float32)
    return params


if __name__ == "__main__":
    kx, kp = jax.random.split(jax.random.PRNGKey(0))
    x = jax.random.normal(kx, (BATCH, CHANNELS, WIDTH, WIDTH), dtype=jnp.float32)
    params = init_params(kp)
    pp = preprocess_params(params)        # one-time, outside the jitted forward

    fwd = jax.jit(autoencoder_forward)
    out = jax.block_until_ready(fwd(x, pp))

    assert out.shape == (BATCH, CHANNELS, WIDTH, WIDTH), out.shape
    assert out.dtype == jnp.float32
    assert bool(jnp.all(jnp.isfinite(out)))

    # end-to-end check of the folded-matrix math (bf16 weights => loose tol)
    ref = _reference_forward(x, params)
    err = float(jnp.max(jnp.abs(out - ref)))
    scale = float(jnp.max(jnp.abs(ref))) + 1e-6
    assert err / scale < 5e-2, (err, scale)

    print("KERNEL_OK")
</pallas_src>

<mosaic_0001>
module attributes {stable_mosaic.version = 11 : i64} {
  func.func @_autoencoder_kernel(%arg0: i32, %arg1: memref<4x784xf32, #tpu.memory_space<vmem>>, %arg2: memref<784x288xbf16, #tpu.memory_space<vmem>>, %arg3: memref<1x288xf32, #tpu.memory_space<vmem>>, %arg4: memref<288x96xbf16, #tpu.memory_space<vmem>>, %arg5: memref<1x96xf32, #tpu.memory_space<vmem>>, %arg6: memref<96x40xbf16, #tpu.memory_space<vmem>>, %arg7: memref<1x40xf32, #tpu.memory_space<vmem>>, %arg8: memref<40x30xbf16, #tpu.memory_space<vmem>>, %arg9: memref<1x30xf32, #tpu.memory_space<vmem>>, %arg10: memref<30x20xbf16, #tpu.memory_space<vmem>>, %arg11: memref<1x20xf32, #tpu.memory_space<vmem>>, %arg12: memref<20x30xbf16, #tpu.memory_space<vmem>>, %arg13: memref<1x30xf32, #tpu.memory_space<vmem>>, %arg14: memref<30x40xbf16, #tpu.memory_space<vmem>>, %arg15: memref<1x40xf32, #tpu.memory_space<vmem>>, %arg16: memref<40x96xbf16, #tpu.memory_space<vmem>>, %arg17: memref<1x96xf32, #tpu.memory_space<vmem>>, %arg18: memref<96x288xbf16, #tpu.memory_space<vmem>>, %arg19: memref<1x288xf32, #tpu.memory_space<vmem>>, %arg20: memref<288x784xbf16, #tpu.memory_space<vmem>>, %arg21: memref<1x784xf32, #tpu.memory_space<vmem>>, %arg22: memref<4x784xf32, #tpu.memory_space<vmem>>) attributes {dimension_semantics = [#tpu.dimension_semantics<arbitrary>], iteration_bounds = array<i64: 1>, scalar_prefetch = 0 : i64, scratch_operands = 0 : i64, tpu.core_type = #tpu.core_type<tc>, window_params = [{pipeline_mode = #tpu.pipeline_mode<synchronous>, transform_indices = @transform_0, window_bounds = array<i64: 4, 784>}, {pipeline_mode = #tpu.pipeline_mode<synchronous>, transform_indices = @transform_1, window_bounds = array<i64: 784, 288>}, {pipeline_mode = #tpu.pipeline_mode<synchronous>, transform_indices = @transform_2, window_bounds = array<i64: 1, 288>}, {pipeline_mode = #tpu.pipeline_mode<synchronous>, transform_indices = @transform_3, window_bounds = array<i64: 288, 96>}, {pipeline_mode = #tpu.pipeline_mode<synchronous>, transform_indices = @transform_4, window_bounds = array<i64: 1, 96>}, {pipeline_mode = #tpu.pipeline_mode<synchronous>, transform_indices = @transform_5, window_bounds = array<i64: 96, 40>}, {pipeline_mode = #tpu.pipeline_mode<synchronous>, transform_indices = @transform_6, window_bounds = array<i64: 1, 40>}, {pipeline_mode = #tpu.pipeline_mode<synchronous>, transform_indices = @transform_7, window_bounds = array<i64: 40, 30>}, {pipeline_mode = #tpu.pipeline_mode<synchronous>, transform_indices = @transform_8, window_bounds = array<i64: 1, 30>}, {pipeline_mode = #tpu.pipeline_mode<synchronous>, transform_indices = @transform_9, window_bounds = array<i64: 30, 20>}, {pipeline_mode = #tpu.pipeline_mode<synchronous>, transform_indices = @transform_10, window_bounds = array<i64: 1, 20>}, {pipeline_mode = #tpu.pipeline_mode<synchronous>, transform_indices = @transform_11, window_bounds = array<i64: 20, 30>}, {pipeline_mode = #tpu.pipeline_mode<synchronous>, transform_indices = @transform_12, window_bounds = array<i64: 1, 30>}, {pipeline_mode = #tpu.pipeline_mode<synchronous>, transform_indices = @transform_13, window_bounds = array<i64: 30, 40>}, {pipeline_mode = #tpu.pipeline_mode<synchronous>, transform_indices = @transform_14, window_bounds = array<i64: 1, 40>}, {pipeline_mode = #tpu.pipeline_mode<synchronous>, transform_indices = @transform_15, window_bounds = array<i64: 40, 96>}, {pipeline_mode = #tpu.pipeline_mode<synchronous>, transform_indices = @transform_16, window_bounds = array<i64: 1, 96>}, {pipeline_mode = #tpu.pipeline_mode<synchronous>, transform_indices = @transform_17, window_bounds = array<i64: 96, 288>}, {pipeline_mode = #tpu.pipeline_mode<synchronous>, transform_indices = @transform_18, window_bounds = array<i64: 1, 288>}, {pipeline_mode = #tpu.pipeline_mode<synchronous>, transform_indices = @transform_19, window_bounds = array<i64: 288, 784>}, {pipeline_mode = #tpu.pipeline_mode<synchronous>, transform_indices = @transform_20, window_bounds = array<i64: 1, 784>}, {pipeline_mode = #tpu.pipeline_mode<synchronous>, transform_indices = @transform_21, window_bounds = array<i64: 4, 784>}]} {
    %c0 = arith.constant 0 : index
    %c0_0 = arith.constant 0 : index
    %0 = vector.load %arg1[%c0, %c0_0] : memref<4x784xf32, #tpu.memory_space<vmem>>, vector<4x784xf32>
    %cst = arith.constant 0.000000e+00 : f32
    %1 = vector.broadcast %cst : f32 to vector<4x1xf32>
    %2 = vector.extract_strided_slice %0 {offsets = [0, 1], sizes = [4, 783], strides = [1, 1]} : vector<4x784xf32> to vector<4x783xf32>
    %3 = tpu.concatenate %2, %1 in 1 : vector<4x783xf32>, vector<4x1xf32> -> vector<4x784xf32>
    %cst_1 = arith.constant 0.000000e+00 : f32
    %4 = vector.broadcast %cst_1 : f32 to vector<4x28xf32>
    %5 = vector.extract_strided_slice %0 {offsets = [0, 28], sizes = [4, 756], strides = [1, 1]} : vector<4x784xf32> to vector<4x756xf32>
    %6 = tpu.concatenate %5, %4 in 1 : vector<4x756xf32>, vector<4x28xf32> -> vector<4x784xf32>
    %cst_2 = arith.constant 0.000000e+00 : f32
    %7 = vector.broadcast %cst_2 : f32 to vector<4x29xf32>
    %8 = vector.extract_strided_slice %0 {offsets = [0, 29], sizes = [4, 755], strides = [1, 1]} : vector<4x784xf32> to vector<4x755xf32>
    %9 = tpu.concatenate %8, %7 in 1 : vector<4x755xf32>, vector<4x29xf32> -> vector<4x784xf32>
    %10 = tpu.concatenate %0, %3, %6, %9 in 0 : vector<4x784xf32>, vector<4x784xf32>, vector<4x784xf32>, vector<4x784xf32> -> vector<16x784xf32>
    %11 = arith.truncf %10 : vector<16x784xf32> to vector<16x784xbf16>
    %c0_3 = arith.constant 0 : index
    %c0_4 = arith.constant 0 : index
    %12 = vector.load %arg2[%c0_3, %c0_4] : memref<784x288xbf16, #tpu.memory_space<vmem>>, vector<784x288xbf16>
    %cst_5 = arith.constant dense<0.000000e+00> : vector<16x288xf32>
    %13 = tpu.matmul %11, %12, %cst_5 {dimension_numbers = #tpu.dot_dimension_numbers<[1], [0], [0], [1], [0, 0, 1, 1], [], []>} : vector<16x784xbf16>, vector<784x288xbf16>, vector<16x288xf32> -> vector<16x288xf32>
    %14 = vector.extract_strided_slice %13 {offsets = [0, 0], sizes = [4, 288], strides = [1, 1]} : vector<16x288xf32> to vector<4x288xf32>
    %15 = vector.extract_strided_slice %13 {offsets = [4, 0], sizes = [4, 288], strides = [1, 1]} : vector<16x288xf32> to vector<4x288xf32>
    %16 = arith.maximumf %14, %15 : vector<4x288xf32>
    %17 = vector.extract_strided_slice %13 {offsets = [8, 0], sizes = [4, 288], strides = [1, 1]} : vector<16x288xf32> to vector<4x288xf32>
    %18 = vector.extract_strided_slice %13 {offsets = [12, 0], sizes = [4, 288], strides = [1, 1]} : vector<16x288xf32> to vector<4x288xf32>
    %19 = arith.maximumf %17, %18 : vector<4x288xf32>
    %20 = arith.maximumf %16, %19 : vector<4x288xf32>
    %c0_6 = arith.constant 0 : index
    %c0_7 = arith.constant 0 : index
    %21 = vector.load %arg3[%c0_6, %c0_7] : memref<1x288xf32, #tpu.memory_space<vmem>>, vector<1x288xf32>
    %22 = vector.broadcast %21 : vector<1x288xf32> to vector<4x288xf32>
    %23 = arith.addf %20, %22 : vector<4x288xf32>
    %cst_8 = arith.constant 0.000000e+00 : f32
    %24 = vector.broadcast %cst_8 : f32 to vector<4x288xf32>
    %25 = arith.maximumf %23, %24 : vector<4x288xf32>
    %cst_9 = arith.constant 0.000000e+00 : f32
    %26 = vector.broadcast %cst_9 : f32 to vector<4x1xf32>
    %27 = vector.extract_strided_slice %25 {offsets = [0, 1], sizes = [4, 287], strides = [1, 1]} : vector<4x288xf32> to vector<4x287xf32>
    %28 = tpu.concatenate %27, %26 in 1 : vector<4x287xf32>, vector<4x1xf32> -> vector<4x288xf32>
    %cst_10 = arith.constant 0.000000e+00 : f32
    %29 = vector.broadcast %cst_10 : f32 to vector<4x12xf32>
    %30 = vector.extract_strided_slice %25 {offsets = [0, 12], sizes = [4, 276], strides = [1, 1]} : vector<4x288xf32> to vector<4x276xf32>
    %31 = tpu.concatenate %30, %29 in 1 : vector<4x276xf32>, vector<4x12xf32> -> vector<4x288xf32>
    %cst_11 = arith.constant 0.000000e+00 : f32
    %32 = vector.broadcast %cst_11 : f32 to vector<4x13xf32>
    %33 = vector.extract_strided_slice %25 {offsets = [0, 13], sizes = [4, 275], strides = [1, 1]} : vector<4x288xf32> to vector<4x275xf32>
    %34 = tpu.concatenate %33, %32 in 1 : vector<4x275xf32>, vector<4x13xf32> -> vector<4x288xf32>
    %35 = tpu.concatenate %25, %28, %31, %34 in 0 : vector<4x288xf32>, vector<4x288xf32>, vector<4x288xf32>, vector<4x288xf32> -> vector<16x288xf32>
    %36 = arith.truncf %35 : vector<16x288xf32> to vector<16x288xbf16>
    %c0_12 = arith.constant 0 : index
    %c0_13 = arith.constant 0 : index
    %37 = vector.load %arg4[%c0_12, %c0_13] : memref<288x96xbf16, #tpu.memory_space<vmem>>, vector<288x96xbf16>
    %cst_14 = arith.constant dense<0.000000e+00> : vector<16x96xf32>
    %38 = tpu.matmul %36, %37, %cst_14 {dimension_numbers = #tpu.dot_dimension_numbers<[1], [0], [0], [1], [0, 0, 1, 1], [], []>} : vector<16x288xbf16>, vector<288x96xbf16>, vector<16x96xf32> -> vector<16x96xf32>
    %39 = vector.extract_strided_slice %38 {offsets = [0, 0], sizes = [4, 96], strides = [1, 1]} : vector<16x96xf32> to vector<4x96xf32>
    %40 = vector.extract_strided_slice %38 {offsets = [4, 0], sizes = [4, 96], strides = [1, 1]} : vector<16x96xf32> to vector<4x96xf32>
    %41 = arith.maximumf %39, %40 : vector<4x96xf32>
    %42 = vector.extract_strided_slice %38 {offsets = [8, 0], sizes = [4, 96], strides = [1, 1]} : vector<16x96xf32> to vector<4x96xf32>
    %43 = vector.extract_strided_slice %38 {offsets = [12, 0], sizes = [4, 96], strides = [1, 1]} : vector<16x96xf32> to vector<4x96xf32>
    %44 = arith.maximumf %42, %43 : vector<4x96xf32>
    %45 = arith.maximumf %41, %44 : vector<4x96xf32>
    %c0_15 = arith.constant 0 : index
    %c0_16 = arith.constant 0 : index
    %46 = vector.load %arg5[%c0_15, %c0_16] : memref<1x96xf32, #tpu.memory_space<vmem>>, vector<1x96xf32>
    %47 = vector.broadcast %46 : vector<1x96xf32> to vector<4x96xf32>
    %48 = arith.addf %45, %47 : vector<4x96xf32>
    %cst_17 = arith.constant 0.000000e+00 : f32
    %49 = vector.broadcast %cst_17 : f32 to vector<4x96xf32>
    %50 = arith.maximumf %48, %49 : vector<4x96xf32>
    %51 = arith.truncf %50 : vector<4x96xf32> to vector<4x96xbf16>
    %c0_18 = arith.constant 0 : index
    %c0_19 = arith.constant 0 : index
    %52 = vector.load %arg6[%c0_18, %c0_19] : memref<96x40xbf16, #tpu.memory_space<vmem>>, vector<96x40xbf16>
    %cst_20 = arith.constant dense<0.000000e+00> : vector<4x40xf32>
    %53 = tpu.matmul %51, %52, %cst_20 {dimension_numbers = #tpu.dot_dimension_numbers<[1], [0], [0], [1], [0, 0, 1, 1], [], []>} : vector<4x96xbf16>, vector<96x40xbf16>, vector<4x40xf32> -> vector<4x40xf32>
    %c0_21 = arith.constant 0 : index
    %c0_22 = arith.constant 0 : index
    %54 = vector.load %arg7[%c0_21, %c0_22] : memref<1x40xf32, #tpu.memory_space<vmem>>, vector<1x40xf32>
    %55 = vector.broadcast %54 : vector<1x40xf32> to vector<4x40xf32>
    %56 = arith.addf %53, %55 : vector<4x40xf32>
    %cst_23 = arith.constant 0.000000e+00 : f32
    %57 = vector.broadcast %cst_23 : f32 to vector<4x40xf32>
    %58 = arith.maximumf %56, %57 : vector<4x40xf32>
    %59 = arith.truncf %58 : vector<4x40xf32> to vector<4x40xbf16>
    %c0_24 = arith.constant 0 : index
    %c0_25 = arith.constant 0 : index
    %60 = vector.load %arg8[%c0_24, %c0_25] : memref<40x30xbf16, #tpu.memory_space<vmem>>, vector<40x30xbf16>
    %cst_26 = arith.constant dense<0.000000e+00> : vector<4x30xf32>
    %61 = tpu.matmul %59, %60, %cst_26 {dimension_numbers = #tpu.dot_dimension_numbers<[1], [0], [0], [1], [0, 0, 1, 1], [], []>} : vector<4x40xbf16>, vector<40x30xbf16>, vector<4x30xf32> -> vector<4x30xf32>
    %c0_27 = arith.constant 0 : index
    %c0_28 = arith.constant 0 : index
    %62 = vector.load %arg9[%c0_27, %c0_28] : memref<1x30xf32, #tpu.memory_space<vmem>>, vector<1x30xf32>
    %63 = vector.broadcast %62 : vector<1x30xf32> to vector<4x30xf32>
    %64 = arith.addf %61, %63 : vector<4x30xf32>
    %cst_29 = arith.constant 0.000000e+00 : f32
    %65 = vector.broadcast %cst_29 : f32 to vector<4x30xf32>
    %66 = arith.maximumf %64, %65 : vector<4x30xf32>
    %67 = arith.truncf %66 : vector<4x30xf32> to vector<4x30xbf16>
    %c0_30 = arith.constant 0 : index
    %c0_31 = arith.constant 0 : index
    %68 = vector.load %arg10[%c0_30, %c0_31] : memref<30x20xbf16, #tpu.memory_space<vmem>>, vector<30x20xbf16>
    %cst_32 = arith.constant dense<0.000000e+00> : vector<4x20xf32>
    %69 = tpu.matmul %67, %68, %cst_32 {dimension_numbers = #tpu.dot_dimension_numbers<[1], [0], [0], [1], [0, 0, 1, 1], [], []>} : vector<4x30xbf16>, vector<30x20xbf16>, vector<4x20xf32> -> vector<4x20xf32>
    %c0_33 = arith.constant 0 : index
    %c0_34 = arith.constant 0 : index
    %70 = vector.load %arg11[%c0_33, %c0_34] : memref<1x20xf32, #tpu.memory_space<vmem>>, vector<1x20xf32>
    %71 = vector.broadcast %70 : vector<1x20xf32> to vector<4x20xf32>
    %72 = arith.addf %69, %71 : vector<4x20xf32>
    %73 = arith.truncf %72 : vector<4x20xf32> to vector<4x20xbf16>
    %c0_35 = arith.constant 0 : index
    %c0_36 = arith.constant 0 : index
    %74 = vector.load %arg12[%c0_35, %c0_36] : memref<20x30xbf16, #tpu.memory_space<vmem>>, vector<20x30xbf16>
    %cst_37 = arith.constant dense<0.000000e+00> : vector<4x30xf32>
    %75 = tpu.matmul %73, %74, %cst_37 {dimension_numbers = #tpu.dot_dimension_numbers<[1], [0], [0], [1], [0, 0, 1, 1], [], []>} : vector<4x20xbf16>, vector<20x30xbf16>, vector<4x30xf32> -> vector<4x30xf32>
    %c0_38 = arith.constant 0 : index
    %c0_39 = arith.constant 0 : index
    %76 = vector.load %arg13[%c0_38, %c0_39] : memref<1x30xf32, #tpu.memory_space<vmem>>, vector<1x30xf32>
    %77 = vector.broadcast %76 : vector<1x30xf32> to vector<4x30xf32>
    %78 = arith.addf %75, %77 : vector<4x30xf32>
    %cst_40 = arith.constant 0.000000e+00 : f32
    %79 = vector.broadcast %cst_40 : f32 to vector<4x30xf32>
    %80 = arith.maximumf %78, %79 : vector<4x30xf32>
    %81 = arith.truncf %80 : vector<4x30xf32> to vector<4x30xbf16>
    %c0_41 = arith.constant 0 : index
    %c0_42 = arith.constant 0 : index
    %82 = vector.load %arg14[%c0_41, %c0_42] : memref<30x40xbf16, #tpu.memory_space<vmem>>, vector<30x40xbf16>
    %cst_43 = arith.constant dense<0.000000e+00> : vector<4x40xf32>
    %83 = tpu.matmul %81, %82, %cst_43 {dimension_numbers = #tpu.dot_dimension_numbers<[1], [0], [0], [1], [0, 0, 1, 1], [], []>} : vector<4x30xbf16>, vector<30x40xbf16>, vector<4x40xf32> -> vector<4x40xf32>
    %c0_44 = arith.constant 0 : index
    %c0_45 = arith.constant 0 : index
    %84 = vector.load %arg15[%c0_44, %c0_45] : memref<1x40xf32, #tpu.memory_space<vmem>>, vector<1x40xf32>
    %85 = vector.broadcast %84 : vector<1x40xf32> to vector<4x40xf32>
    %86 = arith.addf %83, %85 : vector<4x40xf32>
    %cst_46 = arith.constant 0.000000e+00 : f32
    %87 = vector.broadcast %cst_46 : f32 to vector<4x40xf32>
    %88 = arith.maximumf %86, %87 : vector<4x40xf32>
    %89 = arith.truncf %88 : vector<4x40xf32> to vector<4x40xbf16>
    %c0_47 = arith.constant 0 : index
    %c0_48 = arith.constant 0 : index
    %90 = vector.load %arg16[%c0_47, %c0_48] : memref<40x96xbf16, #tpu.memory_space<vmem>>, vector<40x96xbf16>
    %cst_49 = arith.constant dense<0.000000e+00> : vector<4x96xf32>
    %91 = tpu.matmul %89, %90, %cst_49 {dimension_numbers = #tpu.dot_dimension_numbers<[1], [0], [0], [1], [0, 0, 1, 1], [], []>} : vector<4x40xbf16>, vector<40x96xbf16>, vector<4x96xf32> -> vector<4x96xf32>
    %c0_50 = arith.constant 0 : index
    %c0_51 = arith.constant 0 : index
    %92 = vector.load %arg17[%c0_50, %c0_51] : memref<1x96xf32, #tpu.memory_space<vmem>>, vector<1x96xf32>
    %93 = vector.broadcast %92 : vector<1x96xf32> to vector<4x96xf32>
    %94 = arith.addf %91, %93 : vector<4x96xf32>
    %cst_52 = arith.constant 0.000000e+00 : f32
    %95 = vector.broadcast %cst_52 : f32 to vector<4x96xf32>
    %96 = arith.maximumf %94, %95 : vector<4x96xf32>
    %97 = arith.truncf %96 : vector<4x96xf32> to vector<4x96xbf16>
    %c0_53 = arith.constant 0 : index
    %c0_54 = arith.constant 0 : index
    %98 = vector.load %arg18[%c0_53, %c0_54] : memref<96x288xbf16, #tpu.memory_space<vmem>>, vector<96x288xbf16>
    %cst_55 = arith.constant dense<0.000000e+00> : vector<4x288xf32>
    %99 = tpu.matmul %97, %98, %cst_55 {dimension_numbers = #tpu.dot_dimension_numbers<[1], [0], [0], [1], [0, 0, 1, 1], [], []>} : vector<4x96xbf16>, vector<96x288xbf16>, vector<4x288xf32> -> vector<4x288xf32>
    %c0_56 = arith.constant 0 : index
    %c0_57 = arith.constant 0 : index
    %100 = vector.load %arg19[%c0_56, %c0_57] : memref<1x288xf32, #tpu.memory_space<vmem>>, vector<1x288xf32>
    %101 = vector.broadcast %100 : vector<1x288xf32> to vector<4x288xf32>
    %102 = arith.addf %99, %101 : vector<4x288xf32>
    %cst_58 = arith.constant 0.000000e+00 : f32
    %103 = vector.broadcast %cst_58 : f32 to vector<4x288xf32>
    %104 = arith.maximumf %102, %103 : vector<4x288xf32>
    %105 = arith.truncf %104 : vector<4x288xf32> to vector<4x288xbf16>
    %c0_59 = arith.constant 0 : index
    %c0_60 = arith.constant 0 : index
    %106 = vector.load %arg20[%c0_59, %c0_60] : memref<288x784xbf16, #tpu.memory_space<vmem>>, vector<288x784xbf16>
    %cst_61 = arith.constant dense<0.000000e+00> : vector<4x784xf32>
    %107 = tpu.matmul %105, %106, %cst_61 {dimension_numbers = #tpu.dot_dimension_numbers<[1], [0], [0], [1], [0, 0, 1, 1], [], []>} : vector<4x288xbf16>, vector<288x784xbf16>, vector<4x784xf32> -> vector<4x784xf32>
    %c0_62 = arith.constant 0 : index
    %c0_63 = arith.constant 0 : index
    %108 = vector.load %arg21[%c0_62, %c0_63] : memref<1x784xf32, #tpu.memory_space<vmem>>, vector<1x784xf32>
    %109 = vector.broadcast %108 : vector<1x784xf32> to vector<4x784xf32>
    %110 = arith.addf %107, %109 : vector<4x784xf32>
    %cst_64 = arith.constant 0.000000e+00 : f32
    %111 = vector.broadcast %cst_64 : f32 to vector<4x784xf32>
    %112 = arith.maximumf %110, %111 : vector<4x784xf32>
    %c0_65 = arith.constant 0 : index
    %c0_66 = arith.constant 0 : index
    %113 = vector.load %arg22[%c0_65, %c0_66] : memref<4x784xf32, #tpu.memory_space<vmem>>, vector<4x784xf32>
    tpu.vector_store %arg22[%c0_65, %c0_66], %112 {strides = array<i32>} : memref<4x784xf32, #tpu.memory_space<vmem>>, vector<4x784xf32>,
    return
  }
  func.func @transform_0(%arg0: i32) -> (i32, i32) {
    %c0_i32 = arith.constant 0 : i32
    %c0_i32_0 = arith.constant 0 : i32
    %c0_i32_1 = arith.constant 0 : i32
    return %c0_i32, %c0_i32_0 : i32, i32
  }
  func.func @transform_1(%arg0: i32) -> (i32, i32) {
    %c0_i32 = arith.constant 0 : i32
    %c0_i32_0 = arith.constant 0 : i32
    %c0_i32_1 = arith.constant 0 : i32
    return %c0_i32, %c0_i32_0 : i32, i32
  }
  func.func @transform_2(%arg0: i32) -> (i32, i32) {
    %c0_i32 = arith.constant 0 : i32
    %c0_i32_0 = arith.constant 0 : i32
    %c0_i32_1 = arith.constant 0 : i32
    return %c0_i32, %c0_i32_0 : i32, i32
  }
  func.func @transform_3(%arg0: i32) -> (i32, i32) {
    %c0_i32 = arith.constant 0 : i32
    %c0_i32_0 = arith.constant 0 : i32
    %c0_i32_1 = arith.constant 0 : i32
    return %c0_i32, %c0_i32_0 : i32, i32
  }
  func.func @transform_4(%arg0: i32) -> (i32, i32) {
    %c0_i32 = arith.constant 0 : i32
    %c0_i32_0 = arith.constant 0 : i32
    %c0_i32_1 = arith.constant 0 : i32
    return %c0_i32, %c0_i32_0 : i32, i32
  }
  func.func @transform_5(%arg0: i32) -> (i32, i32) {
    %c0_i32 = arith.constant 0 : i32
    %c0_i32_0 = arith.constant 0 : i32
    %c0_i32_1 = arith.constant 0 : i32
    return %c0_i32, %c0_i32_0 : i32, i32
  }
  func.func @transform_6(%arg0: i32) -> (i32, i32) {
    %c0_i32 = arith.constant 0 : i32
    %c0_i32_0 = arith.constant 0 : i32
    %c0_i32_1 = arith.constant 0 : i32
    return %c0_i32, %c0_i32_0 : i32, i32
  }
  func.func @transform_7(%arg0: i32) -> (i32, i32) {
    %c0_i32 = arith.constant 0 : i32
    %c0_i32_0 = arith.constant 0 : i32
    %c0_i32_1 = arith.constant 0 : i32
    return %c0_i32, %c0_i32_0 : i32, i32
  }
  func.func @transform_8(%arg0: i32) -> (i32, i32) {
    %c0_i32 = arith.constant 0 : i32
    %c0_i32_0 = arith.constant 0 : i32
    %c0_i32_1 = arith.constant 0 : i32
    return %c0_i32, %c0_i32_0 : i32, i32
  }
  func.func @transform_9(%arg0: i32) -> (i32, i32) {
    %c0_i32 = arith.constant 0 : i32
    %c0_i32_0 = arith.constant 0 : i32
    %c0_i32_1 = arith.constant 0 : i32
    return %c0_i32, %c0_i32_0 : i32, i32
  }
  func.func @transform_10(%arg0: i32) -> (i32, i32) {
    %c0_i32 = arith.constant 0 : i32
    %c0_i32_0 = arith.constant 0 : i32
    %c0_i32_1 = arith.constant 0 : i32
    return %c0_i32, %c0_i32_0 : i32, i32
  }
  func.func @transform_11(%arg0: i32) -> (i32, i32) {
    %c0_i32 = arith.constant 0 : i32
    %c0_i32_0 = arith.constant 0 : i32
    %c0_i32_1 = arith.constant 0 : i32
    return %c0_i32, %c0_i32_0 : i32, i32
  }
  func.func @transform_12(%arg0: i32) -> (i32, i32) {
    %c0_i32 = arith.constant 0 : i32
    %c0_i32_0 = arith.constant 0 : i32
    %c0_i32_1 = arith.constant 0 : i32
    return %c0_i32, %c0_i32_0 : i32, i32
  }
  func.func @transform_13(%arg0: i32) -> (i32, i32) {
    %c0_i32 = arith.constant 0 : i32
    %c0_i32_0 = arith.constant 0 : i32
    %c0_i32_1 = arith.constant 0 : i32
    return %c0_i32, %c0_i32_0 : i32, i32
  }
  func.func @transform_14(%arg0: i32) -> (i32, i32) {
    %c0_i32 = arith.constant 0 : i32
    %c0_i32_0 = arith.constant 0 : i32
    %c0_i32_1 = arith.constant 0 : i32
    return %c0_i32, %c0_i32_0 : i32, i32
  }
  func.func @transform_15(%arg0: i32) -> (i32, i32) {
    %c0_i32 = arith.constant 0 : i32
    %c0_i32_0 = arith.constant 0 : i32
    %c0_i32_1 = arith.constant 0 : i32
    return %c0_i32, %c0_i32_0 : i32, i32
  }
  func.func @transform_16(%arg0: i32) -> (i32, i32) {
    %c0_i32 = arith.constant 0 : i32
    %c0_i32_0 = arith.constant 0 : i32
    %c0_i32_1 = arith.constant 0 : i32
    return %c0_i32, %c0_i32_0 : i32, i32
  }
  func.func @transform_17(%arg0: i32) -> (i32, i32) {
    %c0_i32 = arith.constant 0 : i32
    %c0_i32_0 = arith.constant 0 : i32
    %c0_i32_1 = arith.constant 0 : i32
    return %c0_i32, %c0_i32_0 : i32, i32
  }
  func.func @transform_18(%arg0: i32) -> (i32, i32) {
    %c0_i32 = arith.constant 0 : i32
    %c0_i32_0 = arith.constant 0 : i32
    %c0_i32_1 = arith.constant 0 : i32
    return %c0_i32, %c0_i32_0 : i32, i32
  }
  func.func @transform_19(%arg0: i32) -> (i32, i32) {
    %c0_i32 = arith.constant 0 : i32
    %c0_i32_0 = arith.constant 0 : i32
    %c0_i32_1 = arith.constant 0 : i32
    return %c0_i32, %c0_i32_0 : i32, i32
  }
  func.func @transform_20(%arg0: i32) -> (i32, i32) {
    %c0_i32 = arith.constant 0 : i32
    %c0_i32_0 = arith.constant 0 : i32
    %c0_i32_1 = arith.constant 0 : i32
    return %c0_i32, %c0_i32_0 : i32, i32
  }
  func.func @transform_21(%arg0: i32) -> (i32, i32) {
    %c0_i32 = arith.constant 0 : i32
    %c0_i32_0 = arith.constant 0 : i32
    %c0_i32_1 = arith.constant 0 : i32
    return %c0_i32, %c0_i32_0 : i32, i32
  }
}

</mosaic_0001>

<llo_original>
// kernel: autoencoder_forward.1
$region0: #{autoencoder_forward.1}
  #allocation0 [shape = 'u32[]', space=smem, size = 0x4, offset = 0x4, fixed_abs, tag = 'smem constant byte address 0x4 - core index']
  #allocation1 [shape = 'u32[144,128]{1,0:T(1,128)}', space=vmem, size = 0x12000, scoped, tag = 'internal scratch']
  %s0 = inlined_call_operand.vmem [shape: f32[4,784], index: 0, kind: input, shape index: {}]
  %s1 = inlined_call_operand.vmem [shape: bf16[784,288], index: 1, kind: input, shape index: {}]
  %s2 = inlined_call_operand.vmem [shape: f32[1,288], index: 2, kind: input, shape index: {}]
  %s3 = inlined_call_operand.vmem [shape: bf16[288,96], index: 3, kind: input, shape index: {}]
  %s4 = inlined_call_operand.vmem [shape: f32[1,96], index: 4, kind: input, shape index: {}]
  %s5 = inlined_call_operand.vmem [shape: bf16[96,40], index: 5, kind: input, shape index: {}]
  %s6 = inlined_call_operand.vmem [shape: f32[1,40], index: 6, kind: input, shape index: {}]
  %s7 = inlined_call_operand.vmem [shape: bf16[40,30], index: 7, kind: input, shape index: {}]
  %s8 = inlined_call_operand.vmem [shape: f32[1,30], index: 8, kind: input, shape index: {}]
  %s9 = inlined_call_operand.vmem [shape: bf16[30,20], index: 9, kind: input, shape index: {}]
  %s10 = inlined_call_operand.vmem [shape: f32[1,20], index: 10, kind: input, shape index: {}]
  %s11 = inlined_call_operand.vmem [shape: bf16[20,30], index: 11, kind: input, shape index: {}]
  %s12 = inlined_call_operand.vmem [shape: f32[1,30], index: 12, kind: input, shape index: {}]
  %s13 = inlined_call_operand.vmem [shape: bf16[30,40], index: 13, kind: input, shape index: {}]
  %s14 = inlined_call_operand.vmem [shape: f32[1,40], index: 14, kind: input, shape index: {}]
  %s15 = inlined_call_operand.vmem [shape: bf16[40,96], index: 15, kind: input, shape index: {}]
  %s16 = inlined_call_operand.vmem [shape: f32[1,96], index: 16, kind: input, shape index: {}]
  %s17 = inlined_call_operand.vmem [shape: bf16[96,288], index: 17, kind: input, shape index: {}]
  %s18 = inlined_call_operand.vmem [shape: f32[1,288], index: 18, kind: input, shape index: {}]
  %s19 = inlined_call_operand.vmem [shape: bf16[288,784], index: 19, kind: input, shape index: {}]
  %s20 = inlined_call_operand.vmem [shape: f32[1,784], index: 20, kind: input, shape index: {}]
  %s21 = inlined_call_operand.vmem [shape: f32[4,784], index: 21, kind: output, shape index: {}]
  %s22 = sld [smem:[#allocation0]]
  $region94: #{autoencoder_forward.1} parent=0
    _
  %s24 = ssub.s32 1, %s22
  %s25 = scalar_select 0, %s24, %s22
  // Predicated region
  $region2: #{autoencoder_forward.1} parent=0 // pred_check
    _
  $region3: #{autoencoder_forward.1} parent=0 // pred_check_branch
    %27 = sbr.rel (0) target = $region5
  $region4: #{autoencoder_forward.1} parent=0 // pred_region
    _
  $region5: #{autoencoder_forward.1} parent=0 // pred_fallthru
    _
  // Predicated region
  $region6: #{autoencoder_forward.1} parent=0 // pred_check
    _
  $region7: #{autoencoder_forward.1} parent=0 // pred_check_branch
    %29 = sbr.rel (0) target = $region9
  $region8: #{autoencoder_forward.1} parent=0 // pred_region
    _
  $region9: #{autoencoder_forward.1} parent=0 // pred_fallthru
    _
  // Predicated region
  $region10: #{autoencoder_forward.1} parent=0 // pred_check
    _
  $region11: #{autoencoder_forward.1} parent=0 // pred_check_branch
    %31 = sbr.rel (0) target = $region13
  $region12: #{autoencoder_forward.1} parent=0 // pred_region
    _
  $region13: #{autoencoder_forward.1} parent=0 // pred_fallthru
    _
  // Predicated region
  $region14: #{autoencoder_forward.1} parent=0 // pred_check
    _
  $region15: #{autoencoder_forward.1} parent=0 // pred_check_branch
    %33 = sbr.rel (0) target = $region17
  $region16: #{autoencoder_forward.1} parent=0 // pred_region
    _
  $region17: #{autoencoder_forward.1} parent=0 // pred_fallthru
    _
  // Predicated region
  $region18: #{autoencoder_forward.1} parent=0 // pred_check
    _
  $region19: #{autoencoder_forward.1} parent=0 // pred_check_branch
    %35 = sbr.rel (0) target = $region21
  $region20: #{autoencoder_forward.1} parent=0 // pred_region
    _
  $region21: #{autoencoder_forward.1} parent=0 // pred_fallthru
    _
  // Predicated region
  $region22: #{autoencoder_forward.1} parent=0 // pred_check
    _
  $region23: #{autoencoder_forward.1} parent=0 // pred_check_branch
    %37 = sbr.rel (0) target = $region25
  $region24: #{autoencoder_forward.1} parent=0 // pred_region
    _
  $region25: #{autoencoder_forward.1} parent=0 // pred_fallthru
    _
  // Predicated region
  $region26: #{autoencoder_forward.1} parent=0 // pred_check
    _
  $region27: #{autoencoder_forward.1} parent=0 // pred_check_branch
    %39 = sbr.rel (0) target = $region29
  $region28: #{autoencoder_forward.1} parent=0 // pred_region
    _
  $region29: #{autoencoder_forward.1} parent=0 // pred_fallthru
    _
  // Predicated region
  $region30: #{autoencoder_forward.1} parent=0 // pred_check
    _
  $region31: #{autoencoder_forward.1} parent=0 // pred_check_branch
    %41 = sbr.rel (0) target = $region33
  $region32: #{autoencoder_forward.1} parent=0 // pred_region
    _
  $region33: #{autoencoder_forward.1} parent=0 // pred_fallthru
    _
  // Predicated region
  $region34: #{autoencoder_forward.1} parent=0 // pred_check
    _
  $region35: #{autoencoder_forward.1} parent=0 // pred_check_branch
    %43 = sbr.rel (0) target = $region37
  $region36: #{autoencoder_forward.1} parent=0 // pred_region
    _
  $region37: #{autoencoder_forward.1} parent=0 // pred_fallthru
    _
  // Predicated region
  $region38: #{autoencoder_forward.1} parent=0 // pred_check
    _
  $region39: #{autoencoder_forward.1} parent=0 // pred_check_branch
    %45 = sbr.rel (0) target = $region41
  $region40: #{autoencoder_forward.1} parent=0 // pred_region
    _
  $region41: #{autoencoder_forward.1} parent=0 // pred_fallthru
    _
  // Predicated region
  $region42: #{autoencoder_forward.1} parent=0 // pred_check
    _
  $region43: #{autoencoder_forward.1} parent=0 // pred_check_branch
    %47 = sbr.rel (0) target = $region45
  $region44: #{autoencoder_forward.1} parent=0 // pred_region
    _
  $region45: #{autoencoder_forward.1} parent=0 // pred_fallthru
    _
  // Predicated region
  $region46: #{autoencoder_forward.1} parent=0 // pred_check
    _
  $region47: #{autoencoder_forward.1} parent=0 // pred_check_branch
    %49 = sbr.rel (0) target = $region49
  $region48: #{autoencoder_forward.1} parent=0 // pred_region
    _
  $region49: #{autoencoder_forward.1} parent=0 // pred_fallthru
    _
  // Predicated region
  $region50: #{autoencoder_forward.1} parent=0 // pred_check
    _
  $region51: #{autoencoder_forward.1} parent=0 // pred_check_branch
    %51 = sbr.rel (0) target = $region53
  $region52: #{autoencoder_forward.1} parent=0 // pred_region
    _
  $region53: #{autoencoder_forward.1} parent=0 // pred_fallthru
    _
  // Predicated region
  $region54: #{autoencoder_forward.1} parent=0 // pred_check
    _
  $region55: #{autoencoder_forward.1} parent=0 // pred_check_branch
    %53 = sbr.rel (0) target = $region57
  $region56: #{autoencoder_forward.1} parent=0 // pred_region
    _
  $region57: #{autoencoder_forward.1} parent=0 // pred_fallthru
    _
  // Predicated region
  $region58: #{autoencoder_forward.1} parent=0 // pred_check
    _
  $region59: #{autoencoder_forward.1} parent=0 // pred_check_branch
    %55 = sbr.rel (0) target = $region61
  $region60: #{autoencoder_forward.1} parent=0 // pred_region
    _
  $region61: #{autoencoder_forward.1} parent=0 // pred_fallthru
    _
  // Predicated region
  $region62: #{autoencoder_forward.1} parent=0 // pred_check
    _
  $region63: #{autoencoder_forward.1} parent=0 // pred_check_branch
    %57 = sbr.rel (0) target = $region65
  $region64: #{autoencoder_forward.1} parent=0 // pred_region
    _
  $region65: #{autoencoder_forward.1} parent=0 // pred_fallthru
    _
  // Predicated region
  $region66: #{autoencoder_forward.1} parent=0 // pred_check
    _
  $region67: #{autoencoder_forward.1} parent=0 // pred_check_branch
    %59 = sbr.rel (0) target = $region69
  $region68: #{autoencoder_forward.1} parent=0 // pred_region
    _
  $region69: #{autoencoder_forward.1} parent=0 // pred_fallthru
    _
  // Predicated region
  $region70: #{autoencoder_forward.1} parent=0 // pred_check
    _
  $region71: #{autoencoder_forward.1} parent=0 // pred_check_branch
    %61 = sbr.rel (0) target = $region73
  $region72: #{autoencoder_forward.1} parent=0 // pred_region
    _
  $region73: #{autoencoder_forward.1} parent=0 // pred_fallthru
    _
  // Predicated region
  $region74: #{autoencoder_forward.1} parent=0 // pred_check
    _
  $region75: #{autoencoder_forward.1} parent=0 // pred_check_branch
    %63 = sbr.rel (0) target = $region77
  $region76: #{autoencoder_forward.1} parent=0 // pred_region
    _
  $region77: #{autoencoder_forward.1} parent=0 // pred_fallthru
    _
  // Predicated region
  $region78: #{autoencoder_forward.1} parent=0 // pred_check
    _
  $region79: #{autoencoder_forward.1} parent=0 // pred_check_branch
    %65 = sbr.rel (0) target = $region81
  $region80: #{autoencoder_forward.1} parent=0 // pred_region
    _
  $region81: #{autoencoder_forward.1} parent=0 // pred_fallthru
    _
  // Predicated region
  $region82: #{autoencoder_forward.1} parent=0 // pred_check
    _
  $region83: #{autoencoder_forward.1} parent=0 // pred_check_branch
    %67 = sbr.rel (0) target = $region85
  $region84: #{autoencoder_forward.1} parent=0 // pred_region
    _
  $region85: #{autoencoder_forward.1} parent=0 // pred_fallthru
    _
  %v69 = vld [vmem:[%s0] sm:$0xff]
  %v70 = vld [vmem:[%s0 + $0x8] sm:$0xff]
  %v71 = vld [vmem:[%s0 + $0x10] sm:$0xff]
  %v72 = vld [vmem:[%s0 + $0x18] sm:$0xf]
  %v77 = vcombine.high %v69, %v69
  %v78 = vcombine.high %v70, %v70
  %v79 = vcombine.high %v71, %v71
  %80 = vrot.lane.b32.xlu0 %v69, 127
  %v81 = vpop.permute.xlu0 %80
  %82 = vrot.lane.b32.xlu0 %v77, 127
  %v83 = vpop.permute.xlu0 %82
  %84 = vrot.lane.b32.xlu0 %v70, 127
  %v85 = vpop.permute.xlu0 %84
  %86 = vrot.lane.b32.xlu0 %v78, 127
  %v87 = vpop.permute.xlu0 %86
  %88 = vrot.lane.b32.xlu0 %v71, 127
  %v89 = vpop.permute.xlu0 %88
  %90 = vrot.lane.b32.xlu0 %v79, 127
  %v91 = vpop.permute.xlu0 %90
  %92 = vrot.lane.b32.xlu0 %v72, 127
  %v93 = vpop.permute.xlu0 %92
  %vm94 = vcmask 1039360
  %v95 = vsel %vm94, %v81, %v83
  %v96 = vsel %vm94, %v83, %v85
  %v97 = vsel %vm94, %v85, %v87
  %v98 = vsel %vm94, %v87, %v89
  %v99 = vsel %vm94, %v89, %v91
  %v100 = vsel %vm94, %v91, %v93
  %vm102 = vcmask 121856
  %v103 = vsel %vm102, %v93, 0.0
  %104 = vrot.lane.b32.xlu0 %v69, 100
  %v105 = vpop.permute.xlu0 %104
  %106 = vrot.lane.b32.xlu0 %v77, 100
  %v107 = vpop.permute.xlu0 %106
  %108 = vrot.lane.b32.xlu0 %v70, 100
  %v109 = vpop.permute.xlu0 %108
  %110 = vrot.lane.b32.xlu0 %v78, 100
  %v111 = vpop.permute.xlu0 %110
  %112 = vrot.lane.b32.xlu0 %v71, 100
  %v113 = vpop.permute.xlu0 %112
  %114 = vrot.lane.b32.xlu0 %v79, 100
  %v115 = vpop.permute.xlu0 %114
  %116 = vrot.lane.b32.xlu0 %v72, 100
  %v117 = vpop.permute.xlu0 %116
  %vm118 = vcmask 818176
  %v119 = vsel %vm118, %v105, %v107
  %v120 = vsel %vm118, %v107, %v109
  %v121 = vsel %vm118, %v109, %v111
  %v122 = vsel %vm118, %v111, %v113
  %v123 = vsel %vm118, %v113, %v115
  %v124 = vsel %vm118, %v115, %v117
  %vm131 = vcmask 949248
  %v132 = vsel %vm131, %v124, 0.0
  %133 = vrot.lane.b32.xlu0 %v69, 99
  %v134 = vpop.permute.xlu0 %133
  %135 = vrot.lane.b32.xlu0 %v77, 99
  %v136 = vpop.permute.xlu0 %135
  %137 = vrot.lane.b32.xlu0 %v70, 99
  %v138 = vpop.permute.xlu0 %137
  %139 = vrot.lane.b32.xlu0 %v78, 99
  %v140 = vpop.permute.xlu0 %139
  %141 = vrot.lane.b32.xlu0 %v71, 99
  %v142 = vpop.permute.xlu0 %141
  %143 = vrot.lane.b32.xlu0 %v79, 99
  %v144 = vpop.permute.xlu0 %143
  %145 = vrot.lane.b32.xlu0 %v72, 99
  %v146 = vpop.permute.xlu0 %145
  %vm147 = vcmask 809984
  %v148 = vsel %vm147, %v134, %v136
  %v149 = vsel %vm147, %v136, %v138
  %v150 = vsel %vm147, %v138, %v140
  %v151 = vsel %vm147, %v140, %v142
  %v152 = vsel %vm147, %v142, %v144
  %v153 = vsel %vm147, %v144, %v146
  %vm155 = vcmask 941056
  %v156 = vsel %vm155, %v153, 0.0
  %v161 = vrot.slane %v95, 4
  %v162 = vrot.slane %v96, 4
  %v163 = vrot.slane %v97, 4
  %v164 = vrot.slane %v98, 4
  %v165 = vrot.slane %v99, 4
  %v166 = vrot.slane %v100, 4
  %v167 = vrot.slane %v103, 4
  %v177 = vrot.slane %v148, 4
  %v178 = vrot.slane %v149, 4
  %v179 = vrot.slane %v150, 4
  %v180 = vrot.slane %v151, 4
  %v181 = vrot.slane %v152, 4
  %v182 = vrot.slane %v156, 4
  %v183 = vrot.slane 0.0, 4
  %vm191 = vcmask 1043456
  %v192 = vsel %vm191, %v69, %v161
  %v193 = vsel %vm191, %v77, %v162
  %v194 = vsel %vm191, %v70, %v163
  %v195 = vsel %vm191, %v78, %v164
  %v196 = vsel %vm191, %v71, %v165
  %v197 = vsel %vm191, %v79, %v166
  %v198 = vsel %vm191, %v72, %v167
  %v199 = vsel %vm191, %v119, %v177
  %v200 = vsel %vm191, %v120, %v178
  %v201 = vsel %vm191, %v121, %v179
  %v202 = vsel %vm191, %v122, %v180
  %v203 = vsel %vm191, %v123, %v181
  %v204 = vsel %vm191, %v132, %v182
  %v205 = vsel %vm191, 0.0, %v183
  %v206 = vpack.c.bf16 %v199, %v192
  %v207 = vpack.c.bf16 %v200, %v193
  %v208 = vpack.c.bf16 %v201, %v194
  %v209 = vpack.c.bf16 %v202, %v195
  %v210 = vpack.c.bf16 %v203, %v196
  %v211 = vpack.c.bf16 %v204, %v197
  %v212 = vpack.c.bf16 %v205, %v198
  %v213 = vld [vmem:[%s1] sm:$0xff]
  %v214 = vld [vmem:[%s1 + $0x8] sm:$0xf]
  %v215 = vld [vmem:[%s1 + $0xc] sm:$0xff]
  %v216 = vld [vmem:[%s1 + $0x14] sm:$0xf]
  %v217 = vld [vmem:[%s1 + $0x18] sm:$0xff]
  %v218 = vld [vmem:[%s1 + $0x20] sm:$0xf]
  %v219 = vld [vmem:[%s1 + $0x24] sm:$0xff]
  %v220 = vld [vmem:[%s1 + $0x2c] sm:$0xf]
  %v221 = vld [vmem:[%s1 + $0x30] sm:$0xff]
  %v222 = vld [vmem:[%s1 + $0x38] sm:$0xf]
  %v223 = vld [vmem:[%s1 + $0x3c] sm:$0xff]
  %v224 = vld [vmem:[%s1 + $0x44] sm:$0xf]
  %v225 = vld [vmem:[%s1 + $0x48] sm:$0xff]
  %v226 = vld [vmem:[%s1 + $0x50] sm:$0xf]
  %v227 = vld [vmem:[%s1 + $0x54] sm:$0xff]
  %v228 = vld [vmem:[%s1 + $0x5c] sm:$0xf]
  %v229 = vld [vmem:[%s1 + $0x60] sm:$0xff]
  %v230 = vld [vmem:[%s1 + $0x68] sm:$0xf]
  %v231 = vld [vmem:[%s1 + $0x6c] sm:$0xff]
  %v232 = vld [vmem:[%s1 + $0x74] sm:$0xf]
  %v233 = vld [vmem:[%s1 + $0x78] sm:$0xff]
  %v234 = vld [vmem:[%s1 + $0x80] sm:$0xf]
  %v235 = vld [vmem:[%s1 + $0x84] sm:$0xff]
  %v236 = vld [vmem:[%s1 + $0x8c] sm:$0xf]
  %v237 = vld [vmem:[%s1 + $0x90] sm:$0xff]
  %v238 = vld [vmem:[%s1 + $0x98] sm:$0xf]
  %v239 = vld [vmem:[%s1 + $0x9c] sm:$0xff]
  %v240 = vld [vmem:[%s1 + $0xa4] sm:$0xf]
  %v241 = vld [vmem:[%s1 + $0xa8] sm:$0xff]
  %v242 = vld [vmem:[%s1 + $0xb0] sm:$0xf]
  %v243 = vld [vmem:[%s1 + $0xb4] sm:$0xff]
  %v244 = vld [vmem:[%s1 + $0xbc] sm:$0xf]
  %v245 = vld [vmem:[%s1 + $0xc0] sm:$0xff]
  %v246 = vld [vmem:[%s1 + $0xc8] sm:$0xf]
  %v247 = vld [vmem:[%s1 + $0xcc] sm:$0xff]
  %v248 = vld [vmem:[%s1 + $0xd4] sm:$0xf]
  %v249 = vld [vmem:[%s1 + $0xd8] sm:$0xff]
  %v250 = vld [vmem:[%s1 + $0xe0] sm:$0xf]
  %v251 = vld [vmem:[%s1 + $0xe4] sm:$0xff]
  %v252 = vld [vmem:[%s1 + $0xec] sm:$0xf]
  %v253 = vld [vmem:[%s1 + $0xf0] sm:$0xff]
  %v254 = vld [vmem:[%s1 + $0xf8] sm:$0xf]
  %v255 = vld [vmem:[%s1 + $0xfc] sm:$0xff]
  %v256 = vld [vmem:[%s1 + $0x104] sm:$0xf]
  %v257 = vld [vmem:[%s1 + $0x108] sm:$0xff]
  %v258 = vld [vmem:[%s1 + $0x110] sm:$0xf]
  %v259 = vld [vmem:[%s1 + $0x114] sm:$0xff]
  %v260 = vld [vmem:[%s1 + $0x11c] sm:$0xf]
  %v261 = vld [vmem:[%s1 + $0x120] sm:$0xff]
  %v262 = vld [vmem:[%s1 + $0x128] sm:$0xf]
  %v263 = vld [vmem:[%s1 + $0x12c] sm:$0xff]
  %v264 = vld [vmem:[%s1 + $0x134] sm:$0xf]
  %v265 = vld [vmem:[%s1 + $0x138] sm:$0xff]
  %v266 = vld [vmem:[%s1 + $0x140] sm:$0xf]
  %v267 = vld [vmem:[%s1 + $0x144] sm:$0xff]
  %v268 = vld [vmem:[%s1 + $0x14c] sm:$0xf]
  %v269 = vld [vmem:[%s1 + $0x150] sm:$0xff]
  %v270 = vld [vmem:[%s1 + $0x158] sm:$0xf]
  %v271 = vld [vmem:[%s1 + $0x15c] sm:$0xff]
  %v272 = vld [vmem:[%s1 + $0x164] sm:$0xf]
  %v273 = vld [vmem:[%s1 + $0x168] sm:$0xff]
  %v274 = vld [vmem:[%s1 + $0x170] sm:$0xf]
  %v275 = vld [vmem:[%s1 + $0x174] sm:$0xff]
  %v276 = vld [vmem:[%s1 + $0x17c] sm:$0xf]
  %v277 = vld [vmem:[%s1 + $0x180] sm:$0xff]
  %v278 = vld [vmem:[%s1 + $0x188] sm:$0xf]
  %v279 = vld [vmem:[%s1 + $0x18c] sm:$0xff]
  %v280 = vld [vmem:[%s1 + $0x194] sm:$0xf]
  %v281 = vld [vmem:[%s1 + $0x198] sm:$0xff]
  %v282 = vld [vmem:[%s1 + $0x1a0] sm:$0xf]
  %v283 = vld [vmem:[%s1 + $0x1a4] sm:$0xff]
  %v284 = vld [vmem:[%s1 + $0x1ac] sm:$0xf]
  %v285 = vld [vmem:[%s1 + $0x1b0] sm:$0xff]
  %v286 = vld [vmem:[%s1 + $0x1b8] sm:$0xf]
  %v287 = vld [vmem:[%s1 + $0x1bc] sm:$0xff]
  %v288 = vld [vmem:[%s1 + $0x1c4] sm:$0xf]
  %v289 = vld [vmem:[%s1 + $0x1c8] sm:$0xff]
  %v290 = vld [vmem:[%s1 + $0x1d0] sm:$0xf]
  %v291 = vld [vmem:[%s1 + $0x1d4] sm:$0xff]
  %v292 = vld [vmem:[%s1 + $0x1dc] sm:$0xf]
  %v293 = vld [vmem:[%s1 + $0x1e0] sm:$0xff]
  %v294 = vld [vmem:[%s1 + $0x1e8] sm:$0xf]
  %v295 = vld [vmem:[%s1 + $0x1ec] sm:$0xff]
  %v296 = vld [vmem:[%s1 + $0x1f4] sm:$0xf]
  %v297 = vld [vmem:[%s1 + $0x1f8] sm:$0xff]
  %v298 = vld [vmem:[%s1 + $0x200] sm:$0xf]
  %v299 = vld [vmem:[%s1 + $0x204] sm:$0xff]
  %v300 = vld [vmem:[%s1 + $0x20c] sm:$0xf]
  %v301 = vld [vmem:[%s1 + $0x210] sm:$0xff]
  %v302 = vld [vmem:[%s1 + $0x218] sm:$0xf]
  %v303 = vld [vmem:[%s1 + $0x21c] sm:$0xff]
  %v304 = vld [vmem:[%s1 + $0x224] sm:$0xf]
  %v305 = vld [vmem:[%s1 + $0x228] sm:$0xff]
  %v306 = vld [vmem:[%s1 + $0x230] sm:$0xf]
  %v307 = vld [vmem:[%s1 + $0x234] sm:$0xff]
  %v308 = vld [vmem:[%s1 + $0x23c] sm:$0xf]
  %v309 = vld [vmem:[%s1 + $0x240] sm:$0xff]
  %v310 = vld [vmem:[%s1 + $0x248] sm:$0xf]
  %v311 = vld [vmem:[%s1 + $0x24c] sm:$0xff]
  %v312 = vld [vmem:[%s1 + $0x254] sm:$0xf]
  %v313 = vld [vmem:[%s1 + $0x258] sm:$0xff]
  %v314 = vld [vmem:[%s1 + $0x260] sm:$0xf]
  %v315 = vld [vmem:[%s1 + $0x264] sm:$0xff]
  %v316 = vld [vmem:[%s1 + $0x26c] sm:$0xf]
  %v317 = vld [vmem:[%s1 + $0x270] sm:$0xff]
  %v318 = vld [vmem:[%s1 + $0x278] sm:$0xf]
  %v319 = vld [vmem:[%s1 + $0x27c] sm:$0xff]
  %v320 = vld [vmem:[%s1 + $0x284] sm:$0xf]
  %v321 = vld [vmem:[%s1 + $0x288] sm:$0xff]
  %v322 = vld [vmem:[%s1 + $0x290] sm:$0xf]
  %v323 = vld [vmem:[%s1 + $0x294] sm:$0xff]
  %v324 = vld [vmem:[%s1 + $0x29c] sm:$0xf]
  %v325 = vld [vmem:[%s1 + $0x2a0] sm:$0xff]
  %v326 = vld [vmem:[%s1 + $0x2a8] sm:$0xf]
  %v327 = vld [vmem:[%s1 + $0x2ac] sm:$0xff]
  %v328 = vld [vmem:[%s1 + $0x2b4] sm:$0xf]
  %v329 = vld [vmem:[%s1 + $0x2b8] sm:$0xff]
  %v330 = vld [vmem:[%s1 + $0x2c0] sm:$0xf]
  %v331 = vld [vmem:[%s1 + $0x2c4] sm:$0xff]
  %v332 = vld [vmem:[%s1 + $0x2cc] sm:$0xf]
  %v333 = vld [vmem:[%s1 + $0x2d0] sm:$0xff]
  %v334 = vld [vmem:[%s1 + $0x2d8] sm:$0xf]
  %v335 = vld [vmem:[%s1 + $0x2dc] sm:$0xff]
  %v336 = vld [vmem:[%s1 + $0x2e4] sm:$0xf]
  %v337 = vld [vmem:[%s1 + $0x2e8] sm:$0xff]
  %v338 = vld [vmem:[%s1 + $0x2f0] sm:$0xf]
  %v339 = vld [vmem:[%s1 + $0x2f4] sm:$0xff]
  %v340 = vld [vmem:[%s1 + $0x2fc] sm:$0xf]
  %v341 = vld [vmem:[%s1 + $0x300] sm:$0xff]
  %v342 = vld [vmem:[%s1 + $0x308] sm:$0xf]
  %v343 = vld [vmem:[%s1 + $0x30c] sm:$0xff]
  %v344 = vld [vmem:[%s1 + $0x314] sm:$0xf]
  %v345 = vld [vmem:[%s1 + $0x318] sm:$0xff]
  %v346 = vld [vmem:[%s1 + $0x320] sm:$0xf]
  %v347 = vld [vmem:[%s1 + $0x324] sm:$0xff]
  %v348 = vld [vmem:[%s1 + $0x32c] sm:$0xf]
  %v349 = vld [vmem:[%s1 + $0x330] sm:$0xff]
  %v350 = vld [vmem:[%s1 + $0x338] sm:$0xf]
  %v351 = vld [vmem:[%s1 + $0x33c] sm:$0xff]
  %v352 = vld [vmem:[%s1 + $0x344] sm:$0xf]
  %v353 = vld [vmem:[%s1 + $0x348] sm:$0xff]
  %v354 = vld [vmem:[%s1 + $0x350] sm:$0xf]
  %v355 = vld [vmem:[%s1 + $0x354] sm:$0xff]
  %v356 = vld [vmem:[%s1 + $0x35c] sm:$0xf]
  %v357 = vld [vmem:[%s1 + $0x360] sm:$0xff]
  %v358 = vld [vmem:[%s1 + $0x368] sm:$0xf]
  %v359 = vld [vmem:[%s1 + $0x36c] sm:$0xff]
  %v360 = vld [vmem:[%s1 + $0x374] sm:$0xf]
  %v361 = vld [vmem:[%s1 + $0x378] sm:$0xff]
  %v362 = vld [vmem:[%s1 + $0x380] sm:$0xf]
  %v363 = vld [vmem:[%s1 + $0x384] sm:$0xff]
  %v364 = vld [vmem:[%s1 + $0x38c] sm:$0xf]
  %v365 = vld [vmem:[%s1 + $0x390] sm:$0xff]
  %v366 = vld [vmem:[%s1 + $0x398] sm:$0xf]
  %v367 = vld [vmem:[%s1 + $0x39c] sm:$0xff]
  %v368 = vld [vmem:[%s1 + $0x3a4] sm:$0xf]
  %v369 = vld [vmem:[%s1 + $0x3a8] sm:$0xff]
  %v370 = vld [vmem:[%s1 + $0x3b0] sm:$0xf]
  %v371 = vld [vmem:[%s1 + $0x3b4] sm:$0xff]
  %v372 = vld [vmem:[%s1 + $0x3bc] sm:$0xf]
  %v373 = vld [vmem:[%s1 + $0x3c0] sm:$0xff]
  %v374 = vld [vmem:[%s1 + $0x3c8] sm:$0xf]
  %v375 = vld [vmem:[%s1 + $0x3cc] sm:$0xff]
  %v376 = vld [vmem:[%s1 + $0x3d4] sm:$0xf]
  %v377 = vld [vmem:[%s1 + $0x3d8] sm:$0xff]
  %v378 = vld [vmem:[%s1 + $0x3e0] sm:$0xf]
  %v379 = vld [vmem:[%s1 + $0x3e4] sm:$0xff]
  %v380 = vld [vmem:[%s1 + $0x3ec] sm:$0xf]
  %v381 = vld [vmem:[%s1 + $0x3f0] sm:$0xff]
  %v382 = vld [vmem:[%s1 + $0x3f8] sm:$0xf]
  %v383 = vld [vmem:[%s1 + $0x3fc] sm:$0xff]
  %v384 = vld [vmem:[%s1 + $0x404] sm:$0xf]
  %v385 = vld [vmem:[%s1 + $0x408] sm:$0xff]
  %v386 = vld [vmem:[%s1 + $0x410] sm:$0xf]
  %v387 = vld [vmem:[%s1 + $0x414] sm:$0xff]
  %v388 = vld [vmem:[%s1 + $0x41c] sm:$0xf]
  %v389 = vld [vmem:[%s1 + $0x420] sm:$0xff]
  %v390 = vld [vmem:[%s1 + $0x428] sm:$0xf]
  %v391 = vld [vmem:[%s1 + $0x42c] sm:$0xff]
  %v392 = vld [vmem:[%s1 + $0x434] sm:$0xf]
  %v393 = vld [vmem:[%s1 + $0x438] sm:$0xff]
  %v394 = vld [vmem:[%s1 + $0x440] sm:$0xf]
  %v395 = vld [vmem:[%s1 + $0x444] sm:$0xff]
  %v396 = vld [vmem:[%s1 + $0x44c] sm:$0xf]
  %v397 = vld [vmem:[%s1 + $0x450] sm:$0xff]
  %v398 = vld [vmem:[%s1 + $0x458] sm:$0xf]
  %v399 = vld [vmem:[%s1 + $0x45c] sm:$0xff]
  %v400 = vld [vmem:[%s1 + $0x464] sm:$0xf]
  %v401 = vld [vmem:[%s1 + $0x468] sm:$0xff]
  %v402 = vld [vmem:[%s1 + $0x470] sm:$0xf]
  %v403 = vld [vmem:[%s1 + $0x474] sm:$0xff]
  %v404 = vld [vmem:[%s1 + $0x47c] sm:$0xf]
  %v405 = vld [vmem:[%s1 + $0x480] sm:$0xff]
  %v406 = vld [vmem:[%s1 + $0x488] sm:$0xf]
  %v407 = vld [vmem:[%s1 + $0x48c] sm:$0xff]
  %v408 = vld [vmem:[%s1 + $0x494] sm:$0xf]
  %v605 = vunpack.c.l.b16 %v213
  %v606 = vunpack.c.h.b16 %v213
  %v607 = vunpack.c.l.b16 %v214
  %v608 = vunpack.c.l.b16 %v215
  %v609 = vunpack.c.h.b16 %v215
  %v610 = vunpack.c.l.b16 %v216
  %v611 = vunpack.c.l.b16 %v217
  %v612 = vunpack.c.h.b16 %v217
  %v613 = vunpack.c.l.b16 %v218
  %v614 = vunpack.c.l.b16 %v219
  %v615 = vunpack.c.h.b16 %v219
  %v616 = vunpack.c.l.b16 %v220
  %v617 = vunpack.c.l.b16 %v221
  %v618 = vunpack.c.h.b16 %v221
  %v619 = vunpack.c.l.b16 %v222
  %v620 = vunpack.c.l.b16 %v223
  %v621 = vunpack.c.h.b16 %v223
  %v622 = vunpack.c.l.b16 %v224
  %v623 = vunpack.c.l.b16 %v225
  %v624 = vunpack.c.h.b16 %v225
  %v625 = vunpack.c.l.b16 %v226
  %v626 = vunpack.c.l.b16 %v227
  %v627 = vunpack.c.h.b16 %v227
  %v628 = vunpack.c.l.b16 %v228
  %v629 = vunpack.c.l.b16 %v229
  %v630 = vunpack.c.h.b16 %v229
  %v631 = vunpack.c.l.b16 %v230
  %v632 = vunpack.c.l.b16 %v231
  %v633 = vunpack.c.h.b16 %v231
  %v634 = vunpack.c.l.b16 %v232
  %v635 = vunpack.c.l.b16 %v233
  %v636 = vunpack.c.h.b16 %v233
  %v637 = vunpack.c.l.b16 %v234
  %v638 = vunpack.c.l.b16 %v235
  %v639 = vunpack.c.h.b16 %v235
  %v640 = vunpack.c.l.b16 %v236
  %v641 = vunpack.c.l.b16 %v237
  %v642 = vunpack.c.h.b16 %v237
  %v643 = vunpack.c.l.b16 %v238
  %v644 = vunpack.c.l.b16 %v239
  %v645 = vunpack.c.h.b16 %v239
  %v646 = vunpack.c.l.b16 %v240
  %v647 = vunpack.c.l.b16 %v241
  %v648 = vunpack.c.h.b16 %v241
  %v649 = vunpack.c.l.b16 %v242
  %v650 = vunpack.c.l.b16 %v243
  %v651 = vunpack.c.h.b16 %v243
  %v652 = vunpack.c.l.b16 %v244
  %v653 = vunpack.c.l.b16 %v245
  %v654 = vunpack.c.h.b16 %v245
  %v655 = vunpack.c.l.b16 %v246
  %v656 = vunpack.c.l.b16 %v247
  %v657 = vunpack.c.h.b16 %v247
  %v658 = vunpack.c.l.b16 %v248
  %v659 = vunpack.c.l.b16 %v249
  %v660 = vunpack.c.h.b16 %v249
  %v661 = vunpack.c.l.b16 %v250
  %v662 = vunpack.c.l.b16 %v251
  %v663 = vunpack.c.h.b16 %v251
  %v664 = vunpack.c.l.b16 %v252
  %v665 = vunpack.c.l.b16 %v253
  %v666 = vunpack.c.h.b16 %v253
  %v667 = vunpack.c.l.b16 %v254
  %v668 = vunpack.c.l.b16 %v255
  %v669 = vunpack.c.h.b16 %v255
  %v670 = vunpack.c.l.b16 %v256
  %v671 = vunpack.c.l.b16 %v257
  %v672 = vunpack.c.h.b16 %v257
  %v673 = vunpack.c.l.b16 %v258
  %v674 = vunpack.c.l.b16 %v259
  %v675 = vunpack.c.h.b16 %v259
  %v676 = vunpack.c.l.b16 %v260
  %v677 = vunpack.c.l.b16 %v261
  %v678 = vunpack.c.h.b16 %v261
  %v679 = vunpack.c.l.b16 %v262
  %v680 = vunpack.c.l.b16 %v263
  %v681 = vunpack.c.h.b16 %v263
  %v682 = vunpack.c.l.b16 %v264
  %v683 = vunpack.c.l.b16 %v265
  %v684 = vunpack.c.h.b16 %v265
  %v685 = vunpack.c.l.b16 %v266
  %v686 = vunpack.c.l.b16 %v267
  %v687 = vunpack.c.h.b16 %v267
  %v688 = vunpack.c.l.b16 %v268
  %v689 = vunpack.c.l.b16 %v269
  %v690 = vunpack.c.h.b16 %v269
  %v691 = vunpack.c.l.b16 %v270
  %v692 = vunpack.c.l.b16 %v271
  %v693 = vunpack.c.h.b16 %v271
  %v694 = vunpack.c.l.b16 %v272
  %v695 = vunpack.c.l.b16 %v273
  %v696 = vunpack.c.h.b16 %v273
  %v697 = vunpack.c.l.b16 %v274
  %v698 = vunpack.c.l.b16 %v275
  %v699 = vunpack.c.h.b16 %v275
  %v700 = vunpack.c.l.b16 %v276
  %v701 = vunpack.c.l.b16 %v277
  %v702 = vunpack.c.h.b16 %v277
  %v703 = vunpack.c.l.b16 %v278
  %v704 = vunpack.c.l.b16 %v279
  %v705 = vunpack.c.h.b16 %v279
  %v706 = vunpack.c.l.b16 %v280
  %v707 = vunpack.c.l.b16 %v281
  %v708 = vunpack.c.h.b16 %v281
  %v709 = vunpack.c.l.b16 %v282
  %v710 = vunpack.c.l.b16 %v283
  %v711 = vunpack.c.h.b16 %v283
  %v712 = vunpack.c.l.b16 %v284
  %v713 = vunpack.c.l.b16 %v285
  %v714 = vunpack.c.h.b16 %v285
  %v715 = vunpack.c.l.b16 %v286
  %v716 = vunpack.c.l.b16 %v287
  %v717 = vunpack.c.h.b16 %v287
  %v718 = vunpack.c.l.b16 %v288
  %v719 = vunpack.c.l.b16 %v289
  %v720 = vunpack.c.h.b16 %v289
  %v721 = vunpack.c.l.b16 %v290
  %v722 = vunpack.c.l.b16 %v291
  %v723 = vunpack.c.h.b16 %v291
  %v724 = vunpack.c.l.b16 %v292
  %v725 = vunpack.c.l.b16 %v293
  %v726 = vunpack.c.h.b16 %v293
  %v727 = vunpack.c.l.b16 %v294
  %v728 = vunpack.c.l.b16 %v295
  %v729 = vunpack.c.h.b16 %v295
  %v730 = vunpack.c.l.b16 %v296
  %v731 = vunpack.c.l.b16 %v297
  %v732 = vunpack.c.h.b16 %v297
  %v733 = vunpack.c.l.b16 %v298
  %v734 = vunpack.c.l.b16 %v299
  %v735 = vunpack.c.h.b16 %v299
  %v736 = vunpack.c.l.b16 %v300
  %v737 = vunpack.c.l.b16 %v301
  %v738 = vunpack.c.h.b16 %v301
  %v739 = vunpack.c.l.b16 %v302
  %v740 = vunpack.c.l.b16 %v303
  %v741 = vunpack.c.h.b16 %v303
  %v742 = vunpack.c.l.b16 %v304
  %v743 = vunpack.c.l.b16 %v305
  %v744 = vunpack.c.h.b16 %v305
  %v745 = vunpack.c.l.b16 %v306
  %v746 = vunpack.c.l.b16 %v307
  %v747 = vunpack.c.h.b16 %v307
  %v748 = vunpack.c.l.b16 %v308
  %v749 = vunpack.c.l.b16 %v309
  %v750 = vunpack.c.h.b16 %v309
  %v751 = vunpack.c.l.b16 %v310
  %v752 = vunpack.c.l.b16 %v311
  %v753 = vunpack.c.h.b16 %v311
  %v754 = vunpack.c.l.b16 %v312
  %v755 = vunpack.c.l.b16 %v313
  %v756 = vunpack.c.h.b16 %v313
  %v757 = vunpack.c.l.b16 %v314
  %v758 = vunpack.c.l.b16 %v315
  %v759 = vunpack.c.h.b16 %v315
  %v760 = vunpack.c.l.b16 %v316
  %v761 = vunpack.c.l.b16 %v317
  %v762 = vunpack.c.h.b16 %v317
  %v763 = vunpack.c.l.b16 %v318
  %v764 = vunpack.c.l.b16 %v319
  %v765 = vunpack.c.h.b16 %v319
  %v766 = vunpack.c.l.b16 %v320
  %v767 = vunpack.c.l.b16 %v321
  %v768 = vunpack.c.h.b16 %v321
  %v769 = vunpack.c.l.b16 %v322
  %v770 = vunpack.c.l.b16 %v323
  %v771 = vunpack.c.h.b16 %v323
  %v772 = vunpack.c.l.b16 %v324
  %v773 = vunpack.c.l.b16 %v325
  %v774 = vunpack.c.h.b16 %v325
  %v775 = vunpack.c.l.b16 %v326
  %v776 = vunpack.c.l.b16 %v327
  %v777 = vunpack.c.h.b16 %v327
  %v778 = vunpack.c.l.b16 %v328
  %v779 = vunpack.c.l.b16 %v329
  %v780 = vunpack.c.h.b16 %v329
  %v781 = vunpack.c.l.b16 %v330
  %v782 = vunpack.c.l.b16 %v331
  %v783 = vunpack.c.h.b16 %v331
  %v784 = vunpack.c.l.b16 %v332
  %v785 = vunpack.c.l.b16 %v333
  %v786 = vunpack.c.h.b16 %v333
  %v787 = vunpack.c.l.b16 %v334
  %v788 = vunpack.c.l.b16 %v335
  %v789 = vunpack.c.h.b16 %v335
  %v790 = vunpack.c.l.b16 %v336
  %v791 = vunpack.c.l.b16 %v337
  %v792 = vunpack.c.h.b16 %v337
  %v793 = vunpack.c.l.b16 %v338
  %v794 = vunpack.c.l.b16 %v339
  %v795 = vunpack.c.h.b16 %v339
  %v796 = vunpack.c.l.b16 %v340
  %v797 = vunpack.c.l.b16 %v341
  %v798 = vunpack.c.h.b16 %v341
  %v799 = vunpack.c.l.b16 %v342
  %v800 = vunpack.c.l.b16 %v343
  %v801 = vunpack.c.h.b16 %v343
  %v802 = vunpack.c.l.b16 %v344
  %v803 = vunpack.c.l.b16 %v345
  %v804 = vunpack.c.h.b16 %v345
  %v805 = vunpack.c.l.b16 %v346
  %v806 = vunpack.c.l.b16 %v347
  %v807 = vunpack.c.h.b16 %v347
  %v808 = vunpack.c.l.b16 %v348
  %v809 = vunpack.c.l.b16 %v349
  %v810 = vunpack.c.h.b16 %v349
  %v811 = vunpack.c.l.b16 %v350
  %v812 = vunpack.c.l.b16 %v351
  %v813 = vunpack.c.h.b16 %v351
  %v814 = vunpack.c.l.b16 %v352
  %v815 = vunpack.c.l.b16 %v353
  %v816 = vunpack.c.h.b16 %v353
  %v817 = vunpack.c.l.b16 %v354
  %v818 = vunpack.c.l.b16 %v355
  %v819 = vunpack.c.h.b16 %v355
  %v820 = vunpack.c.l.b16 %v356
  %v821 = vunpack.c.l.b16 %v357
  %v822 = vunpack.c.h.b16 %v357
  %v823 = vunpack.c.l.b16 %v358
  %v824 = vunpack.c.l.b16 %v359
  %v825 = vunpack.c.h.b16 %v359
  %v826 = vunpack.c.l.b16 %v360
  %v827 = vunpack.c.l.b16 %v361
  %v828 = vunpack.c.h.b16 %v361
  %v829 = vunpack.c.l.b16 %v362
  %v830 = vunpack.c.l.b16 %v363
  %v831 = vunpack.c.h.b16 %v363
  %v832 = vunpack.c.l.b16 %v364
  %v833 = vunpack.c.l.b16 %v365
  %v834 = vunpack.c.h.b16 %v365
  %v835 = vunpack.c.l.b16 %v366
  %v836 = vunpack.c.l.b16 %v367
  %v837 = vunpack.c.h.b16 %v367
  %v838 = vunpack.c.l.b16 %v368
  %v839 = vunpack.c.l.b16 %v369
  %v840 = vunpack.c.h.b16 %v369
  %v841 = vunpack.c.l.b16 %v370
  %v842 = vunpack.c.l.b16 %v371
  %v843 = vunpack.c.h.b16 %v371
  %v844 = vunpack.c.l.b16 %v372
  %v845 = vunpack.c.l.b16 %v373
  %v846 = vunpack.c.h.b16 %v373
  %v847 = vunpack.c.l.b16 %v374
  %v848 = vunpack.c.l.b16 %v375
  %v849 = vunpack.c.h.b16 %v375
  %v850 = vunpack.c.l.b16 %v376
  %v851 = vunpack.c.l.b16 %v377
  %v852 = vunpack.c.h.b16 %v377
  %v853 = vunpack.c.l.b16 %v378
  %v854 = vunpack.c.l.b16 %v379
  %v855 = vunpack.c.h.b16 %v379
  %v856 = vunpack.c.l.b16 %v380
  %v857 = vunpack.c.l.b16 %v381
  %v858 = vunpack.c.h.b16 %v381
  %v859 = vunpack.c.l.b16 %v382
  %v860 = vunpack.c.l.b16 %v383
  %v861 = vunpack.c.h.b16 %v383
  %v862 = vunpack.c.l.b16 %v384
  %v863 = vunpack.c.l.b16 %v385
  %v864 = vunpack.c.h.b16 %v385
  %v865 = vunpack.c.l.b16 %v386
  %v866 = vunpack.c.l.b16 %v387
  %v867 = vunpack.c.h.b16 %v387
  %v868 = vunpack.c.l.b16 %v388
  %v869 = vunpack.c.l.b16 %v389
  %v870 = vunpack.c.h.b16 %v389
  %v871 = vunpack.c.l.b16 %v390
  %v872 = vunpack.c.l.b16 %v391
  %v873 = vunpack.c.h.b16 %v391
  %v874 = vunpack.c.l.b16 %v392
  %v875 = vunpack.c.l.b16 %v393
  %v876 = vunpack.c.h.b16 %v393
  %v877 = vunpack.c.l.b16 %v394
  %v878 = vunpack.c.l.b16 %v395
  %v879 = vunpack.c.h.b16 %v395
  %v880 = vunpack.c.l.b16 %v396
  %v881 = vunpack.c.l.b16 %v397
  %v882 = vunpack.c.h.b16 %v397
  %v883 = vunpack.c.l.b16 %v398
  %v884 = vunpack.c.l.b16 %v399
  %v885 = vunpack.c.h.b16 %v399
  %v886 = vunpack.c.l.b16 %v400
  %v887 = vunpack.c.l.b16 %v401
  %v888 = vunpack.c.h.b16 %v401
  %v889 = vunpack.c.l.b16 %v402
  %v890 = vunpack.c.l.b16 %v403
  %v891 = vunpack.c.h.b16 %v403
  %v892 = vunpack.c.l.b16 %v404
  %v893 = vunpack.c.l.b16 %v405
  %v894 = vunpack.c.h.b16 %v405
  %v895 = vunpack.c.l.b16 %v406
  %v896 = vunpack.c.l.b16 %v407
  %v897 = vunpack.c.h.b16 %v407
  %v898 = vunpack.c.l.b16 %v408
  %v899 = vpack.c.b16 %v608, %v605
  %v900 = vpack.c.b16 %v609, %v606
  %v901 = vpack.c.b16 %v610, %v607
  %v902 = vpack.c.b16 %v614, %v611
  %v903 = vpack.c.b16 %v615, %v612
  %v904 = vpack.c.b16 %v616, %v613
  %v905 = vpack.c.b16 %v620, %v617
  %v906 = vpack.c.b16 %v621, %v618
  %v907 = vpack.c.b16 %v622, %v619
  %v908 = vpack.c.b16 %v626, %v623
  %v909 = vpack.c.b16 %v627, %v624
  %v910 = vpack.c.b16 %v628, %v625
  %v911 = vpack.c.b16 %v632, %v629
  %v912 = vpack.c.b16 %v633, %v630
  %v913 = vpack.c.b16 %v634, %v631
  %v914 = vpack.c.b16 %v638, %v635
  %v915 = vpack.c.b16 %v639, %v636
  %v916 = vpack.c.b16 %v640, %v637
  %v917 = vpack.c.b16 %v644, %v641
  %v918 = vpack.c.b16 %v645, %v642
  %v919 = vpack.c.b16 %v646, %v643
  %v920 = vpack.c.b16 %v650, %v647
  %v921 = vpack.c.b16 %v651, %v648
  %v922 = vpack.c.b16 %v652, %v649
  %v923 = vpack.c.b16 %v656, %v653
  %v924 = vpack.c.b16 %v657, %v654
  %v925 = vpack.c.b16 %v658, %v655
  %v926 = vpack.c.b16 %v662, %v659
  %v927 = vpack.c.b16 %v663, %v660
  %v928 = vpack.c.b16 %v664, %v661
  %v929 = vpack.c.b16 %v668, %v665
  %v930 = vpack.c.b16 %v669, %v666
  %v931 = vpack.c.b16 %v670, %v667
  %v932 = vpack.c.b16 %v674, %v671
  %v933 = vpack.c.b16 %v675, %v672
  %v934 = vpack.c.b16 %v676, %v673
  %v935 = vpack.c.b16 %v680, %v677
  %v936 = vpack.c.b16 %v681, %v678
  %v937 = vpack.c.b16 %v682, %v679
  %v938 = vpack.c.b16 %v686, %v683
  %v939 = vpack.c.b16 %v687, %v684
  %v940 = vpack.c.b16 %v688, %v685
  %v941 = vpack.c.b16 %v692, %v689
  %v942 = vpack.c.b16 %v693, %v690
  %v943 = vpack.c.b16 %v694, %v691
  %v944 = vpack.c.b16 %v698, %v695
  %v945 = vpack.c.b16 %v699, %v696
  %v946 = vpack.c.b16 %v700, %v697
  %v947 = vpack.c.b16 %v704, %v701
  %v948 = vpack.c.b16 %v705, %v702
  %v949 = vpack.c.b16 %v706, %v703
  %v950 = vpack.c.b16 %v710, %v707
  %v951 = vpack.c.b16 %v711, %v708
  %v952 = vpack.c.b16 %v712, %v709
  %v953 = vpack.c.b16 %v716, %v713
  %v954 = vpack.c.b16 %v717, %v714
  %v955 = vpack.c.b16 %v718, %v715
  %v956 = vpack.c.b16 %v722, %v719
  %v957 = vpack.c.b16 %v723, %v720
  %v958 = vpack.c.b16 %v724, %v721
  %v959 = vpack.c.b16 %v728, %v725
  %v960 = vpack.c.b16 %v729, %v726
  %v961 = vpack.c.b16 %v730, %v727
  %v962 = vpack.c.b16 %v734, %v731
  %v963 = vpack.c.b16 %v735, %v732
  %v964 = vpack.c.b16 %v736, %v733
  %v965 = vpack.c.b16 %v740, %v737
  %v966 = vpack.c.b16 %v741, %v738
  %v967 = vpack.c.b16 %v742, %v739
  %v968 = vpack.c.b16 %v746, %v743
  %v969 = vpack.c.b16 %v747, %v744
  %v970 = vpack.c.b16 %v748, %v745
  %v971 = vpack.c.b16 %v752, %v749
  %v972 = vpack.c.b16 %v753, %v750
  %v973 = vpack.c.b16 %v754, %v751
  %v974 = vpack.c.b16 %v758, %v755
  %v975 = vpack.c.b16 %v759, %v756
  %v976 = vpack.c.b16 %v760, %v757
  %v977 = vpack.c.b16 %v764, %v761
  %v978 = vpack.c.b16 %v765, %v762
  %v979 = vpack.c.b16 %v766, %v763
  %v980 = vpack.c.b16 %v770, %v767
  %v981 = vpack.c.b16 %v771, %v768
  %v982 = vpack.c.b16 %v772, %v769
  %v983 = vpack.c.b16 %v776, %v773
  %v984 = vpack.c.b16 %v777, %v774
  %v985 = vpack.c.b16 %v778, %v775
  %v986 = vpack.c.b16 %v782, %v779
  %v987 = vpack.c.b16 %v783, %v780
  %v988 = vpack.c.b16 %v784, %v781
  %v989 = vpack.c.b16 %v788, %v785
  %v990 = vpack.c.b16 %v789, %v786
  %v991 = vpack.c.b16 %v790, %v787
  %v992 = vpack.c.b16 %v794, %v791
  %v993 = vpack.c.b16 %v795, %v792
  %v994 = vpack.c.b16 %v796, %v793
  %v995 = vpack.c.b16 %v800, %v797
  %v996 = vpack.c.b16 %v801, %v798
  %v997 = vpack.c.b16 %v802, %v799
  %v998 = vpack.c.b16 %v806, %v803
  %v999 = vpack.c.b16 %v807, %v804
  %v1000 = vpack.c.b16 %v808, %v805
  %v1001 = vpack.c.b16 %v812, %v809
  %v1002 = vpack.c.b16 %v813, %v810
  %v1003 = vpack.c.b16 %v814, %v811
  %v1004 = vpack.c.b16 %v818, %v815
  %v1005 = vpack.c.b16 %v819, %v816
  %v1006 = vpack.c.b16 %v820, %v817
  %v1007 = vpack.c.b16 %v824, %v821
  %v1008 = vpack.c.b16 %v825, %v822
  %v1009 = vpack.c.b16 %v826, %v823
  %v1010 = vpack.c.b16 %v830, %v827
  %v1011 = vpack.c.b16 %v831, %v828
  %v1012 = vpack.c.b16 %v832, %v829
  %v1013 = vpack.c.b16 %v836, %v833
  %v1014 = vpack.c.b16 %v837, %v834
  %v1015 = vpack.c.b16 %v838, %v835
  %v1016 = vpack.c.b16 %v842, %v839
  %v1017 = vpack.c.b16 %v843, %v840
  %v1018 = vpack.c.b16 %v844, %v841
  %v1019 = vpack.c.b16 %v848, %v845
  %v1020 = vpack.c.b16 %v849, %v846
  %v1021 = vpack.c.b16 %v850, %v847
  %v1022 = vpack.c.b16 %v854, %v851
  %v1023 = vpack.c.b16 %v855, %v852
  %v1024 = vpack.c.b16 %v856, %v853
  %v1025 = vpack.c.b16 %v860, %v857
  %v1026 = vpack.c.b16 %v861, %v858
  %v1027 = vpack.c.b16 %v862, %v859
  %v1028 = vpack.c.b16 %v866, %v863
  %v1029 = vpack.c.b16 %v867, %v864
  %v1030 = vpack.c.b16 %v868, %v865
  %v1031 = vpack.c.b16 %v872, %v869
  %v1032 = vpack.c.b16 %v873, %v870
  %v1033 = vpack.c.b16 %v874, %v871
  %v1034 = vpack.c.b16 %v878, %v875
  %v1035 = vpack.c.b16 %v879, %v876
  %v1036 = vpack.c.b16 %v880, %v877
  %v1037 = vpack.c.b16 %v884, %v881
  %v1038 = vpack.c.b16 %v885, %v882
  %v1039 = vpack.c.b16 %v886, %v883
  %v1040 = vpack.c.b16 %v890, %v887
  %v1041 = vpack.c.b16 %v891, %v888
  %v1042 = vpack.c.b16 %v892, %v889
  %v1043 = vpack.c.b16 %v896, %v893
  %v1044 = vpack.c.b16 %v897, %v894
  %v1045 = vpack.c.b16 %v898, %v895
  %vm1193 = vcmask 130048
  %v1195 = vsel %vm1193, %v212, 0
  %1197 = vmatprep.subr.bf16.mxu0 %v900
  %1198 = vmatpush1.bf16.msra.mxu0 %v899
  %1199 = vmatprep.subr.bf16.mxu0 %v903
  %1200 = vmatpush1.bf16.msra.mxu0 %v902
  %1201 = vmatprep.subr.bf16.mxu0 %v906
  %1202 = vmatpush1.bf16.msra.mxu0 %v905
  %1203 = vmatprep.subr.bf16.mxu0 %v909
  %1204 = vmatpush1.bf16.msra.mxu0 %v908
  %1205 = vmatprep.subr.bf16.mxu0 %v912
  %1206 = vmatpush1.bf16.msra.mxu0 %v911
  %1207 = vmatprep.subr.bf16.mxu0 %v915
  %1208 = vmatpush1.bf16.msra.mxu0 %v914
  %1209 = vmatprep.subr.bf16.mxu0 %v918
  %1210 = vmatpush1.bf16.msra.mxu0 %v917
  %1211 = vmatprep.subr.bf16.mxu0 %v921
  %1212 = vmatpush1.bf16.msra.mxu0 %v920
  %1213 = vmatprep.subr.bf16.mxu0 %v924
  %1214 = vmatpush1.bf16.msra.mxu0 %v923
  %1215 = vmatprep.subr.bf16.mxu0 %v927
  %1216 = vmatpush1.bf16.msra.mxu0 %v926
  %1217 = vmatprep.subr.bf16.mxu0 %v930
  %1218 = vmatpush1.bf16.msra.mxu0 %v929
  %1219 = vmatprep.subr.bf16.mxu0 %v933
  %1220 = vmatpush1.bf16.msra.mxu0 %v932
  %1221 = vmatprep.subr.bf16.mxu0 %v936
  %1222 = vmatpush1.bf16.msra.mxu0 %v935
  %1223 = vmatprep.subr.bf16.mxu0 %v939
  %1224 = vmatpush1.bf16.msra.mxu0 %v938
  %1225 = vmatprep.subr.bf16.mxu0 %v942
  %1226 = vmatpush1.bf16.msra.mxu0 %v941
  %1227 = vmatprep.subr.bf16.mxu0 %v945
  %1228 = vmatpush1.bf16.msra.mxu0 %v944
  %1229 = vmatprep.mubr.bf16.mxu0 %v207
  %1230 = vmatmul.mubr.bf16.gmra.mrb[0].mxu0 %v206
  %v1231 = vpop.f32.mrb[0].mxu0
  %v1232 = vadd.f32 0.0, %v1231
  %v1233 = vpop.f32.mrb[0].mxu0
  %v1234 = vadd.f32 0.0, %v1233
  %v1235 = vpop.f32.mrb[0].mxu0
  %v1236 = vadd.f32 0.0, %v1235
  %v1237 = vpop.f32.mrb[0].mxu0
  %v1238 = vadd.f32 0.0, %v1237
  %1239 = vdwg.mxu0
  %1240 = vmatprep.subr.bf16.mxu0 %v948
  %1241 = vmatpush1.bf16.msra.mxu0 %v947
  %1242 = vmatprep.subr.bf16.mxu0 %v951
  %1243 = vmatpush1.bf16.msra.mxu0 %v950
  %1244 = vmatprep.subr.bf16.mxu0 %v954
  %1245 = vmatpush1.bf16.msra.mxu0 %v953
  %1246 = vmatprep.subr.bf16.mxu0 %v957
  %1247 = vmatpush1.bf16.msra.mxu0 %v956
  %1248 = vmatprep.subr.bf16.mxu0 %v960
  %1249 = vmatpush1.bf16.msra.mxu0 %v959
  %1250 = vmatprep.subr.bf16.mxu0 %v963
  %1251 = vmatpush1.bf16.msra.mxu0 %v962
  %1252 = vmatprep.subr.bf16.mxu0 %v966
  %1253 = vmatpush1.bf16.msra.mxu0 %v965
  %1254 = vmatprep.subr.bf16.mxu0 %v969
  %1255 = vmatpush1.bf16.msra.mxu0 %v968
  %1256 = vmatprep.subr.bf16.mxu0 %v972
  %1257 = vmatpush1.bf16.msra.mxu0 %v971
  %1258 = vmatprep.subr.bf16.mxu0 %v975
  %1259 = vmatpush1.bf16.msra.mxu0 %v974
  %1260 = vmatprep.subr.bf16.mxu0 %v978
  %1261 = vmatpush1.bf16.msra.mxu0 %v977
  %1262 = vmatprep.subr.bf16.mxu0 %v981
  %1263 = vmatpush1.bf16.msra.mxu0 %v980
  %1264 = vmatprep.subr.bf16.mxu0 %v984
  %1265 = vmatpush1.bf16.msra.mxu0 %v983
  %1266 = vmatprep.subr.bf16.mxu0 %v987
  %1267 = vmatpush1.bf16.msra.mxu0 %v986
  %1268 = vmatprep.subr.bf16.mxu0 %v990
  %1269 = vmatpush1.bf16.msra.mxu0 %v989
  %1270 = vmatprep.subr.bf16.mxu0 %v993
  %1271 = vmatpush1.bf16.msra.mxu0 %v992
  %1272 = vmatprep.mubr.bf16.mxu0 %v209
  %1273 = vmatmul.mubr.bf16.gmra.mrb[0].mxu0 %v208
  %v1274 = vpop.f32.mrb[0].mxu0
  %v1275 = vadd.f32 %v1232, %v1274
  %v1276 = vpop.f32.mrb[0].mxu0
  %v1277 = vadd.f32 %v1234, %v1276
  %v1278 = vpop.f32.mrb[0].mxu0
  %v1279 = vadd.f32 %v1236, %v1278
  %v1280 = vpop.f32.mrb[0].mxu0
  %v1281 = vadd.f32 %v1238, %v1280
  %1282 = vdwg.mxu0
  %1283 = vmatprep.subr.bf16.mxu0 %v996
  %1284 = vmatpush1.bf16.msra.mxu0 %v995
  %1285 = vmatprep.subr.bf16.mxu0 %v999
  %1286 = vmatpush1.bf16.msra.mxu0 %v998
  %1287 = vmatprep.subr.bf16.mxu0 %v1002
  %1288 = vmatpush1.bf16.msra.mxu0 %v1001
  %1289 = vmatprep.subr.bf16.mxu0 %v1005
  %1290 = vmatpush1.bf16.msra.mxu0 %v1004
  %1291 = vmatprep.subr.bf16.mxu0 %v1008
  %1292 = vmatpush1.bf16.msra.mxu0 %v1007
  %1293 = vmatprep.subr.bf16.mxu0 %v1011
  %1294 = vmatpush1.bf16.msra.mxu0 %v1010
  %1295 = vmatprep.subr.bf16.mxu0 %v1014
  %1296 = vmatpush1.bf16.msra.mxu0 %v1013
  %1297 = vmatprep.subr.bf16.mxu0 %v1017
  %1298 = vmatpush1.bf16.msra.mxu0 %v1016
  %1299 = vmatprep.subr.bf16.mxu0 %v1020
  %1300 = vmatpush1.bf16.msra.mxu0 %v1019
  %1301 = vmatprep.subr.bf16.mxu0 %v1023
  %1302 = vmatpush1.bf16.msra.mxu0 %v1022
  %1303 = vmatprep.subr.bf16.mxu0 %v1026
  %1304 = vmatpush1.bf16.msra.mxu0 %v1025
  %1305 = vmatprep.subr.bf16.mxu0 %v1029
  %1306 = vmatpush1.bf16.msra.mxu0 %v1028
  %1307 = vmatprep.subr.bf16.mxu0 %v1032
  %1308 = vmatpush1.bf16.msra.mxu0 %v1031
  %1309 = vmatprep.subr.bf16.mxu0 %v1035
  %1310 = vmatpush1.bf16.msra.mxu0 %v1034
  %1311 = vmatprep.subr.bf16.mxu0 %v1038
  %1312 = vmatpush1.bf16.msra.mxu0 %v1037
  %1313 = vmatprep.subr.bf16.mxu0 %v1041
  %1314 = vmatpush1.bf16.msra.mxu0 %v1040
  %1315 = vmatprep.mubr.bf16.mxu0 %v211
  %1316 = vmatmul.mubr.bf16.gmra.mrb[0].mxu0 %v210
  %v1317 = vpop.f32.mrb[0].mxu0
  %v1318 = vadd.f32 %v1275, %v1317
  %v1319 = vpop.f32.mrb[0].mxu0
  %v1320 = vadd.f32 %v1277, %v1319
  %v1321 = vpop.f32.mrb[0].mxu0
  %v1322 = vadd.f32 %v1279, %v1321
  %v1323 = vpop.f32.mrb[0].mxu0
  %v1324 = vadd.f32 %v1281, %v1323
  %1325 = vdwg.mxu0
  %1326 = vmatprep.subr.bf16.mxu0 %v1044
  %1327 = vmatpush1.bf16.msra.mxu0 %v1043
  %1328 = vmatprep.subr.bf16.mxu0 0
  %1329 = vmatpush1.bf16.msra.mxu0 0
  %1330 = vmatprep.subr.bf16.mxu0 0
  %1331 = vmatpush1.bf16.msra.mxu0 0
  %1332 = vmatprep.subr.bf16.mxu0 0
  %1333 = vmatpush1.bf16.msra.mxu0 0
  %1334 = vmatprep.subr.bf16.mxu0 0
  %1335 = vmatpush1.bf16.msra.mxu0 0
  %1336 = vmatprep.subr.bf16.mxu0 0
  %1337 = vmatpush1.bf16.msra.mxu0 0
  %1338 = vmatprep.subr.bf16.mxu0 0
  %1339 = vmatpush1.bf16.msra.mxu0 0
  %1340 = vmatprep.subr.bf16.mxu0 0
  %1341 = vmatpush1.bf16.msra.mxu0 0
  %1342 = vmatprep.subr.bf16.mxu0 0
  %1343 = vmatpush1.bf16.msra.mxu0 0
  %1344 = vmatprep.subr.bf16.mxu0 0
  %1345 = vmatpush1.bf16.msra.mxu0 0
  %1346 = vmatprep.subr.bf16.mxu0 0
  %1347 = vmatpush1.bf16.msra.mxu0 0
  %1348 = vmatprep.subr.bf16.mxu0 0
  %1349 = vmatpush1.bf16.msra.mxu0 0
  %1350 = vmatprep.subr.bf16.mxu0 0
  %1351 = vmatpush1.bf16.msra.mxu0 0
  %1352 = vmatprep.subr.bf16.mxu0 0
  %1353 = vmatpush1.bf16.msra.mxu0 0
  %1354 = vmatprep.subr.bf16.mxu0 0
  %1355 = vmatpush1.bf16.msra.mxu0 0
  %1356 = vmatprep.subr.bf16.mxu0 0
  %1357 = vmatpush1.bf16.msra.mxu0 0
  %1358 = vmatprep.mubr.bf16.mxu0 0
  %1359 = vmatmul.mubr.bf16.gmra.mrb[0].mxu0 %v1195
  %v1360 = vpop.f32.mrb[0].mxu0
  %v1361 = vadd.f32 %v1318, %v1360
  %v1362 = vpop.f32.mrb[0].mxu0
  %v1363 = vadd.f32 %v1320, %v1362
  %v1364 = vpop.f32.mrb[0].mxu0
  %v1365 = vadd.f32 %v1322, %v1364
  %v1366 = vpop.f32.mrb[0].mxu0
  %v1367 = vadd.f32 %v1324, %v1366
  %1368 = vdwg.mxu0
  %1369 = vmatprep.subr.bf16.mxu0 0
  %1370 = vmatpush1.bf16.msra.mxu0 %v901
  %1371 = vmatprep.subr.bf16.mxu0 0
  %1372 = vmatpush1.bf16.msra.mxu0 %v904
  %1373 = vmatprep.subr.bf16.mxu0 0
  %1374 = vmatpush1.bf16.msra.mxu0 %v907
  %1375 = vmatprep.subr.bf16.mxu0 0
  %1376 = vmatpush1.bf16.msra.mxu0 %v910
  %1377 = vmatprep.subr.bf16.mxu0 0
  %1378 = vmatpush1.bf16.msra.mxu0 %v913
  %1379 = vmatprep.subr.bf16.mxu0 0
  %1380 = vmatpush1.bf16.msra.mxu0 %v916
  %1381 = vmatprep.subr.bf16.mxu0 0
  %1382 = vmatpush1.bf16.msra.mxu0 %v919
  %1383 = vmatprep.subr.bf16.mxu0 0
  %1384 = vmatpush1.bf16.msra.mxu0 %v922
  %1385 = vmatprep.subr.bf16.mxu0 0
  %1386 = vmatpush1.bf16.msra.mxu0 %v925
  %1387 = vmatprep.subr.bf16.mxu0 0
  %1388 = vmatpush1.bf16.msra.mxu0 %v928
  %1389 = vmatprep.subr.bf16.mxu0 0
  %1390 = vmatpush1.bf16.msra.mxu0 %v931
  %1391 = vmatprep.subr.bf16.mxu0 0
  %1392 = vmatpush1.bf16.msra.mxu0 %v934
  %1393 = vmatprep.subr.bf16.mxu0 0
  %1394 = vmatpush1.bf16.msra.mxu0 %v937
  %1395 = vmatprep.subr.bf16.mxu0 0
  %1396 = vmatpush1.bf16.msra.mxu0 %v940
  %1397 = vmatprep.subr.bf16.mxu0 0
  %1398 = vmatpush1.bf16.msra.mxu0 %v943
  %1399 = vmatprep.subr.bf16.mxu0 0
  %1400 = vmatpush1.bf16.msra.mxu0 %v946
  %1401 = vmatprep.mubr.bf16.mxu0 %v207
  %1402 = vmatmul.mubr.bf16.gmra.mrb[0].mxu0 %v206
  %v1403 = vpop.f32.mrb[0].mxu0
  %v1404 = vadd.f32 0.0, %v1403
  %v1405 = vpop.f32.mrb[0].mxu0
  %v1406 = vpop.f32.mrb[0].mxu0
  %v1407 = vadd.f32 0.0, %v1406
  %v1408 = vpop.f32.mrb[0].mxu0
  %1409 = vdwg.mxu0
  %1410 = vmatprep.subr.bf16.mxu0 0
  %1411 = vmatpush1.bf16.msra.mxu0 %v949
  %1412 = vmatprep.subr.bf16.mxu0 0
  %1413 = vmatpush1.bf16.msra.mxu0 %v952
  %1414 = vmatprep.subr.bf16.mxu0 0
  %1415 = vmatpush1.bf16.msra.mxu0 %v955
  %1416 = vmatprep.subr.bf16.mxu0 0
  %1417 = vmatpush1.bf16.msra.mxu0 %v958
  %1418 = vmatprep.subr.bf16.mxu0 0
  %1419 = vmatpush1.bf16.msra.mxu0 %v961
  %1420 = vmatprep.subr.bf16.mxu0 0
  %1421 = vmatpush1.bf16.msra.mxu0 %v964
  %1422 = vmatprep.subr.bf16.mxu0 0
  %1423 = vmatpush1.bf16.msra.mxu0 %v967
  %1424 = vmatprep.subr.bf16.mxu0 0
  %1425 = vmatpush1.bf16.msra.mxu0 %v970
  %1426 = vmatprep.subr.bf16.mxu0 0
  %1427 = vmatpush1.bf16.msra.mxu0 %v973
  %1428 = vmatprep.subr.bf16.mxu0 0
  %1429 = vmatpush1.bf16.msra.mxu0 %v976
  %1430 = vmatprep.subr.bf16.mxu0 0
  %1431 = vmatpush1.bf16.msra.mxu0 %v979
  %1432 = vmatprep.subr.bf16.mxu0 0
  %1433 = vmatpush1.bf16.msra.mxu0 %v982
  %1434 = vmatprep.subr.bf16.mxu0 0
  %1435 = vmatpush1.bf16.msra.mxu0 %v985
  %1436 = vmatprep.subr.bf16.mxu0 0
  %1437 = vmatpush1.bf16.msra.mxu0 %v988
  %1438 = vmatprep.subr.bf16.mxu0 0
  %1439 = vmatpush1.bf16.msra.mxu0 %v991
  %1440 = vmatprep.subr.bf16.mxu0 0
  %1441 = vmatpush1.bf16.msra.mxu0 %v994
  %1442 = vmatprep.mubr.bf16.mxu0 %v209
  %1443 = vmatmul.mubr.bf16.gmra.mrb[0].mxu0 %v208
  %v1444 = vpop.f32.mrb[0].mxu0
  %v1445 = vadd.f32 %v1404, %v1444
  %v1446 = vpop.f32.mrb[0].mxu0
  %v1447 = vpop.f32.mrb[0].mxu0
  %v1448 = vadd.f32 %v1407, %v1447
  %v1449 = vpop.f32.mrb[0].mxu0
  %1450 = vdwg.mxu0
  %1451 = vmatprep.subr.bf16.mxu0 0
  %1452 = vmatpush1.bf16.msra.mxu0 %v997
  %1453 = vmatprep.subr.bf16.mxu0 0
  %1454 = vmatpush1.bf16.msra.mxu0 %v1000
  %1455 = vmatprep.subr.bf16.mxu0 0
  %1456 = vmatpush1.bf16.msra.mxu0 %v1003
  %1457 = vmatprep.subr.bf16.mxu0 0
  %1458 = vmatpush1.bf16.msra.mxu0 %v1006
  %1459 = vmatprep.subr.bf16.mxu0 0
  %1460 = vmatpush1.bf16.msra.mxu0 %v1009
  %1461 = vmatprep.subr.bf16.mxu0 0
  %1462 = vmatpush1.bf16.msra.mxu0 %v1012
  %1463 = vmatprep.subr.bf16.mxu0 0
  %1464 = vmatpush1.bf16.msra.mxu0 %v1015
  %1465 = vmatprep.subr.bf16.mxu0 0
  %1466 = vmatpush1.bf16.msra.mxu0 %v1018
  %1467 = vmatprep.subr.bf16.mxu0 0
  %1468 = vmatpush1.bf16.msra.mxu0 %v1021
  %1469 = vmatprep.subr.bf16.mxu0 0
  %1470 = vmatpush1.bf16.msra.mxu0 %v1024
  %1471 = vmatprep.subr.bf16.mxu0 0
  %1472 = vmatpush1.bf16.msra.mxu0 %v1027
  %1473 = vmatprep.subr.bf16.mxu0 0
  %1474 = vmatpush1.bf16.msra.mxu0 %v1030
  %1475 = vmatprep.subr.bf16.mxu0 0
  %1476 = vmatpush1.bf16.msra.mxu0 %v1033
  %1477 = vmatprep.subr.bf16.mxu0 0
  %1478 = vmatpush1.bf16.msra.mxu0 %v1036
  %1479 = vmatprep.subr.bf16.mxu0 0
  %1480 = vmatpush1.bf16.msra.mxu0 %v1039
  %1481 = vmatprep.subr.bf16.mxu0 0
  %1482 = vmatpush1.bf16.msra.mxu0 %v1042
  %1483 = vmatprep.mubr.bf16.mxu0 %v211
  %1484 = vmatmul.mubr.bf16.gmra.mrb[0].mxu0 %v210
  %v1485 = vpop.f32.mrb[0].mxu0
  %v1486 = vadd.f32 %v1445, %v1485
  %v1487 = vpop.f32.mrb[0].mxu0
  %v1488 = vpop.f32.mrb[0].mxu0
  %v1489 = vadd.f32 %v1448, %v1488
  %v1490 = vpop.f32.mrb[0].mxu0
  %1491 = vdwg.mxu0
  %1492 = vmatprep.subr.bf16.mxu0 0
  %1493 = vmatpush1.bf16.msra.mxu0 %v1045
  %1494 = vmatprep.subr.bf16.mxu0 0
  %1495 = vmatpush1.bf16.msra.mxu0 0
  %1496 = vmatprep.subr.bf16.mxu0 0
  %1497 = vmatpush1.bf16.msra.mxu0 0
  %1498 = vmatprep.subr.bf16.mxu0 0
  %1499 = vmatpush1.bf16.msra.mxu0 0
  %1500 = vmatprep.subr.bf16.mxu0 0
  %1501 = vmatpush1.bf16.msra.mxu0 0
  %1502 = vmatprep.subr.bf16.mxu0 0
  %1503 = vmatpush1.bf16.msra.mxu0 0
  %1504 = vmatprep.subr.bf16.mxu0 0
  %1505 = vmatpush1.bf16.msra.mxu0 0
  %1506 = vmatprep.subr.bf16.mxu0 0
  %1507 = vmatpush1.bf16.msra.mxu0 0
  %1508 = vmatprep.subr.bf16.mxu0 0
  %1509 = vmatpush1.bf16.msra.mxu0 0
  %1510 = vmatprep.subr.bf16.mxu0 0
  %1511 = vmatpush1.bf16.msra.mxu0 0
  %1512 = vmatprep.subr.bf16.mxu0 0
  %1513 = vmatpush1.bf16.msra.mxu0 0
  %1514 = vmatprep.subr.bf16.mxu0 0
  %1515 = vmatpush1.bf16.msra.mxu0 0
  %1516 = vmatprep.subr.bf16.mxu0 0
  %1517 = vmatpush1.bf16.msra.mxu0 0
  %1518 = vmatprep.subr.bf16.mxu0 0
  %1519 = vmatpush1.bf16.msra.mxu0 0
  %1520 = vmatprep.subr.bf16.mxu0 0
  %1521 = vmatpush1.bf16.msra.mxu0 0
  %1522 = vmatprep.subr.bf16.mxu0 0
  %1523 = vmatpush1.bf16.msra.mxu0 0
  %1524 = vmatprep.mubr.bf16.mxu0 0
  %1525 = vmatmul.mubr.bf16.gmra.mrb[0].mxu0 %v1195
  %v1526 = vpop.f32.mrb[0].mxu0
  %v1527 = vadd.f32 %v1486, %v1526
  %v1528 = vpop.f32.mrb[0].mxu0
  %v1529 = vpop.f32.mrb[0].mxu0
  %v1530 = vadd.f32 %v1489, %v1529
  %v1531 = vpop.f32.mrb[0].mxu0
  %1532 = vdwg.mxu0
  %v1536 = vrot.slane %v1361, 4
  %v1537 = vrot.slane %v1363, 4
  %v1538 = vrot.slane %v1527, 4
  %v1542 = vmax.f32 %v1361, %v1536
  %v1543 = vmax.f32 %v1363, %v1537
  %v1544 = vmax.f32 %v1527, %v1538
  %v1548 = vrot.slane %v1365, 4
  %v1549 = vrot.slane %v1367, 4
  %v1550 = vrot.slane %v1530, 4
  %v1554 = vmax.f32 %v1365, %v1548
  %v1555 = vmax.f32 %v1367, %v1549
  %v1556 = vmax.f32 %v1530, %v1550
  %v1557 = vmax.f32 %v1542, %v1554
  %v1558 = vmax.f32 %v1543, %v1555
  %v1559 = vmax.f32 %v1544, %v1556
  %v1560 = vld [vmem:[%s2] sm:$0x7]
  %v1562 = vlaneseq
  %v1563 = vshrl.u32 %v1562, 7
  %v1564 = vsub.s32 0, %v1563
  %v1565 = vrot.slane %v1560, %v1564
  %v1566 = vlaneseq
  %v1567 = vshrl.u32 %v1566, 7
  %v1568 = vsub.s32 1, %v1567
  %v1569 = vrot.slane %v1560, %v1568
  %v1570 = vlaneseq
  %v1571 = vshrl.u32 %v1570, 7
  %v1572 = vsub.s32 2, %v1571
  %v1573 = vrot.slane %v1560, %v1572
  %v1577 = vadd.f32 %v1557, %v1565
  %v1578 = vadd.f32 %v1558, %v1569
  %v1579 = vadd.f32 %v1559, %v1573
  %v1580 = vmax.f32 %v1577, 0.0
  %v1581 = vmax.f32 %v1578, 0.0
  %v1582 = vmax.f32 %v1579, 0.0
  %1586 = vrot.lane.b32.xlu0 %v1580, 127
  %v1587 = vpop.permute.xlu0 %1586
  %1588 = vrot.lane.b32.xlu0 %v1581, 127
  %v1589 = vpop.permute.xlu0 %1588
  %1590 = vrot.lane.b32.xlu0 %v1582, 127
  %v1591 = vpop.permute.xlu0 %1590
  %v1592 = vsel %vm94, %v1587, %v1589
  %v1593 = vsel %vm94, %v1589, %v1591
  %vm1595 = vcmask 252928
  %v1596 = vsel %vm1595, %v1591, 0.0
  %1597 = vrot.lane.b32.xlu0 %v1580, 116
  %v1598 = vpop.permute.xlu0 %1597
  %1599 = vrot.lane.b32.xlu0 %v1581, 116
  %v1600 = vpop.permute.xlu0 %1599
  %1601 = vrot.lane.b32.xlu0 %v1582, 116
  %v1602 = vpop.permute.xlu0 %1601
  %v1603 = vsel %vm131, %v1598, %v1600
  %v1604 = vsel %vm131, %v1600, %v1602
  %vm1608 = vcmask 162816
  %v1609 = vsel %vm1608, %v1602, 0.0
  %1610 = vrot.lane.b32.xlu0 %v1580, 115
  %v1611 = vpop.permute.xlu0 %1610
  %1612 = vrot.lane.b32.xlu0 %v1581, 115
  %v1613 = vpop.permute.xlu0 %1612
  %1614 = vrot.lane.b32.xlu0 %v1582, 115
  %v1615 = vpop.permute.xlu0 %1614
  %v1616 = vsel %vm155, %v1611, %v1613
  %v1617 = vsel %vm155, %v1613, %v1615
  %vm1619 = vcmask 154624
  %v1620 = vsel %vm1619, %v1615, 0.0
  %v1622 = vrot.slane %v1592, 4
  %v1623 = vrot.slane %v1593, 4
  %v1624 = vrot.slane %v1596, 4
  %v1629 = vrot.slane %v1616, 4
  %v1630 = vrot.slane %v1617, 4
  %v1631 = vrot.slane %v1620, 4
  %v1635 = vsel %vm191, %v1580, %v1622
  %v1636 = vsel %vm191, %v1581, %v1623
  %v1637 = vsel %vm191, %v1582, %v1624
  %v1638 = vsel %vm191, %v1603, %v1629
  %v1639 = vsel %vm191, %v1604, %v1630
  %v1640 = vsel %vm191, %v1609, %v1631
  %v1641 = vpack.c.bf16 %v1638, %v1635
  %v1642 = vpack.c.bf16 %v1639, %v1636
  %v1643 = vpack.c.bf16 %v1640, %v1637
  %v1644 = vld [vmem:[%s3] sm:$0xf]
  %v1645 = vld [vmem:[%s3 + $0x4] sm:$0xf]
  %v1646 = vld [vmem:[%s3 + $0x8] sm:$0xf]
  %v1647 = vld [vmem:[%s3 + $0xc] sm:$0xf]
  %v1648 = vld [vmem:[%s3 + $0x10] sm:$0xf]
  %v1649 = vld [vmem:[%s3 + $0x14] sm:$0xf]
  %v1650 = vld [vmem:[%s3 + $0x18] sm:$0xf]
  %v1651 = vld [vmem:[%s3 + $0x1c] sm:$0xf]
  %v1652 = vld [vmem:[%s3 + $0x20] sm:$0xf]
  %v1653 = vld [vmem:[%s3 + $0x24] sm:$0xf]
  %v1654 = vld [vmem:[%s3 + $0x28] sm:$0xf]
  %v1655 = vld [vmem:[%s3 + $0x2c] sm:$0xf]
  %v1656 = vld [vmem:[%s3 + $0x30] sm:$0xf]
  %v1657 = vld [vmem:[%s3 + $0x34] sm:$0xf]
  %v1658 = vld [vmem:[%s3 + $0x38] sm:$0xf]
  %v1659 = vld [vmem:[%s3 + $0x3c] sm:$0xf]
  %v1660 = vld [vmem:[%s3 + $0x40] sm:$0xf]
  %v1661 = vld [vmem:[%s3 + $0x44] sm:$0xf]
  %v1662 = vld [vmem:[%s3 + $0x48] sm:$0xf]
  %v1663 = vld [vmem:[%s3 + $0x4c] sm:$0xf]
  %v1664 = vld [vmem:[%s3 + $0x50] sm:$0xf]
  %v1665 = vld [vmem:[%s3 + $0x54] sm:$0xf]
  %v1666 = vld [vmem:[%s3 + $0x58] sm:$0xf]
  %v1667 = vld [vmem:[%s3 + $0x5c] sm:$0xf]
  %v1668 = vld [vmem:[%s3 + $0x60] sm:$0xf]
  %v1669 = vld [vmem:[%s3 + $0x64] sm:$0xf]
  %v1670 = vld [vmem:[%s3 + $0x68] sm:$0xf]
  %v1671 = vld [vmem:[%s3 + $0x6c] sm:$0xf]
  %v1672 = vld [vmem:[%s3 + $0x70] sm:$0xf]
  %v1673 = vld [vmem:[%s3 + $0x74] sm:$0xf]
  %v1674 = vld [vmem:[%s3 + $0x78] sm:$0xf]
  %v1675 = vld [vmem:[%s3 + $0x7c] sm:$0xf]
  %v1676 = vld [vmem:[%s3 + $0x80] sm:$0xf]
  %v1677 = vld [vmem:[%s3 + $0x84] sm:$0xf]
  %v1678 = vld [vmem:[%s3 + $0x88] sm:$0xf]
  %v1679 = vld [vmem:[%s3 + $0x8c] sm:$0xf]
  %v1716 = vunpack.c.l.b16 %v1644
  %v1717 = vunpack.c.l.b16 %v1645
  %v1718 = vunpack.c.l.b16 %v1646
  %v1719 = vunpack.c.l.b16 %v1647
  %v1720 = vunpack.c.l.b16 %v1648
  %v1721 = vunpack.c.l.b16 %v1649
  %v1722 = vunpack.c.l.b16 %v1650
  %v1723 = vunpack.c.l.b16 %v1651
  %v1724 = vunpack.c.l.b16 %v1652
  %v1725 = vunpack.c.l.b16 %v1653
  %v1726 = vunpack.c.l.b16 %v1654
  %v1727 = vunpack.c.l.b16 %v1655
  %v1728 = vunpack.c.l.b16 %v1656
  %v1729 = vunpack.c.l.b16 %v1657
  %v1730 = vunpack.c.l.b16 %v1658
  %v1731 = vunpack.c.l.b16 %v1659
  %v1732 = vunpack.c.l.b16 %v1660
  %v1733 = vunpack.c.l.b16 %v1661
  %v1734 = vunpack.c.l.b16 %v1662
  %v1735 = vunpack.c.l.b16 %v1663
  %v1736 = vunpack.c.l.b16 %v1664
  %v1737 = vunpack.c.l.b16 %v1665
  %v1738 = vunpack.c.l.b16 %v1666
  %v1739 = vunpack.c.l.b16 %v1667
  %v1740 = vunpack.c.l.b16 %v1668
  %v1741 = vunpack.c.l.b16 %v1669
  %v1742 = vunpack.c.l.b16 %v1670
  %v1743 = vunpack.c.l.b16 %v1671
  %v1744 = vunpack.c.l.b16 %v1672
  %v1745 = vunpack.c.l.b16 %v1673
  %v1746 = vunpack.c.l.b16 %v1674
  %v1747 = vunpack.c.l.b16 %v1675
  %v1748 = vunpack.c.l.b16 %v1676
  %v1749 = vunpack.c.l.b16 %v1677
  %v1750 = vunpack.c.l.b16 %v1678
  %v1751 = vunpack.c.l.b16 %v1679
  %v1752 = vpack.c.b16 %v1717, %v1716
  %v1753 = vpack.c.b16 %v1719, %v1718
  %v1754 = vpack.c.b16 %v1721, %v1720
  %v1755 = vpack.c.b16 %v1723, %v1722
  %v1756 = vpack.c.b16 %v1725, %v1724
  %v1757 = vpack.c.b16 %v1727, %v1726
  %v1758 = vpack.c.b16 %v1729, %v1728
  %v1759 = vpack.c.b16 %v1731, %v1730
  %v1760 = vpack.c.b16 %v1733, %v1732
  %v1761 = vpack.c.b16 %v1735, %v1734
  %v1762 = vpack.c.b16 %v1737, %v1736
  %v1763 = vpack.c.b16 %v1739, %v1738
  %v1764 = vpack.c.b16 %v1741, %v1740
  %v1765 = vpack.c.b16 %v1743, %v1742
  %v1766 = vpack.c.b16 %v1745, %v1744
  %v1767 = vpack.c.b16 %v1747, %v1746
  %v1768 = vpack.c.b16 %v1749, %v1748
  %v1769 = vpack.c.b16 %v1751, %v1750
  %vm1788 = vcmask 261120
  %v1790 = vsel %vm1788, %v1643, 0
  %1792 = vmatprep.subr.bf16.mxu0 0
  %1793 = vmatpush1.bf16.msra.mxu0 %v1752
  %1794 = vmatprep.subr.bf16.mxu0 0
  %1795 = vmatpush1.bf16.msra.mxu0 %v1753
  %1796 = vmatprep.subr.bf16.mxu0 0
  %1797 = vmatpush1.bf16.msra.mxu0 %v1754
  %1798 = vmatprep.subr.bf16.mxu0 0
  %1799 = vmatpush1.bf16.msra.mxu0 %v1755
  %1800 = vmatprep.subr.bf16.mxu0 0
  %1801 = vmatpush1.bf16.msra.mxu0 %v1756
  %1802 = vmatprep.subr.bf16.mxu0 0
  %1803 = vmatpush1.bf16.msra.mxu0 %v1757
  %1804 = vmatprep.subr.bf16.mxu0 0
  %1805 = vmatpush1.bf16.msra.mxu0 %v1758
  %1806 = vmatprep.subr.bf16.mxu0 0
  %1807 = vmatpush1.bf16.msra.mxu0 %v1759
  %1808 = vmatprep.subr.bf16.mxu0 0
  %1809 = vmatpush1.bf16.msra.mxu0 %v1760
  %1810 = vmatprep.subr.bf16.mxu0 0
  %1811 = vmatpush1.bf16.msra.mxu0 %v1761
  %1812 = vmatprep.subr.bf16.mxu0 0
  %1813 = vmatpush1.bf16.msra.mxu0 %v1762
  %1814 = vmatprep.subr.bf16.mxu0 0
  %1815 = vmatpush1.bf16.msra.mxu0 %v1763
  %1816 = vmatprep.subr.bf16.mxu0 0
  %1817 = vmatpush1.bf16.msra.mxu0 %v1764
  %1818 = vmatprep.subr.bf16.mxu0 0
  %1819 = vmatpush1.bf16.msra.mxu0 %v1765
  %1820 = vmatprep.subr.bf16.mxu0 0
  %1821 = vmatpush1.bf16.msra.mxu0 %v1766
  %1822 = vmatprep.subr.bf16.mxu0 0
  %1823 = vmatpush1.bf16.msra.mxu0 %v1767
  %1824 = vmatprep.mubr.bf16.mxu0 %v1642
  %1825 = vmatmul.mubr.bf16.gmra.mrb[0].mxu0 %v1641
  %v1826 = vpop.f32.mrb[0].mxu0
  %v1827 = vadd.f32 0.0, %v1826
  %v1828 = vpop.f32.mrb[0].mxu0
  %v1829 = vpop.f32.mrb[0].mxu0
  %v1830 = vadd.f32 0.0, %v1829
  %v1831 = vpop.f32.mrb[0].mxu0
  %1832 = vdwg.mxu0
  %1833 = vmatprep.subr.bf16.mxu0 0
  %1834 = vmatpush1.bf16.msra.mxu0 %v1768
  %1835 = vmatprep.subr.bf16.mxu0 0
  %1836 = vmatpush1.bf16.msra.mxu0 %v1769
  %1837 = vmatprep.subr.bf16.mxu0 0
  %1838 = vmatpush1.bf16.msra.mxu0 0
  %1839 = vmatprep.subr.bf16.mxu0 0
  %1840 = vmatpush1.bf16.msra.mxu0 0
  %1841 = vmatprep.subr.bf16.mxu0 0
  %1842 = vmatpush1.bf16.msra.mxu0 0
  %1843 = vmatprep.subr.bf16.mxu0 0
  %1844 = vmatpush1.bf16.msra.mxu0 0
  %1845 = vmatprep.subr.bf16.mxu0 0
  %1846 = vmatpush1.bf16.msra.mxu0 0
  %1847 = vmatprep.subr.bf16.mxu0 0
  %1848 = vmatpush1.bf16.msra.mxu0 0
  %1849 = vmatprep.subr.bf16.mxu0 0
  %1850 = vmatpush1.bf16.msra.mxu0 0
  %1851 = vmatprep.subr.bf16.mxu0 0
  %1852 = vmatpush1.bf16.msra.mxu0 0
  %1853 = vmatprep.subr.bf16.mxu0 0
  %1854 = vmatpush1.bf16.msra.mxu0 0
  %1855 = vmatprep.subr.bf16.mxu0 0
  %1856 = vmatpush1.bf16.msra.mxu0 0
  %1857 = vmatprep.subr.bf16.mxu0 0
  %1858 = vmatpush1.bf16.msra.mxu0 0
  %1859 = vmatprep.subr.bf16.mxu0 0
  %1860 = vmatpush1.bf16.msra.mxu0 0
  %1861 = vmatprep.subr.bf16.mxu0 0
  %1862 = vmatpush1.bf16.msra.mxu0 0
  %1863 = vmatprep.subr.bf16.mxu0 0
  %1864 = vmatpush1.bf16.msra.mxu0 0
  %1865 = vmatprep.mubr.bf16.mxu0 0
  %1866 = vmatmul.mubr.bf16.gmra.mrb[0].mxu0 %v1790
  %v1867 = vpop.f32.mrb[0].mxu0
  %v1868 = vadd.f32 %v1827, %v1867
  %v1869 = vpop.f32.mrb[0].mxu0
  %v1870 = vpop.f32.mrb[0].mxu0
  %v1871 = vadd.f32 %v1830, %v1870
  %v1872 = vpop.f32.mrb[0].mxu0
  %1873 = vdwg.mxu0
  %v1875 = vrot.slane %v1868, 4
  %v1877 = vmax.f32 %v1868, %v1875
  %v1879 = vrot.slane %v1871, 4
  %v1881 = vmax.f32 %v1871, %v1879
  %v1882 = vmax.f32 %v1877, %v1881
  %v1883 = vld [vmem:[%s4] sm:$0x1]
  %v1885 = vlaneseq
  %v1886 = vshrl.u32 %v1885, 7
  %v1887 = vsub.s32 0, %v1886
  %v1888 = vrot.slane %v1883, %v1887
  %v1890 = vadd.f32 %v1882, %v1888
  %v1891 = vmax.f32 %v1890, 0.0
  %v1892 = vpack.c.bf16 %v1891, %v1891
  %v1893 = vld [vmem:[%s5] sm:$0xf]
  %v1894 = vld [vmem:[%s5 + $0x4] sm:$0xf]
  %v1895 = vld [vmem:[%s5 + $0x8] sm:$0xf]
  %v1896 = vld [vmem:[%s5 + $0xc] sm:$0xf]
  %v1897 = vld [vmem:[%s5 + $0x10] sm:$0xf]
  %v1898 = vld [vmem:[%s5 + $0x14] sm:$0xf]
  %v1899 = vld [vmem:[%s5 + $0x18] sm:$0xf]
  %v1900 = vld [vmem:[%s5 + $0x1c] sm:$0xf]
  %v1901 = vld [vmem:[%s5 + $0x20] sm:$0xf]
  %v1902 = vld [vmem:[%s5 + $0x24] sm:$0xf]
  %v1903 = vld [vmem:[%s5 + $0x28] sm:$0xf]
  %v1904 = vld [vmem:[%s5 + $0x2c] sm:$0xf]
  %v1905 = vld [vmem:[%s6] sm:$0x1]
  %v1907 = vlaneseq
  %v1908 = vshrl.u32 %v1907, 7
  %v1909 = vsub.s32 0, %v1908
  %v1910 = vrot.slane %v1905, %v1909
  %v1924 = vunpack.c.l.b16 %v1893
  %v1925 = vunpack.c.l.b16 %v1894
  %v1926 = vunpack.c.l.b16 %v1895
  %v1927 = vunpack.c.l.b16 %v1896
  %v1928 = vunpack.c.l.b16 %v1897
  %v1929 = vunpack.c.l.b16 %v1898
  %v1930 = vunpack.c.l.b16 %v1899
  %v1931 = vunpack.c.l.b16 %v1900
  %v1932 = vunpack.c.l.b16 %v1901
  %v1933 = vunpack.c.l.b16 %v1902
  %v1934 = vunpack.c.l.b16 %v1903
  %v1935 = vunpack.c.l.b16 %v1904
  %v1936 = vpack.c.b16 %v1925, %v1924
  %v1937 = vpack.c.b16 %v1927, %v1926
  %v1938 = vpack.c.b16 %v1929, %v1928
  %v1939 = vpack.c.b16 %v1931, %v1930
  %v1940 = vpack.c.b16 %v1933, %v1932
  %v1941 = vpack.c.b16 %v1935, %v1934
  %vm1948 = vcmask 785408
  %v1950 = vsel %vm1948, %v1892, 0
  %1952 = vmatprep.subr.bf16.mxu0 0
  %1953 = vmatpush1.bf16.msra.mxu0 %v1936
  %1954 = vmatprep.subr.bf16.mxu0 0
  %1955 = vmatpush1.bf16.msra.mxu0 %v1937
  %1956 = vmatprep.subr.bf16.mxu0 0
  %1957 = vmatpush1.bf16.msra.mxu0 %v1938
  %1958 = vmatprep.subr.bf16.mxu0 0
  %1959 = vmatpush1.bf16.msra.mxu0 %v1939
  %1960 = vmatprep.subr.bf16.mxu0 0
  %1961 = vmatpush1.bf16.msra.mxu0 %v1940
  %1962 = vmatprep.subr.bf16.mxu0 0
  %1963 = vmatpush1.bf16.msra.mxu0 %v1941
  %1964 = vmatprep.subr.bf16.mxu0 0
  %1965 = vmatpush1.bf16.msra.mxu0 0
  %1966 = vmatprep.subr.bf16.mxu0 0
  %1967 = vmatpush1.bf16.msra.mxu0 0
  %1968 = vmatprep.subr.bf16.mxu0 0
  %1969 = vmatpush1.bf16.msra.mxu0 0
  %1970 = vmatprep.subr.bf16.mxu0 0
  %1971 = vmatpush1.bf16.msra.mxu0 0
  %1972 = vmatprep.subr.bf16.mxu0 0
  %1973 = vmatpush1.bf16.msra.mxu0 0
  %1974 = vmatprep.subr.bf16.mxu0 0
  %1975 = vmatpush1.bf16.msra.mxu0 0
  %1976 = vmatprep.subr.bf16.mxu0 0
  %1977 = vmatpush1.bf16.msra.mxu0 0
  %1978 = vmatprep.subr.bf16.mxu0 0
  %1979 = vmatpush1.bf16.msra.mxu0 0
  %1980 = vmatprep.subr.bf16.mxu0 0
  %1981 = vmatpush1.bf16.msra.mxu0 0
  %1982 = vmatprep.subr.bf16.mxu0 0
  %1983 = vmatpush1.bf16.msra.mxu0 0
  %1984 = vmatprep.mubr.bf16.mxu0 0
  %1985 = vmatmul.mubr.bf16.gmra.mrb[0].mxu0 %v1950
  %v1986 = vpop.f32.mrb[0].mxu0
  %v1987 = vadd.f32 %v1910, %v1986
  %v1988 = vpop.f32.mrb[0].mxu0
  %v1989 = vpop.f32.mrb[0].mxu0
  %v1990 = vpop.f32.mrb[0].mxu0
  %1991 = vdwg.mxu0
  %v1992 = vmax.f32 %v1987, 0.0
  %v1993 = vpack.c.bf16 %v1992, %v1992
  %v1994 = vld [vmem:[%s7] sm:$0xf]
  %v1995 = vld [vmem:[%s7 + $0x4] sm:$0xf]
  %v1996 = vld [vmem:[%s7 + $0x8] sm:$0xf]
  %v1997 = vld [vmem:[%s7 + $0xc] sm:$0xf]
  %v1998 = vld [vmem:[%s7 + $0x10] sm:$0xf]
  %v1999 = vld [vmem:[%s8] sm:$0x1]
  %v2001 = vlaneseq
  %v2002 = vshrl.u32 %v2001, 7
  %v2003 = vsub.s32 0, %v2002
  %v2004 = vrot.slane %v1999, %v2003
  %v2011 = vunpack.c.l.b16 %v1994
  %v2012 = vunpack.c.l.b16 %v1995
  %v2013 = vunpack.c.l.b16 %v1996
  %v2014 = vunpack.c.l.b16 %v1997
  %v2015 = vunpack.c.l.b16 %v1998
  %v2016 = vpack.c.b16 %v2012, %v2011
  %v2017 = vpack.c.b16 %v2014, %v2013
  %v2018 = vpack.c.b16 %v2015, %v2015
  %vm2021 = vcmask 326656
  %v2023 = vsel %vm2021, %v1993, 0
  %v2026 = vsel %vm191, %v2018, 0
  %2028 = vmatprep.subr.bf16.mxu0 0
  %2029 = vmatpush1.bf16.msra.mxu0 %v2016
  %2030 = vmatprep.subr.bf16.mxu0 0
  %2031 = vmatpush1.bf16.msra.mxu0 %v2017
  %2032 = vmatprep.subr.bf16.mxu0 0
  %2033 = vmatpush1.bf16.msra.mxu0 %v2026
  %2034 = vmatprep.subr.bf16.mxu0 0
  %2035 = vmatpush1.bf16.msra.mxu0 0
  %2036 = vmatprep.subr.bf16.mxu0 0
  %2037 = vmatpush1.bf16.msra.mxu0 0
  %2038 = vmatprep.subr.bf16.mxu0 0
  %2039 = vmatpush1.bf16.msra.mxu0 0
  %2040 = vmatprep.subr.bf16.mxu0 0
  %2041 = vmatpush1.bf16.msra.mxu0 0
  %2042 = vmatprep.subr.bf16.mxu0 0
  %2043 = vmatpush1.bf16.msra.mxu0 0
  %2044 = vmatprep.subr.bf16.mxu0 0
  %2045 = vmatpush1.bf16.msra.mxu0 0
  %2046 = vmatprep.subr.bf16.mxu0 0
  %2047 = vmatpush1.bf16.msra.mxu0 0
  %2048 = vmatprep.subr.bf16.mxu0 0
  %2049 = vmatpush1.bf16.msra.mxu0 0
  %2050 = vmatprep.subr.bf16.mxu0 0
  %2051 = vmatpush1.bf16.msra.mxu0 0
  %2052 = vmatprep.subr.bf16.mxu0 0
  %2053 = vmatpush1.bf16.msra.mxu0 0
  %2054 = vmatprep.subr.bf16.mxu0 0
  %2055 = vmatpush1.bf16.msra.mxu0 0
  %2056 = vmatprep.subr.bf16.mxu0 0
  %2057 = vmatpush1.bf16.msra.mxu0 0
  %2058 = vmatprep.subr.bf16.mxu0 0
  %2059 = vmatpush1.bf16.msra.mxu0 0
  %2060 = vmatprep.mubr.bf16.mxu0 0
  %2061 = vmatmul.mubr.bf16.gmra.mrb[0].mxu0 %v2023
  %v2062 = vpop.f32.mrb[0].mxu0
  %v2063 = vadd.f32 %v2004, %v2062
  %v2064 = vpop.f32.mrb[0].mxu0
  %v2065 = vpop.f32.mrb[0].mxu0
  %v2066 = vpop.f32.mrb[0].mxu0
  %2067 = vdwg.mxu0
  %v2068 = vmax.f32 %v2063, 0.0
  %v2069 = vpack.c.bf16 %v2068, %v2068
  %v2070 = vld [vmem:[%s9] sm:$0xf]
  %v2071 = vld [vmem:[%s9 + $0x4] sm:$0xf]
  %v2072 = vld [vmem:[%s9 + $0x8] sm:$0xf]
  %v2073 = vld [vmem:[%s9 + $0xc] sm:$0x7]
  %v2074 = vld [vmem:[%s10] sm:$0x1]
  %v2076 = vlaneseq
  %v2077 = vshrl.u32 %v2076, 7
  %v2078 = vsub.s32 0, %v2077
  %v2079 = vrot.slane %v2074, %v2078
  %v2085 = vunpack.c.l.b16 %v2070
  %v2086 = vunpack.c.l.b16 %v2071
  %v2087 = vunpack.c.l.b16 %v2072
  %v2088 = vunpack.c.l.b16 %v2073
  %v2089 = vpack.c.b16 %v2086, %v2085
  %v2090 = vpack.c.b16 %v2088, %v2087
  %vm2092 = vcmask 244736
  %v2094 = vsel %vm2092, %v2069, 0
  %vm2096 = vcmask 1046528
  %v2098 = vsel %vm2096, %v2090, 0
  %2100 = vmatprep.subr.bf16.mxu0 0
  %2101 = vmatpush1.bf16.msra.mxu0 %v2089
  %2102 = vmatprep.subr.bf16.mxu0 0
  %2103 = vmatpush1.bf16.msra.mxu0 %v2098
  %2104 = vmatprep.subr.bf16.mxu0 0
  %2105 = vmatpush1.bf16.msra.mxu0 0
  %2106 = vmatprep.subr.bf16.mxu0 0
  %2107 = vmatpush1.bf16.msra.mxu0 0
  %2108 = vmatprep.subr.bf16.mxu0 0
  %2109 = vmatpush1.bf16.msra.mxu0 0
  %2110 = vmatprep.subr.bf16.mxu0 0
  %2111 = vmatpush1.bf16.msra.mxu0 0
  %2112 = vmatprep.subr.bf16.mxu0 0
  %2113 = vmatpush1.bf16.msra.mxu0 0
  %2114 = vmatprep.subr.bf16.mxu0 0
  %2115 = vmatpush1.bf16.msra.mxu0 0
  %2116 = vmatprep.subr.bf16.mxu0 0
  %2117 = vmatpush1.bf16.msra.mxu0 0
  %2118 = vmatprep.subr.bf16.mxu0 0
  %2119 = vmatpush1.bf16.msra.mxu0 0
  %2120 = vmatprep.subr.bf16.mxu0 0
  %2121 = vmatpush1.bf16.msra.mxu0 0
  %2122 = vmatprep.subr.bf16.mxu0 0
  %2123 = vmatpush1.bf16.msra.mxu0 0
  %2124 = vmatprep.subr.bf16.mxu0 0
  %2125 = vmatpush1.bf16.msra.mxu0 0
  %2126 = vmatprep.subr.bf16.mxu0 0
  %2127 = vmatpush1.bf16.msra.mxu0 0
  %2128 = vmatprep.subr.bf16.mxu0 0
  %2129 = vmatpush1.bf16.msra.mxu0 0
  %2130 = vmatprep.subr.bf16.mxu0 0
  %2131 = vmatpush1.bf16.msra.mxu0 0
  %2132 = vmatprep.mubr.bf16.mxu0 0
  %2133 = vmatmul.mubr.bf16.gmra.mrb[0].mxu0 %v2094
  %v2134 = vpop.f32.mrb[0].mxu0
  %v2135 = vadd.f32 %v2079, %v2134
  %v2136 = vpop.f32.mrb[0].mxu0
  %v2137 = vpop.f32.mrb[0].mxu0
  %v2138 = vpop.f32.mrb[0].mxu0
  %2139 = vdwg.mxu0
  %v2140 = vpack.c.bf16 %v2135, %v2135
  %v2141 = vld [vmem:[%s11] sm:$0xf]
  %v2142 = vld [vmem:[%s11 + $0x4] sm:$0xf]
  %v2143 = vld [vmem:[%s11 + $0x8] sm:$0x3]
  %v2144 = vld [vmem:[%s12] sm:$0x1]
  %v2146 = vlaneseq
  %v2147 = vshrl.u32 %v2146, 7
  %v2148 = vsub.s32 0, %v2147
  %v2149 = vrot.slane %v2144, %v2148
  %v2154 = vunpack.c.l.b16 %v2141
  %v2155 = vunpack.c.l.b16 %v2142
  %v2156 = vunpack.c.l.b16 %v2143
  %v2157 = vpack.c.b16 %v2155, %v2154
  %v2158 = vpack.c.b16 %v2156, %v2156
  %v2161 = vsel %vm1608, %v2140, 0
  %vm2163 = vcmask 1041408
  %v2165 = vsel %vm2163, %v2158, 0
  %2167 = vmatprep.subr.bf16.mxu0 0
  %2168 = vmatpush1.bf16.msra.mxu0 %v2157
  %2169 = vmatprep.subr.bf16.mxu0 0
  %2170 = vmatpush1.bf16.msra.mxu0 %v2165
  %2171 = vmatprep.subr.bf16.mxu0 0
  %2172 = vmatpush1.bf16.msra.mxu0 0
  %2173 = vmatprep.subr.bf16.mxu0 0
  %2174 = vmatpush1.bf16.msra.mxu0 0
  %2175 = vmatprep.subr.bf16.mxu0 0
  %2176 = vmatpush1.bf16.msra.mxu0 0
  %2177 = vmatprep.subr.bf16.mxu0 0
  %2178 = vmatpush1.bf16.msra.mxu0 0
  %2179 = vmatprep.subr.bf16.mxu0 0
  %2180 = vmatpush1.bf16.msra.mxu0 0
  %2181 = vmatprep.subr.bf16.mxu0 0
  %2182 = vmatpush1.bf16.msra.mxu0 0
  %2183 = vmatprep.subr.bf16.mxu0 0
  %2184 = vmatpush1.bf16.msra.mxu0 0
  %2185 = vmatprep.subr.bf16.mxu0 0
  %2186 = vmatpush1.bf16.msra.mxu0 0
  %2187 = vmatprep.subr.bf16.mxu0 0
  %2188 = vmatpush1.bf16.msra.mxu0 0
  %2189 = vmatprep.subr.bf16.mxu0 0
  %2190 = vmatpush1.bf16.msra.mxu0 0
  %2191 = vmatprep.subr.bf16.mxu0 0
  %2192 = vmatpush1.bf16.msra.mxu0 0
  %2193 = vmatprep.subr.bf16.mxu0 0
  %2194 = vmatpush1.bf16.msra.mxu0 0
  %2195 = vmatprep.subr.bf16.mxu0 0
  %2196 = vmatpush1.bf16.msra.mxu0 0
  %2197 = vmatprep.subr.bf16.mxu0 0
  %2198 = vmatpush1.bf16.msra.mxu0 0
  %2199 = vmatprep.mubr.bf16.mxu0 0
  %2200 = vmatmul.mubr.bf16.gmra.mrb[0].mxu0 %v2161
  %v2201 = vpop.f32.mrb[0].mxu0
  %v2202 = vadd.f32 %v2149, %v2201
  %v2203 = vpop.f32.mrb[0].mxu0
  %v2204 = vpop.f32.mrb[0].mxu0
  %v2205 = vpop.f32.mrb[0].mxu0
  %2206 = vdwg.mxu0
  %v2207 = vmax.f32 %v2202, 0.0
  %v2208 = vpack.c.bf16 %v2207, %v2207
  %v2209 = vld [vmem:[%s13] sm:$0xf]
  %v2210 = vld [vmem:[%s13 + $0x4] sm:$0xf]
  %v2211 = vld [vmem:[%s13 + $0x8] sm:$0xf]
  %v2212 = vld [vmem:[%s13 + $0xc] sm:$0x7]
  %v2213 = vld [vmem:[%s14] sm:$0x1]
  %v2215 = vlaneseq
  %v2216 = vshrl.u32 %v2215, 7
  %v2217 = vsub.s32 0, %v2216
  %v2218 = vrot.slane %v2213, %v2217
  %v2224 = vunpack.c.l.b16 %v2209
  %v2225 = vunpack.c.l.b16 %v2210
  %v2226 = vunpack.c.l.b16 %v2211
  %v2227 = vunpack.c.l.b16 %v2212
  %v2228 = vpack.c.b16 %v2225, %v2224
  %v2229 = vpack.c.b16 %v2227, %v2226
  %v2232 = vsel %vm2092, %v2208, 0
  %v2235 = vsel %vm2096, %v2229, 0
  %2237 = vmatprep.subr.bf16.mxu0 0
  %2238 = vmatpush1.bf16.msra.mxu0 %v2228
  %2239 = vmatprep.subr.bf16.mxu0 0
  %2240 = vmatpush1.bf16.msra.mxu0 %v2235
  %2241 = vmatprep.subr.bf16.mxu0 0
  %2242 = vmatpush1.bf16.msra.mxu0 0
  %2243 = vmatprep.subr.bf16.mxu0 0
  %2244 = vmatpush1.bf16.msra.mxu0 0
  %2245 = vmatprep.subr.bf16.mxu0 0
  %2246 = vmatpush1.bf16.msra.mxu0 0
  %2247 = vmatprep.subr.bf16.mxu0 0
  %2248 = vmatpush1.bf16.msra.mxu0 0
  %2249 = vmatprep.subr.bf16.mxu0 0
  %2250 = vmatpush1.bf16.msra.mxu0 0
  %2251 = vmatprep.subr.bf16.mxu0 0
  %2252 = vmatpush1.bf16.msra.mxu0 0
  %2253 = vmatprep.subr.bf16.mxu0 0
  %2254 = vmatpush1.bf16.msra.mxu0 0
  %2255 = vmatprep.subr.bf16.mxu0 0
  %2256 = vmatpush1.bf16.msra.mxu0 0
  %2257 = vmatprep.subr.bf16.mxu0 0
  %2258 = vmatpush1.bf16.msra.mxu0 0
  %2259 = vmatprep.subr.bf16.mxu0 0
  %2260 = vmatpush1.bf16.msra.mxu0 0
  %2261 = vmatprep.subr.bf16.mxu0 0
  %2262 = vmatpush1.bf16.msra.mxu0 0
  %2263 = vmatprep.subr.bf16.mxu0 0
  %2264 = vmatpush1.bf16.msra.mxu0 0
  %2265 = vmatprep.subr.bf16.mxu0 0
  %2266 = vmatpush1.bf16.msra.mxu0 0
  %2267 = vmatprep.subr.bf16.mxu0 0
  %2268 = vmatpush1.bf16.msra.mxu0 0
  %2269 = vmatprep.mubr.bf16.mxu0 0
  %2270 = vmatmul.mubr.bf16.gmra.mrb[0].mxu0 %v2232
  %v2271 = vpop.f32.mrb[0].mxu0
  %v2272 = vadd.f32 %v2218, %v2271
  %v2273 = vpop.f32.mrb[0].mxu0
  %v2274 = vpop.f32.mrb[0].mxu0
  %v2275 = vpop.f32.mrb[0].mxu0
  %2276 = vdwg.mxu0
  %v2277 = vmax.f32 %v2272, 0.0
  %v2278 = vpack.c.bf16 %v2277, %v2277
  %v2279 = vld [vmem:[%s15] sm:$0xf]
  %v2280 = vld [vmem:[%s15 + $0x4] sm:$0xf]
  %v2281 = vld [vmem:[%s15 + $0x8] sm:$0xf]
  %v2282 = vld [vmem:[%s15 + $0xc] sm:$0xf]
  %v2283 = vld [vmem:[%s15 + $0x10] sm:$0xf]
  %v2284 = vld [vmem:[%s16] sm:$0x1]
  %v2286 = vlaneseq
  %v2287 = vshrl.u32 %v2286, 7
  %v2288 = vsub.s32 0, %v2287
  %v2289 = vrot.slane %v2284, %v2288
  %v2296 = vunpack.c.l.b16 %v2279
  %v2297 = vunpack.c.l.b16 %v2280
  %v2298 = vunpack.c.l.b16 %v2281
  %v2299 = vunpack.c.l.b16 %v2282
  %v2300 = vunpack.c.l.b16 %v2283
  %v2301 = vpack.c.b16 %v2297, %v2296
  %v2302 = vpack.c.b16 %v2299, %v2298
  %v2303 = vpack.c.b16 %v2300, %v2300
  %v2307 = vsel %vm2021, %v2278, 0
  %v2310 = vsel %vm191, %v2303, 0
  %2312 = vmatprep.subr.bf16.mxu0 0
  %2313 = vmatpush1.bf16.msra.mxu0 %v2301
  %2314 = vmatprep.subr.bf16.mxu0 0
  %2315 = vmatpush1.bf16.msra.mxu0 %v2302
  %2316 = vmatprep.subr.bf16.mxu0 0
  %2317 = vmatpush1.bf16.msra.mxu0 %v2310
  %2318 = vmatprep.subr.bf16.mxu0 0
  %2319 = vmatpush1.bf16.msra.mxu0 0
  %2320 = vmatprep.subr.bf16.mxu0 0
  %2321 = vmatpush1.bf16.msra.mxu0 0
  %2322 = vmatprep.subr.bf16.mxu0 0
  %2323 = vmatpush1.bf16.msra.mxu0 0
  %2324 = vmatprep.subr.bf16.mxu0 0
  %2325 = vmatpush1.bf16.msra.mxu0 0
  %2326 = vmatprep.subr.bf16.mxu0 0
  %2327 = vmatpush1.bf16.msra.mxu0 0
  %2328 = vmatprep.subr.bf16.mxu0 0
  %2329 = vmatpush1.bf16.msra.mxu0 0
  %2330 = vmatprep.subr.bf16.mxu0 0
  %2331 = vmatpush1.bf16.msra.mxu0 0
  %2332 = vmatprep.subr.bf16.mxu0 0
  %2333 = vmatpush1.bf16.msra.mxu0 0
  %2334 = vmatprep.subr.bf16.mxu0 0
  %2335 = vmatpush1.bf16.msra.mxu0 0
  %2336 = vmatprep.subr.bf16.mxu0 0
  %2337 = vmatpush1.bf16.msra.mxu0 0
  %2338 = vmatprep.subr.bf16.mxu0 0
  %2339 = vmatpush1.bf16.msra.mxu0 0
  %2340 = vmatprep.subr.bf16.mxu0 0
  %2341 = vmatpush1.bf16.msra.mxu0 0
  %2342 = vmatprep.subr.bf16.mxu0 0
  %2343 = vmatpush1.bf16.msra.mxu0 0
  %2344 = vmatprep.mubr.bf16.mxu0 0
  %2345 = vmatmul.mubr.bf16.gmra.mrb[0].mxu0 %v2307
  %v2346 = vpop.f32.mrb[0].mxu0
  %v2347 = vadd.f32 %v2289, %v2346
  %v2348 = vpop.f32.mrb[0].mxu0
  %v2349 = vpop.f32.mrb[0].mxu0
  %v2350 = vpop.f32.mrb[0].mxu0
  %2351 = vdwg.mxu0
  %v2352 = vmax.f32 %v2347, 0.0
  %v2353 = vpack.c.bf16 %v2352, %v2352
  %v2354 = vld [vmem:[%s17] sm:$0xff]
  %v2355 = vld [vmem:[%s17 + $0x8] sm:$0xf]
  %v2356 = vld [vmem:[%s17 + $0xc] sm:$0xff]
  %v2357 = vld [vmem:[%s17 + $0x14] sm:$0xf]
  %v2358 = vld [vmem:[%s17 + $0x18] sm:$0xff]
  %v2359 = vld [vmem:[%s17 + $0x20] sm:$0xf]
  %v2360 = vld [vmem:[%s17 + $0x24] sm:$0xff]
  %v2361 = vld [vmem:[%s17 + $0x2c] sm:$0xf]
  %v2362 = vld [vmem:[%s17 + $0x30] sm:$0xff]
  %v2363 = vld [vmem:[%s17 + $0x38] sm:$0xf]
  %v2364 = vld [vmem:[%s17 + $0x3c] sm:$0xff]
  %v2365 = vld [vmem:[%s17 + $0x44] sm:$0xf]
  %v2366 = vld [vmem:[%s17 + $0x48] sm:$0xff]
  %v2367 = vld [vmem:[%s17 + $0x50] sm:$0xf]
  %v2368 = vld [vmem:[%s17 + $0x54] sm:$0xff]
  %v2369 = vld [vmem:[%s17 + $0x5c] sm:$0xf]
  %v2370 = vld [vmem:[%s17 + $0x60] sm:$0xff]
  %v2371 = vld [vmem:[%s17 + $0x68] sm:$0xf]
  %v2372 = vld [vmem:[%s17 + $0x6c] sm:$0xff]
  %v2373 = vld [vmem:[%s17 + $0x74] sm:$0xf]
  %v2374 = vld [vmem:[%s17 + $0x78] sm:$0xff]
  %v2375 = vld [vmem:[%s17 + $0x80] sm:$0xf]
  %v2376 = vld [vmem:[%s17 + $0x84] sm:$0xff]
  %v2377 = vld [vmem:[%s17 + $0x8c] sm:$0xf]
  %v2378 = vld [vmem:[%s18] sm:$0x7]
  %v2380 = vlaneseq
  %v2381 = vshrl.u32 %v2380, 7
  %v2382 = vsub.s32 0, %v2381
  %v2383 = vrot.slane %v2378, %v2382
  %v2384 = vlaneseq
  %v2385 = vshrl.u32 %v2384, 7
  %v2386 = vsub.s32 1, %v2385
  %v2387 = vrot.slane %v2378, %v2386
  %v2388 = vlaneseq
  %v2389 = vshrl.u32 %v2388, 7
  %v2390 = vsub.s32 2, %v2389
  %v2391 = vrot.slane %v2378, %v2390
  %v2419 = vunpack.c.l.b16 %v2354
  %v2420 = vunpack.c.h.b16 %v2354
  %v2421 = vunpack.c.l.b16 %v2355
  %v2422 = vunpack.c.l.b16 %v2356
  %v2423 = vunpack.c.h.b16 %v2356
  %v2424 = vunpack.c.l.b16 %v2357
  %v2425 = vunpack.c.l.b16 %v2358
  %v2426 = vunpack.c.h.b16 %v2358
  %v2427 = vunpack.c.l.b16 %v2359
  %v2428 = vunpack.c.l.b16 %v2360
  %v2429 = vunpack.c.h.b16 %v2360
  %v2430 = vunpack.c.l.b16 %v2361
  %v2431 = vunpack.c.l.b16 %v2362
  %v2432 = vunpack.c.h.b16 %v2362
  %v2433 = vunpack.c.l.b16 %v2363
  %v2434 = vunpack.c.l.b16 %v2364
  %v2435 = vunpack.c.h.b16 %v2364
  %v2436 = vunpack.c.l.b16 %v2365
  %v2437 = vunpack.c.l.b16 %v2366
  %v2438 = vunpack.c.h.b16 %v2366
  %v2439 = vunpack.c.l.b16 %v2367
  %v2440 = vunpack.c.l.b16 %v2368
  %v2441 = vunpack.c.h.b16 %v2368
  %v2442 = vunpack.c.l.b16 %v2369
  %v2443 = vunpack.c.l.b16 %v2370
  %v2444 = vunpack.c.h.b16 %v2370
  %v2445 = vunpack.c.l.b16 %v2371
  %v2446 = vunpack.c.l.b16 %v2372
  %v2447 = vunpack.c.h.b16 %v2372
  %v2448 = vunpack.c.l.b16 %v2373
  %v2449 = vunpack.c.l.b16 %v2374
  %v2450 = vunpack.c.h.b16 %v2374
  %v2451 = vunpack.c.l.b16 %v2375
  %v2452 = vunpack.c.l.b16 %v2376
  %v2453 = vunpack.c.h.b16 %v2376
  %v2454 = vunpack.c.l.b16 %v2377
  %v2455 = vpack.c.b16 %v2422, %v2419
  %v2456 = vpack.c.b16 %v2423, %v2420
  %v2457 = vpack.c.b16 %v2424, %v2421
  %v2458 = vpack.c.b16 %v2428, %v2425
  %v2459 = vpack.c.b16 %v2429, %v2426
  %v2460 = vpack.c.b16 %v2430, %v2427
  %v2461 = vpack.c.b16 %v2434, %v2431
  %v2462 = vpack.c.b16 %v2435, %v2432
  %v2463 = vpack.c.b16 %v2436, %v2433
  %v2464 = vpack.c.b16 %v2440, %v2437
  %v2465 = vpack.c.b16 %v2441, %v2438
  %v2466 = vpack.c.b16 %v2442, %v2439
  %v2467 = vpack.c.b16 %v2446, %v2443
  %v2468 = vpack.c.b16 %v2447, %v2444
  %v2469 = vpack.c.b16 %v2448, %v2445
  %v2470 = vpack.c.b16 %v2452, %v2449
  %v2471 = vpack.c.b16 %v2453, %v2450
  %v2472 = vpack.c.b16 %v2454, %v2451
  %v2492 = vsel %vm1948, %v2353, 0
  %2494 = vmatprep.subr.bf16.mxu0 %v2456
  %2495 = vmatpush1.bf16.msra.mxu0 %v2455
  %2496 = vmatprep.subr.bf16.mxu0 %v2459
  %2497 = vmatpush1.bf16.msra.mxu0 %v2458
  %2498 = vmatprep.subr.bf16.mxu0 %v2462
  %2499 = vmatpush1.bf16.msra.mxu0 %v2461
  %2500 = vmatprep.subr.bf16.mxu0 %v2465
  %2501 = vmatpush1.bf16.msra.mxu0 %v2464
  %2502 = vmatprep.subr.bf16.mxu0 %v2468
  %2503 = vmatpush1.bf16.msra.mxu0 %v2467
  %2504 = vmatprep.subr.bf16.mxu0 %v2471
  %2505 = vmatpush1.bf16.msra.mxu0 %v2470
  %2506 = vmatprep.subr.bf16.mxu0 0
  %2507 = vmatpush1.bf16.msra.mxu0 0
  %2508 = vmatprep.subr.bf16.mxu0 0
  %2509 = vmatpush1.bf16.msra.mxu0 0
  %2510 = vmatprep.subr.bf16.mxu0 0
  %2511 = vmatpush1.bf16.msra.mxu0 0
  %2512 = vmatprep.subr.bf16.mxu0 0
  %2513 = vmatpush1.bf16.msra.mxu0 0
  %2514 = vmatprep.subr.bf16.mxu0 0
  %2515 = vmatpush1.bf16.msra.mxu0 0
  %2516 = vmatprep.subr.bf16.mxu0 0
  %2517 = vmatpush1.bf16.msra.mxu0 0
  %2518 = vmatprep.subr.bf16.mxu0 0
  %2519 = vmatpush1.bf16.msra.mxu0 0
  %2520 = vmatprep.subr.bf16.mxu0 0
  %2521 = vmatpush1.bf16.msra.mxu0 0
  %2522 = vmatprep.subr.bf16.mxu0 0
  %2523 = vmatpush1.bf16.msra.mxu0 0
  %2524 = vmatprep.subr.bf16.mxu0 0
  %2525 = vmatpush1.bf16.msra.mxu0 0
  %2526 = vmatprep.mubr.bf16.mxu0 0
  %2527 = vmatmul.mubr.bf16.gmra.mrb[0].mxu0 %v2492
  %v2528 = vpop.f32.mrb[0].mxu0
  %v2529 = vadd.f32 %v2383, %v2528
  %v2530 = vpop.f32.mrb[0].mxu0
  %v2531 = vadd.f32 %v2387, %v2530
  %v2532 = vpop.f32.mrb[0].mxu0
  %v2533 = vpop.f32.mrb[0].mxu0
  %2534 = vdwg.mxu0
  %2535 = vmatprep.subr.bf16.mxu0 0
  %2536 = vmatpush1.bf16.msra.mxu0 %v2457
  %2537 = vmatprep.subr.bf16.mxu0 0
  %2538 = vmatpush1.bf16.msra.mxu0 %v2460
  %2539 = vmatprep.subr.bf16.mxu0 0
  %2540 = vmatpush1.bf16.msra.mxu0 %v2463
  %2541 = vmatprep.subr.bf16.mxu0 0
  %2542 = vmatpush1.bf16.msra.mxu0 %v2466
  %2543 = vmatprep.subr.bf16.mxu0 0
  %2544 = vmatpush1.bf16.msra.mxu0 %v2469
  %2545 = vmatprep.subr.bf16.mxu0 0
  %2546 = vmatpush1.bf16.msra.mxu0 %v2472
  %2547 = vmatprep.subr.bf16.mxu0 0
  %2548 = vmatpush1.bf16.msra.mxu0 0
  %2549 = vmatprep.subr.bf16.mxu0 0
  %2550 = vmatpush1.bf16.msra.mxu0 0
  %2551 = vmatprep.subr.bf16.mxu0 0
  %2552 = vmatpush1.bf16.msra.mxu0 0
  %2553 = vmatprep.subr.bf16.mxu0 0
  %2554 = vmatpush1.bf16.msra.mxu0 0
  %2555 = vmatprep.subr.bf16.mxu0 0
  %2556 = vmatpush1.bf16.msra.mxu0 0
  %2557 = vmatprep.subr.bf16.mxu0 0
  %2558 = vmatpush1.bf16.msra.mxu0 0
  %2559 = vmatprep.subr.bf16.mxu0 0
  %2560 = vmatpush1.bf16.msra.mxu0 0
  %2561 = vmatprep.subr.bf16.mxu0 0
  %2562 = vmatpush1.bf16.msra.mxu0 0
  %2563 = vmatprep.subr.bf16.mxu0 0
  %2564 = vmatpush1.bf16.msra.mxu0 0
  %2565 = vmatprep.subr.bf16.mxu0 0
  %2566 = vmatpush1.bf16.msra.mxu0 0
  %2567 = vmatprep.mubr.bf16.mxu0 0
  %2568 = vmatmul.mubr.bf16.gmra.mrb[0].mxu0 %v2492
  %v2569 = vpop.f32.mrb[0].mxu0
  %v2570 = vadd.f32 %v2391, %v2569
  %v2571 = vpop.f32.mrb[0].mxu0
  %v2572 = vpop.f32.mrb[0].mxu0
  %v2573 = vpop.f32.mrb[0].mxu0
  %2574 = vdwg.mxu0
  %v2575 = vmax.f32 %v2529, 0.0
  %v2576 = vmax.f32 %v2531, 0.0
  %v2577 = vmax.f32 %v2570, 0.0
  %v2578 = vpack.c.bf16 %v2575, %v2575
  %v2579 = vpack.c.bf16 %v2576, %v2576
  %v2580 = vpack.c.bf16 %v2577, %v2577
  %v2581 = vld [vmem:[%s19] sm:$0xff]
  %v2582 = vld [vmem:[%s19 + $0x8] sm:$0xff]
  %v2583 = vld [vmem:[%s19 + $0x10] sm:$0xff]
  %v2584 = vld [vmem:[%s19 + $0x18] sm:$0xf]
  %v2585 = vld [vmem:[%s19 + $0x1c] sm:$0xff]
  %v2586 = vld [vmem:[%s19 + $0x24] sm:$0xff]
  %v2587 = vld [vmem:[%s19 + $0x2c] sm:$0xff]
  %v2588 = vld [vmem:[%s19 + $0x34] sm:$0xf]
  %v2589 = vld [vmem:[%s19 + $0x38] sm:$0xff]
  %v2590 = vld [vmem:[%s19 + $0x40] sm:$0xff]
  %v2591 = vld [vmem:[%s19 + $0x48] sm:$0xff]
  %v2592 = vld [vmem:[%s19 + $0x50] sm:$0xf]
  %v2593 = vld [vmem:[%s19 + $0x54] sm:$0xff]
  %v2594 = vld [vmem:[%s19 + $0x5c] sm:$0xff]
  %v2595 = vld [vmem:[%s19 + $0x64] sm:$0xff]
  %v2596 = vld [vmem:[%s19 + $0x6c] sm:$0xf]
  %v2597 = vld [vmem:[%s19 + $0x70] sm:$0xff]
  %v2598 = vld [vmem:[%s19 + $0x78] sm:$0xff]
  %v2599 = vld [vmem:[%s19 + $0x80] sm:$0xff]
  %v2600 = vld [vmem:[%s19 + $0x88] sm:$0xf]
  %v2601 = vld [vmem:[%s19 + $0x8c] sm:$0xff]
  %v2602 = vld [vmem:[%s19 + $0x94] sm:$0xff]
  %v2603 = vld [vmem:[%s19 + $0x9c] sm:$0xff]
  %v2604 = vld [vmem:[%s19 + $0xa4] sm:$0xf]
  %v2605 = vld [vmem:[%s19 + $0xa8] sm:$0xff]
  %v2606 = vld [vmem:[%s19 + $0xb0] sm:$0xff]
  %v2607 = vld [vmem:[%s19 + $0xb8] sm:$0xff]
  %v2608 = vld [vmem:[%s19 + $0xc0] sm:$0xf]
  %v2609 = vld [vmem:[%s19 + $0xc4] sm:$0xff]
  %v2610 = vld [vmem:[%s19 + $0xcc] sm:$0xff]
  %v2611 = vld [vmem:[%s19 + $0xd4] sm:$0xff]
  %v2612 = vld [vmem:[%s19 + $0xdc] sm:$0xf]
  %v2613 = vld [vmem:[%s19 + $0xe0] sm:$0xff]
  %v2614 = vld [vmem:[%s19 + $0xe8] sm:$0xff]
  %v2615 = vld [vmem:[%s19 + $0xf0] sm:$0xff]
  %v2616 = vld [vmem:[%s19 + $0xf8] sm:$0xf]
  %v2617 = vld [vmem:[%s19 + $0xfc] sm:$0xff]
  %v2618 = vld [vmem:[%s19 + $0x104] sm:$0xff]
  %v2619 = vld [vmem:[%s19 + $0x10c] sm:$0xff]
  %v2620 = vld [vmem:[%s19 + $0x114] sm:$0xf]
  %v2621 = vld [vmem:[%s19 + $0x118] sm:$0xff]
  %v2622 = vld [vmem:[%s19 + $0x120] sm:$0xff]
  %v2623 = vld [vmem:[%s19 + $0x128] sm:$0xff]
  %v2624 = vld [vmem:[%s19 + $0x130] sm:$0xf]
  %v2625 = vld [vmem:[%s19 + $0x134] sm:$0xff]
  %v2626 = vld [vmem:[%s19 + $0x13c] sm:$0xff]
  %v2627 = vld [vmem:[%s19 + $0x144] sm:$0xff]
  %v2628 = vld [vmem:[%s19 + $0x14c] sm:$0xf]
  %v2629 = vld [vmem:[%s19 + $0x150] sm:$0xff]
  %v2630 = vld [vmem:[%s19 + $0x158] sm:$0xff]
  %v2631 = vld [vmem:[%s19 + $0x160] sm:$0xff]
  %v2632 = vld [vmem:[%s19 + $0x168] sm:$0xf]
  %v2633 = vld [vmem:[%s19 + $0x16c] sm:$0xff]
  %v2634 = vld [vmem:[%s19 + $0x174] sm:$0xff]
  %v2635 = vld [vmem:[%s19 + $0x17c] sm:$0xff]
  %v2636 = vld [vmem:[%s19 + $0x184] sm:$0xf]
  %v2637 = vld [vmem:[%s19 + $0x188] sm:$0xff]
  %v2638 = vld [vmem:[%s19 + $0x190] sm:$0xff]
  %v2639 = vld [vmem:[%s19 + $0x198] sm:$0xff]
  %v2640 = vld [vmem:[%s19 + $0x1a0] sm:$0xf]
  %v2641 = vld [vmem:[%s19 + $0x1a4] sm:$0xff]
  %v2642 = vld [vmem:[%s19 + $0x1ac] sm:$0xff]
  %v2643 = vld [vmem:[%s19 + $0x1b4] sm:$0xff]
  %v2644 = vld [vmem:[%s19 + $0x1bc] sm:$0xf]
  %v2645 = vld [vmem:[%s19 + $0x1c0] sm:$0xff]
  %v2646 = vld [vmem:[%s19 + $0x1c8] sm:$0xff]
  %v2647 = vld [vmem:[%s19 + $0x1d0] sm:$0xff]
  %v2648 = vld [vmem:[%s19 + $0x1d8] sm:$0xf]
  %v2649 = vld [vmem:[%s19 + $0x1dc] sm:$0xff]
  %v2650 = vld [vmem:[%s19 + $0x1e4] sm:$0xff]
  %v2651 = vld [vmem:[%s19 + $0x1ec] sm:$0xff]
  %v2652 = vld [vmem:[%s19 + $0x1f4] sm:$0xf]
  %v2653 = vld [vmem:[%s19 + $0x1f8] sm:$0xff]
  %v2654 = vld [vmem:[%s19 + $0x200] sm:$0xff]
  %v2655 = vld [vmem:[%s19 + $0x208] sm:$0xff]
  %v2656 = vld [vmem:[%s19 + $0x210] sm:$0xf]
  %v2657 = vld [vmem:[%s19 + $0x214] sm:$0xff]
  %v2658 = vld [vmem:[%s19 + $0x21c] sm:$0xff]
  %v2659 = vld [vmem:[%s19 + $0x224] sm:$0xff]
  %v2660 = vld [vmem:[%s19 + $0x22c] sm:$0xf]
  %v2661 = vld [vmem:[%s19 + $0x230] sm:$0xff]
  %v2662 = vld [vmem:[%s19 + $0x238] sm:$0xff]
  %v2663 = vld [vmem:[%s19 + $0x240] sm:$0xff]
  %v2664 = vld [vmem:[%s19 + $0x248] sm:$0xf]
  %v2665 = vld [vmem:[%s19 + $0x24c] sm:$0xff]
  %v2666 = vld [vmem:[%s19 + $0x254] sm:$0xff]
  %v2667 = vld [vmem:[%s19 + $0x25c] sm:$0xff]
  %v2668 = vld [vmem:[%s19 + $0x264] sm:$0xf]
  %v2669 = vld [vmem:[%s19 + $0x268] sm:$0xff]
  %v2670 = vld [vmem:[%s19 + $0x270] sm:$0xff]
  %v2671 = vld [vmem:[%s19 + $0x278] sm:$0xff]
  %v2672 = vld [vmem:[%s19 + $0x280] sm:$0xf]
  %v2673 = vld [vmem:[%s19 + $0x284] sm:$0xff]
  %v2674 = vld [vmem:[%s19 + $0x28c] sm:$0xff]
  %v2675 = vld [vmem:[%s19 + $0x294] sm:$0xff]
  %v2676 = vld [vmem:[%s19 + $0x29c] sm:$0xf]
  %v2677 = vld [vmem:[%s19 + $0x2a0] sm:$0xff]
  %v2678 = vld [vmem:[%s19 + $0x2a8] sm:$0xff]
  %v2679 = vld [vmem:[%s19 + $0x2b0] sm:$0xff]
  %v2680 = vld [vmem:[%s19 + $0x2b8] sm:$0xf]
  %v2681 = vld [vmem:[%s19 + $0x2bc] sm:$0xff]
  %v2682 = vld [vmem:[%s19 + $0x2c4] sm:$0xff]
  %v2683 = vld [vmem:[%s19 + $0x2cc] sm:$0xff]
  %v2684 = vld [vmem:[%s19 + $0x2d4] sm:$0xf]
  %v2685 = vld [vmem:[%s19 + $0x2d8] sm:$0xff]
  %v2686 = vld [vmem:[%s19 + $0x2e0] sm:$0xff]
  %v2687 = vld [vmem:[%s19 + $0x2e8] sm:$0xff]
  %v2688 = vld [vmem:[%s19 + $0x2f0] sm:$0xf]
  %v2689 = vld [vmem:[%s19 + $0x2f4] sm:$0xff]
  %v2690 = vld [vmem:[%s19 + $0x2fc] sm:$0xff]
  %v2691 = vld [vmem:[%s19 + $0x304] sm:$0xff]
  %v2692 = vld [vmem:[%s19 + $0x30c] sm:$0xf]
  %v2693 = vld [vmem:[%s19 + $0x310] sm:$0xff]
  %v2694 = vld [vmem:[%s19 + $0x318] sm:$0xff]
  %v2695 = vld [vmem:[%s19 + $0x320] sm:$0xff]
  %v2696 = vld [vmem:[%s19 + $0x328] sm:$0xf]
  %v2697 = vld [vmem:[%s19 + $0x32c] sm:$0xff]
  %v2698 = vld [vmem:[%s19 + $0x334] sm:$0xff]
  %v2699 = vld [vmem:[%s19 + $0x33c] sm:$0xff]
  %v2700 = vld [vmem:[%s19 + $0x344] sm:$0xf]
  %v2701 = vld [vmem:[%s19 + $0x348] sm:$0xff]
  %v2702 = vld [vmem:[%s19 + $0x350] sm:$0xff]
  %v2703 = vld [vmem:[%s19 + $0x358] sm:$0xff]
  %v2704 = vld [vmem:[%s19 + $0x360] sm:$0xf]
  %v2705 = vld [vmem:[%s19 + $0x364] sm:$0xff]
  %v2706 = vld [vmem:[%s19 + $0x36c] sm:$0xff]
  %v2707 = vld [vmem:[%s19 + $0x374] sm:$0xff]
  %v2708 = vld [vmem:[%s19 + $0x37c] sm:$0xf]
  %v2709 = vld [vmem:[%s19 + $0x380] sm:$0xff]
  %v2710 = vld [vmem:[%s19 + $0x388] sm:$0xff]
  %v2711 = vld [vmem:[%s19 + $0x390] sm:$0xff]
  %v2712 = vld [vmem:[%s19 + $0x398] sm:$0xf]
  %v2713 = vld [vmem:[%s19 + $0x39c] sm:$0xff]
  %v2714 = vld [vmem:[%s19 + $0x3a4] sm:$0xff]
  %v2715 = vld [vmem:[%s19 + $0x3ac] sm:$0xff]
  %v2716 = vld [vmem:[%s19 + $0x3b4] sm:$0xf]
  %v2717 = vld [vmem:[%s19 + $0x3b8] sm:$0xff]
  %v2718 = vld [vmem:[%s19 + $0x3c0] sm:$0xff]
  %v2719 = vld [vmem:[%s19 + $0x3c8] sm:$0xff]
  %v2720 = vld [vmem:[%s19 + $0x3d0] sm:$0xf]
  %v2721 = vld [vmem:[%s19 + $0x3d4] sm:$0xff]
  %v2722 = vld [vmem:[%s19 + $0x3dc] sm:$0xff]
  %v2723 = vld [vmem:[%s19 + $0x3e4] sm:$0xff]
  %v2724 = vld [vmem:[%s19 + $0x3ec] sm:$0xf]
  %v2725 = vld [vmem:[%s20] sm:$0x7f]
  %v2727 = vlaneseq
  %v2728 = vshrl.u32 %v2727, 7
  %v2729 = vsub.s32 0, %v2728
  %v2730 = vrot.slane %v2725, %v2729
  %v2731 = vlaneseq
  %v2732 = vshrl.u32 %v2731, 7
  %v2733 = vsub.s32 1, %v2732
  %v2734 = vrot.slane %v2725, %v2733
  %v2735 = vlaneseq
  %v2736 = vshrl.u32 %v2735, 7
  %v2737 = vsub.s32 2, %v2736
  %v2738 = vrot.slane %v2725, %v2737
  %v2739 = vlaneseq
  %v2740 = vshrl.u32 %v2739, 7
  %v2741 = vsub.s32 3, %v2740
  %v2742 = vrot.slane %v2725, %v2741
  %v2743 = vlaneseq
  %v2744 = vshrl.u32 %v2743, 7
  %v2745 = vsub.s32 4, %v2744
  %v2746 = vrot.slane %v2725, %v2745
  %v2747 = vlaneseq
  %v2748 = vshrl.u32 %v2747, 7
  %v2749 = vsub.s32 5, %v2748
  %v2750 = vrot.slane %v2725, %v2749
  %v2751 = vlaneseq
  %v2752 = vshrl.u32 %v2751, 7
  %v2753 = vsub.s32 6, %v2752
  %v2754 = vrot.slane %v2725, %v2753
  %v2906 = vunpack.c.l.b16 %v2581
  %v2907 = vunpack.c.h.b16 %v2581
  %v2908 = vunpack.c.l.b16 %v2582
  %v2909 = vunpack.c.h.b16 %v2582
  %v2910 = vunpack.c.l.b16 %v2583
  %v2911 = vunpack.c.h.b16 %v2583
  %v2912 = vunpack.c.l.b16 %v2584
  %v2913 = vunpack.c.l.b16 %v2585
  %v2914 = vunpack.c.h.b16 %v2585
  %v2915 = vunpack.c.l.b16 %v2586
  %v2916 = vunpack.c.h.b16 %v2586
  %v2917 = vunpack.c.l.b16 %v2587
  %v2918 = vunpack.c.h.b16 %v2587
  %v2919 = vunpack.c.l.b16 %v2588
  %v2920 = vunpack.c.l.b16 %v2589
  %v2921 = vunpack.c.h.b16 %v2589
  %v2922 = vunpack.c.l.b16 %v2590
  %v2923 = vunpack.c.h.b16 %v2590
  %v2924 = vunpack.c.l.b16 %v2591
  %v2925 = vunpack.c.h.b16 %v2591
  %v2926 = vunpack.c.l.b16 %v2592
  %v2927 = vunpack.c.l.b16 %v2593
  %v2928 = vunpack.c.h.b16 %v2593
  %v2929 = vunpack.c.l.b16 %v2594
  %v2930 = vunpack.c.h.b16 %v2594
  %v2931 = vunpack.c.l.b16 %v2595
  %v2932 = vunpack.c.h.b16 %v2595
  %v2933 = vunpack.c.l.b16 %v2596
  %v2934 = vunpack.c.l.b16 %v2597
  %v2935 = vunpack.c.h.b16 %v2597
  %v2936 = vunpack.c.l.b16 %v2598
  %v2937 = vunpack.c.h.b16 %v2598
  %v2938 = vunpack.c.l.b16 %v2599
  %v2939 = vunpack.c.h.b16 %v2599
  %v2940 = vunpack.c.l.b16 %v2600
  %v2941 = vunpack.c.l.b16 %v2601
  %v2942 = vunpack.c.h.b16 %v2601
  %v2943 = vunpack.c.l.b16 %v2602
  %v2944 = vunpack.c.h.b16 %v2602
  %v2945 = vunpack.c.l.b16 %v2603
  %v2946 = vunpack.c.h.b16 %v2603
  %v2947 = vunpack.c.l.b16 %v2604
  %v2948 = vunpack.c.l.b16 %v2605
  %v2949 = vunpack.c.h.b16 %v2605
  %v2950 = vunpack.c.l.b16 %v2606
  %v2951 = vunpack.c.h.b16 %v2606
  %v2952 = vunpack.c.l.b16 %v2607
  %v2953 = vunpack.c.h.b16 %v2607
  %v2954 = vunpack.c.l.b16 %v2608
  %v2955 = vunpack.c.l.b16 %v2609
  %v2956 = vunpack.c.h.b16 %v2609
  %v2957 = vunpack.c.l.b16 %v2610
  %v2958 = vunpack.c.h.b16 %v2610
  %v2959 = vunpack.c.l.b16 %v2611
  %v2960 = vunpack.c.h.b16 %v2611
  %v2961 = vunpack.c.l.b16 %v2612
  %v2962 = vunpack.c.l.b16 %v2613
  %v2963 = vunpack.c.h.b16 %v2613
  %v2964 = vunpack.c.l.b16 %v2614
  %v2965 = vunpack.c.h.b16 %v2614
  %v2966 = vunpack.c.l.b16 %v2615
  %v2967 = vunpack.c.h.b16 %v2615
  %v2968 = vunpack.c.l.b16 %v2616
  %v2969 = vunpack.c.l.b16 %v2617
  %v2970 = vunpack.c.h.b16 %v2617
  %v2971 = vunpack.c.l.b16 %v2618
  %v2972 = vunpack.c.h.b16 %v2618
  %v2973 = vunpack.c.l.b16 %v2619
  %v2974 = vunpack.c.h.b16 %v2619
  %v2975 = vunpack.c.l.b16 %v2620
  %v2976 = vunpack.c.l.b16 %v2621
  %v2977 = vunpack.c.h.b16 %v2621
  %v2978 = vunpack.c.l.b16 %v2622
  %v2979 = vunpack.c.h.b16 %v2622
  %v2980 = vunpack.c.l.b16 %v2623
  %v2981 = vunpack.c.h.b16 %v2623
  %v2982 = vunpack.c.l.b16 %v2624
  %v2983 = vunpack.c.l.b16 %v2625
  %v2984 = vunpack.c.h.b16 %v2625
  %v2985 = vunpack.c.l.b16 %v2626
  %v2986 = vunpack.c.h.b16 %v2626
  %v2987 = vunpack.c.l.b16 %v2627
  %v2988 = vunpack.c.h.b16 %v2627
  %v2989 = vunpack.c.l.b16 %v2628
  %v2990 = vunpack.c.l.b16 %v2629
  %v2991 = vunpack.c.h.b16 %v2629
  %v2992 = vunpack.c.l.b16 %v2630
  %v2993 = vunpack.c.h.b16 %v2630
  %v2994 = vunpack.c.l.b16 %v2631
  %v2995 = vunpack.c.h.b16 %v2631
  %v2996 = vunpack.c.l.b16 %v2632
  %v2997 = vunpack.c.l.b16 %v2633
  %v2998 = vunpack.c.h.b16 %v2633
  %v2999 = vunpack.c.l.b16 %v2634
  %v3000 = vunpack.c.h.b16 %v2634
  %v3001 = vunpack.c.l.b16 %v2635
  %v3002 = vunpack.c.h.b16 %v2635
  %v3003 = vunpack.c.l.b16 %v2636
  %v3004 = vunpack.c.l.b16 %v2637
  %v3005 = vunpack.c.h.b16 %v2637
  %v3006 = vunpack.c.l.b16 %v2638
  %v3007 = vunpack.c.h.b16 %v2638
  %v3008 = vunpack.c.l.b16 %v2639
  %v3009 = vunpack.c.h.b16 %v2639
  %v3010 = vunpack.c.l.b16 %v2640
  %v3011 = vunpack.c.l.b16 %v2641
  %v3012 = vunpack.c.h.b16 %v2641
  %v3013 = vunpack.c.l.b16 %v2642
  %v3014 = vunpack.c.h.b16 %v2642
  %v3015 = vunpack.c.l.b16 %v2643
  %v3016 = vunpack.c.h.b16 %v2643
  %v3017 = vunpack.c.l.b16 %v2644
  %v3018 = vunpack.c.l.b16 %v2645
  %v3019 = vunpack.c.h.b16 %v2645
  %v3020 = vunpack.c.l.b16 %v2646
  %v3021 = vunpack.c.h.b16 %v2646
  %v3022 = vunpack.c.l.b16 %v2647
  %v3023 = vunpack.c.h.b16 %v2647
  %v3024 = vunpack.c.l.b16 %v2648
  %v3025 = vunpack.c.l.b16 %v2649
  %v3026 = vunpack.c.h.b16 %v2649
  %v3027 = vunpack.c.l.b16 %v2650
  %v3028 = vunpack.c.h.b16 %v2650
  %v3029 = vunpack.c.l.b16 %v2651
  %v3030 = vunpack.c.h.b16 %v2651
  %v3031 = vunpack.c.l.b16 %v2652
  %v3032 = vunpack.c.l.b16 %v2653
  %v3033 = vunpack.c.h.b16 %v2653
  %v3034 = vunpack.c.l.b16 %v2654
  %v3035 = vunpack.c.h.b16 %v2654
  %v3036 = vunpack.c.l.b16 %v2655
  %v3037 = vunpack.c.h.b16 %v2655
  %v3038 = vunpack.c.l.b16 %v2656
  %v3039 = vunpack.c.l.b16 %v2657
  %v3040 = vunpack.c.h.b16 %v2657
  %v3041 = vunpack.c.l.b16 %v2658
  %v3042 = vunpack.c.h.b16 %v2658
  %v3043 = vunpack.c.l.b16 %v2659
  %v3044 = vunpack.c.h.b16 %v2659
  %v3045 = vunpack.c.l.b16 %v2660
  %v3046 = vunpack.c.l.b16 %v2661
  %v3047 = vunpack.c.h.b16 %v2661
  %v3048 = vunpack.c.l.b16 %v2662
  %v3049 = vunpack.c.h.b16 %v2662
  %v3050 = vunpack.c.l.b16 %v2663
  %v3051 = vunpack.c.h.b16 %v2663
  %v3052 = vunpack.c.l.b16 %v2664
  %v3053 = vunpack.c.l.b16 %v2665
  %v3054 = vunpack.c.h.b16 %v2665
  %v3055 = vunpack.c.l.b16 %v2666
  %v3056 = vunpack.c.h.b16 %v2666
  %v3057 = vunpack.c.l.b16 %v2667
  %v3058 = vunpack.c.h.b16 %v2667
  %v3059 = vunpack.c.l.b16 %v2668
  %v3060 = vunpack.c.l.b16 %v2669
  %v3061 = vunpack.c.h.b16 %v2669
  %v3062 = vunpack.c.l.b16 %v2670
  %v3063 = vunpack.c.h.b16 %v2670
  %v3064 = vunpack.c.l.b16 %v2671
  %v3065 = vunpack.c.h.b16 %v2671
  %v3066 = vunpack.c.l.b16 %v2672
  %v3067 = vunpack.c.l.b16 %v2673
  %v3068 = vunpack.c.h.b16 %v2673
  %v3069 = vunpack.c.l.b16 %v2674
  %v3070 = vunpack.c.h.b16 %v2674
  %v3071 = vunpack.c.l.b16 %v2675
  %v3072 = vunpack.c.h.b16 %v2675
  %v3073 = vunpack.c.l.b16 %v2676
  %v3074 = vunpack.c.l.b16 %v2677
  %v3075 = vunpack.c.h.b16 %v2677
  %v3076 = vunpack.c.l.b16 %v2678
  %v3077 = vunpack.c.h.b16 %v2678
  %v3078 = vunpack.c.l.b16 %v2679
  %v3079 = vunpack.c.h.b16 %v2679
  %v3080 = vunpack.c.l.b16 %v2680
  %v3081 = vunpack.c.l.b16 %v2681
  %v3082 = vunpack.c.h.b16 %v2681
  %v3083 = vunpack.c.l.b16 %v2682
  %v3084 = vunpack.c.h.b16 %v2682
  %v3085 = vunpack.c.l.b16 %v2683
  %v3086 = vunpack.c.h.b16 %v2683
  %v3087 = vunpack.c.l.b16 %v2684
  %v3088 = vunpack.c.l.b16 %v2685
  %v3089 = vunpack.c.h.b16 %v2685
  %v3090 = vunpack.c.l.b16 %v2686
  %v3091 = vunpack.c.h.b16 %v2686
  %v3092 = vunpack.c.l.b16 %v2687
  %v3093 = vunpack.c.h.b16 %v2687
  %v3094 = vunpack.c.l.b16 %v2688
  %v3095 = vunpack.c.l.b16 %v2689
  %v3096 = vunpack.c.h.b16 %v2689
  %v3097 = vunpack.c.l.b16 %v2690
  %v3098 = vunpack.c.h.b16 %v2690
  %v3099 = vunpack.c.l.b16 %v2691
  %v3100 = vunpack.c.h.b16 %v2691
  %v3101 = vunpack.c.l.b16 %v2692
  %v3102 = vunpack.c.l.b16 %v2693
  %v3103 = vunpack.c.h.b16 %v2693
  %v3104 = vunpack.c.l.b16 %v2694
  %v3105 = vunpack.c.h.b16 %v2694
  %v3106 = vunpack.c.l.b16 %v2695
  %v3107 = vunpack.c.h.b16 %v2695
  %v3108 = vunpack.c.l.b16 %v2696
  %v3109 = vunpack.c.l.b16 %v2697
  %v3110 = vunpack.c.h.b16 %v2697
  %v3111 = vunpack.c.l.b16 %v2698
  %v3112 = vunpack.c.h.b16 %v2698
  %v3113 = vunpack.c.l.b16 %v2699
  %v3114 = vunpack.c.h.b16 %v2699
  %v3115 = vunpack.c.l.b16 %v2700
  %v3116 = vunpack.c.l.b16 %v2701
  %v3117 = vunpack.c.h.b16 %v2701
  %v3118 = vunpack.c.l.b16 %v2702
  %v3119 = vunpack.c.h.b16 %v2702
  %v3120 = vunpack.c.l.b16 %v2703
  %v3121 = vunpack.c.h.b16 %v2703
  %v3122 = vunpack.c.l.b16 %v2704
  %v3123 = vunpack.c.l.b16 %v2705
  %v3124 = vunpack.c.h.b16 %v2705
  %v3125 = vunpack.c.l.b16 %v2706
  %v3126 = vunpack.c.h.b16 %v2706
  %v3127 = vunpack.c.l.b16 %v2707
  %v3128 = vunpack.c.h.b16 %v2707
  %v3129 = vunpack.c.l.b16 %v2708
  %v3130 = vunpack.c.l.b16 %v2709
  %v3131 = vunpack.c.h.b16 %v2709
  %v3132 = vunpack.c.l.b16 %v2710
  %v3133 = vunpack.c.h.b16 %v2710
  %v3134 = vunpack.c.l.b16 %v2711
  %v3135 = vunpack.c.h.b16 %v2711
  %v3136 = vunpack.c.l.b16 %v2712
  %v3137 = vunpack.c.l.b16 %v2713
  %v3138 = vunpack.c.h.b16 %v2713
  %v3139 = vunpack.c.l.b16 %v2714
  %v3140 = vunpack.c.h.b16 %v2714
  %v3141 = vunpack.c.l.b16 %v2715
  %v3142 = vunpack.c.h.b16 %v2715
  %v3143 = vunpack.c.l.b16 %v2716
  %v3144 = vunpack.c.l.b16 %v2717
  %v3145 = vunpack.c.h.b16 %v2717
  %v3146 = vunpack.c.l.b16 %v2718
  %v3147 = vunpack.c.h.b16 %v2718
  %v3148 = vunpack.c.l.b16 %v2719
  %v3149 = vunpack.c.h.b16 %v2719
  %v3150 = vunpack.c.l.b16 %v2720
  %v3151 = vunpack.c.l.b16 %v2721
  %v3152 = vunpack.c.h.b16 %v2721
  %v3153 = vunpack.c.l.b16 %v2722
  %v3154 = vunpack.c.h.b16 %v2722
  %v3155 = vunpack.c.l.b16 %v2723
  %v3156 = vunpack.c.h.b16 %v2723
  %v3157 = vunpack.c.l.b16 %v2724
  %v3158 = vpack.c.b16 %v2913, %v2906
  %v3159 = vpack.c.b16 %v2914, %v2907
  %v3160 = vpack.c.b16 %v2915, %v2908
  %v3161 = vpack.c.b16 %v2916, %v2909
  %v3162 = vpack.c.b16 %v2917, %v2910
  %v3163 = vpack.c.b16 %v2918, %v2911
  %v3164 = vpack.c.b16 %v2919, %v2912
  %v3165 = vpack.c.b16 %v2927, %v2920
  %v3166 = vpack.c.b16 %v2928, %v2921
  %v3167 = vpack.c.b16 %v2929, %v2922
  %v3168 = vpack.c.b16 %v2930, %v2923
  %v3169 = vpack.c.b16 %v2931, %v2924
  %v3170 = vpack.c.b16 %v2932, %v2925
  %v3171 = vpack.c.b16 %v2933, %v2926
  %v3172 = vpack.c.b16 %v2941, %v2934
  %v3173 = vpack.c.b16 %v2942, %v2935
  %v3174 = vpack.c.b16 %v2943, %v2936
  %v3175 = vpack.c.b16 %v2944, %v2937
  %v3176 = vpack.c.b16 %v2945, %v2938
  %v3177 = vpack.c.b16 %v2946, %v2939
  %v3178 = vpack.c.b16 %v2947, %v2940
  %v3179 = vpack.c.b16 %v2955, %v2948
  %v3180 = vpack.c.b16 %v2956, %v2949
  %v3181 = vpack.c.b16 %v2957, %v2950
  %v3182 = vpack.c.b16 %v2958, %v2951
  %v3183 = vpack.c.b16 %v2959, %v2952
  %v3184 = vpack.c.b16 %v2960, %v2953
  %v3185 = vpack.c.b16 %v2961, %v2954
  %v3186 = vpack.c.b16 %v2969, %v2962
  %v3187 = vpack.c.b16 %v2970, %v2963
  %v3188 = vpack.c.b16 %v2971, %v2964
  %v3189 = vpack.c.b16 %v2972, %v2965
  %v3190 = vpack.c.b16 %v2973, %v2966
  %v3191 = vpack.c.b16 %v2974, %v2967
  %v3192 = vpack.c.b16 %v2975, %v2968
  %v3193 = vpack.c.b16 %v2983, %v2976
  %v3194 = vpack.c.b16 %v2984, %v2977
  %v3195 = vpack.c.b16 %v2985, %v2978
  %v3196 = vpack.c.b16 %v2986, %v2979
  %v3197 = vpack.c.b16 %v2987, %v2980
  %v3198 = vpack.c.b16 %v2988, %v2981
  %v3199 = vpack.c.b16 %v2989, %v2982
  %v3200 = vpack.c.b16 %v2997, %v2990
  %v3201 = vpack.c.b16 %v2998, %v2991
  %v3202 = vpack.c.b16 %v2999, %v2992
  %v3203 = vpack.c.b16 %v3000, %v2993
  %v3204 = vpack.c.b16 %v3001, %v2994
  %v3205 = vpack.c.b16 %v3002, %v2995
  %v3206 = vpack.c.b16 %v3003, %v2996
  %v3207 = vpack.c.b16 %v3011, %v3004
  %v3208 = vpack.c.b16 %v3012, %v3005
  %v3209 = vpack.c.b16 %v3013, %v3006
  %v3210 = vpack.c.b16 %v3014, %v3007
  %v3211 = vpack.c.b16 %v3015, %v3008
  %v3212 = vpack.c.b16 %v3016, %v3009
  %v3213 = vpack.c.b16 %v3017, %v3010
  %v3214 = vpack.c.b16 %v3025, %v3018
  %v3215 = vpack.c.b16 %v3026, %v3019
  %v3216 = vpack.c.b16 %v3027, %v3020
  %v3217 = vpack.c.b16 %v3028, %v3021
  %v3218 = vpack.c.b16 %v3029, %v3022
  %v3219 = vpack.c.b16 %v3030, %v3023
  %v3220 = vpack.c.b16 %v3031, %v3024
  %v3221 = vpack.c.b16 %v3039, %v3032
  %v3222 = vpack.c.b16 %v3040, %v3033
  %v3223 = vpack.c.b16 %v3041, %v3034
  %v3224 = vpack.c.b16 %v3042, %v3035
  %v3225 = vpack.c.b16 %v3043, %v3036
  %v3226 = vpack.c.b16 %v3044, %v3037
  %v3227 = vpack.c.b16 %v3045, %v3038
  %v3228 = vpack.c.b16 %v3053, %v3046
  %v3229 = vpack.c.b16 %v3054, %v3047
  %v3230 = vpack.c.b16 %v3055, %v3048
  %v3231 = vpack.c.b16 %v3056, %v3049
  %v3232 = vpack.c.b16 %v3057, %v3050
  %v3233 = vpack.c.b16 %v3058, %v3051
  %v3234 = vpack.c.b16 %v3059, %v3052
  %v3235 = vpack.c.b16 %v3067, %v3060
  %v3236 = vpack.c.b16 %v3068, %v3061
  %v3237 = vpack.c.b16 %v3069, %v3062
  %v3238 = vpack.c.b16 %v3070, %v3063
  %v3239 = vpack.c.b16 %v3071, %v3064
  %v3240 = vpack.c.b16 %v3072, %v3065
  %v3241 = vpack.c.b16 %v3073, %v3066
  %v3242 = vpack.c.b16 %v3081, %v3074
  %v3243 = vpack.c.b16 %v3082, %v3075
  %v3244 = vpack.c.b16 %v3083, %v3076
  %v3245 = vpack.c.b16 %v3084, %v3077
  %v3246 = vpack.c.b16 %v3085, %v3078
  %v3247 = vpack.c.b16 %v3086, %v3079
  %v3248 = vpack.c.b16 %v3087, %v3080
  %v3249 = vpack.c.b16 %v3095, %v3088
  %v3250 = vpack.c.b16 %v3096, %v3089
  %v3251 = vpack.c.b16 %v3097, %v3090
  %v3252 = vpack.c.b16 %v3098, %v3091
  %v3253 = vpack.c.b16 %v3099, %v3092
  %v3254 = vpack.c.b16 %v3100, %v3093
  %v3255 = vpack.c.b16 %v3101, %v3094
  %v3256 = vpack.c.b16 %v3109, %v3102
  %v3257 = vpack.c.b16 %v3110, %v3103
  %v3258 = vpack.c.b16 %v3111, %v3104
  %v3259 = vpack.c.b16 %v3112, %v3105
  %v3260 = vpack.c.b16 %v3113, %v3106
  %v3261 = vpack.c.b16 %v3114, %v3107
  %v3262 = vpack.c.b16 %v3115, %v3108
  %v3263 = vpack.c.b16 %v3123, %v3116
  %v3264 = vpack.c.b16 %v3124, %v3117
  %v3265 = vpack.c.b16 %v3125, %v3118
  %v3266 = vpack.c.b16 %v3126, %v3119
  %v3267 = vpack.c.b16 %v3127, %v3120
  %v3268 = vpack.c.b16 %v3128, %v3121
  %v3269 = vpack.c.b16 %v3129, %v3122
  %v3270 = vpack.c.b16 %v3137, %v3130
  %v3271 = vpack.c.b16 %v3138, %v3131
  %v3272 = vpack.c.b16 %v3139, %v3132
  %v3273 = vpack.c.b16 %v3140, %v3133
  %v3274 = vpack.c.b16 %v3141, %v3134
  %v3275 = vpack.c.b16 %v3142, %v3135
  %v3276 = vpack.c.b16 %v3143, %v3136
  %v3277 = vpack.c.b16 %v3151, %v3144
  %v3278 = vpack.c.b16 %v3152, %v3145
  %v3279 = vpack.c.b16 %v3153, %v3146
  %v3280 = vpack.c.b16 %v3154, %v3147
  %v3281 = vpack.c.b16 %v3155, %v3148
  %v3282 = vpack.c.b16 %v3156, %v3149
  %v3283 = vpack.c.b16 %v3157, %v3150
  %v3411 = vsel %vm1788, %v2580, 0
  %3413 = vmatprep.subr.bf16.mxu0 %v3159
  %3414 = vmatpush1.bf16.msra.mxu0 %v3158
  %3415 = vmatprep.subr.bf16.mxu0 %v3166
  %3416 = vmatpush1.bf16.msra.mxu0 %v3165
  %3417 = vmatprep.subr.bf16.mxu0 %v3173
  %3418 = vmatpush1.bf16.msra.mxu0 %v3172
  %3419 = vmatprep.subr.bf16.mxu0 %v3180
  %3420 = vmatpush1.bf16.msra.mxu0 %v3179
  %3421 = vmatprep.subr.bf16.mxu0 %v3187
  %3422 = vmatpush1.bf16.msra.mxu0 %v3186
  %3423 = vmatprep.subr.bf16.mxu0 %v3194
  %3424 = vmatpush1.bf16.msra.mxu0 %v3193
  %3425 = vmatprep.subr.bf16.mxu0 %v3201
  %3426 = vmatpush1.bf16.msra.mxu0 %v3200
  %3427 = vmatprep.subr.bf16.mxu0 %v3208
  %3428 = vmatpush1.bf16.msra.mxu0 %v3207
  %3429 = vmatprep.subr.bf16.mxu0 %v3215
  %3430 = vmatpush1.bf16.msra.mxu0 %v3214
  %3431 = vmatprep.subr.bf16.mxu0 %v3222
  %3432 = vmatpush1.bf16.msra.mxu0 %v3221
  %3433 = vmatprep.subr.bf16.mxu0 %v3229
  %3434 = vmatpush1.bf16.msra.mxu0 %v3228
  %3435 = vmatprep.subr.bf16.mxu0 %v3236
  %3436 = vmatpush1.bf16.msra.mxu0 %v3235
  %3437 = vmatprep.subr.bf16.mxu0 %v3243
  %3438 = vmatpush1.bf16.msra.mxu0 %v3242
  %3439 = vmatprep.subr.bf16.mxu0 %v3250
  %3440 = vmatpush1.bf16.msra.mxu0 %v3249
  %3441 = vmatprep.subr.bf16.mxu0 %v3257
  %3442 = vmatpush1.bf16.msra.mxu0 %v3256
  %3443 = vmatprep.subr.bf16.mxu0 %v3264
  %3444 = vmatpush1.bf16.msra.mxu0 %v3263
  %3445 = vmatprep.mubr.bf16.mxu0 %v2579
  %3446 = vmatmul.mubr.bf16.gmra.mrb[0].mxu0 %v2578
  %v3447 = vpop.f32.mrb[0].mxu0
  %v3448 = vadd.f32 %v2730, %v3447
  %v3449 = vpop.f32.mrb[0].mxu0
  %v3450 = vadd.f32 %v2734, %v3449
  %v3451 = vpop.f32.mrb[0].mxu0
  %v3452 = vpop.f32.mrb[0].mxu0
  %3453 = vdwg.mxu0
  %3454 = vmatprep.subr.bf16.mxu0 %v3271
  %3455 = vmatpush1.bf16.msra.mxu0 %v3270
  %3456 = vmatprep.subr.bf16.mxu0 %v3278
  %3457 = vmatpush1.bf16.msra.mxu0 %v3277
  %3458 = vmatprep.subr.bf16.mxu0 0
  %3459 = vmatpush1.bf16.msra.mxu0 0
  %3460 = vmatprep.subr.bf16.mxu0 0
  %3461 = vmatpush1.bf16.msra.mxu0 0
  %3462 = vmatprep.subr.bf16.mxu0 0
  %3463 = vmatpush1.bf16.msra.mxu0 0
  %3464 = vmatprep.subr.bf16.mxu0 0
  %3465 = vmatpush1.bf16.msra.mxu0 0
  %3466 = vmatprep.subr.bf16.mxu0 0
  %3467 = vmatpush1.bf16.msra.mxu0 0
  %3468 = vmatprep.subr.bf16.mxu0 0
  %3469 = vmatpush1.bf16.msra.mxu0 0
  %3470 = vmatprep.subr.bf16.mxu0 0
  %3471 = vmatpush1.bf16.msra.mxu0 0
  %3472 = vmatprep.subr.bf16.mxu0 0
  %3473 = vmatpush1.bf16.msra.mxu0 0
  %3474 = vmatprep.subr.bf16.mxu0 0
  %3475 = vmatpush1.bf16.msra.mxu0 0
  %3476 = vmatprep.subr.bf16.mxu0 0
  %3477 = vmatpush1.bf16.msra.mxu0 0
  %3478 = vmatprep.subr.bf16.mxu0 0
  %3479 = vmatpush1.bf16.msra.mxu0 0
  %3480 = vmatprep.subr.bf16.mxu0 0
  %3481 = vmatpush1.bf16.msra.mxu0 0
  %3482 = vmatprep.subr.bf16.mxu0 0
  %3483 = vmatpush1.bf16.msra.mxu0 0
  %3484 = vmatprep.subr.bf16.mxu0 0
  %3485 = vmatpush1.bf16.msra.mxu0 0
  %3486 = vmatprep.mubr.bf16.mxu0 0
  %3487 = vmatmul.mubr.bf16.gmra.mrb[0].mxu0 %v3411
  %v3488 = vpop.f32.mrb[0].mxu0
  %v3489 = vadd.f32 %v3448, %v3488
  %v3490 = vpop.f32.mrb[0].mxu0
  %v3491 = vadd.f32 %v3450, %v3490
  %v3492 = vpop.f32.mrb[0].mxu0
  %v3493 = vpop.f32.mrb[0].mxu0
  %3494 = vdwg.mxu0
  %3495 = vmatprep.subr.bf16.mxu0 %v3161
  %3496 = vmatpush1.bf16.msra.mxu0 %v3160
  %3497 = vmatprep.subr.bf16.mxu0 %v3168
  %3498 = vmatpush1.bf16.msra.mxu0 %v3167
  %3499 = vmatprep.subr.bf16.mxu0 %v3175
  %3500 = vmatpush1.bf16.msra.mxu0 %v3174
  %3501 = vmatprep.subr.bf16.mxu0 %v3182
  %3502 = vmatpush1.bf16.msra.mxu0 %v3181
  %3503 = vmatprep.subr.bf16.mxu0 %v3189
  %3504 = vmatpush1.bf16.msra.mxu0 %v3188
  %3505 = vmatprep.subr.bf16.mxu0 %v3196
  %3506 = vmatpush1.bf16.msra.mxu0 %v3195
  %3507 = vmatprep.subr.bf16.mxu0 %v3203
  %3508 = vmatpush1.bf16.msra.mxu0 %v3202
  %3509 = vmatprep.subr.bf16.mxu0 %v3210
  %3510 = vmatpush1.bf16.msra.mxu0 %v3209
  %3511 = vmatprep.subr.bf16.mxu0 %v3217
  %3512 = vmatpush1.bf16.msra.mxu0 %v3216
  %3513 = vmatprep.subr.bf16.mxu0 %v3224
  %3514 = vmatpush1.bf16.msra.mxu0 %v3223
  %3515 = vmatprep.subr.bf16.mxu0 %v3231
  %3516 = vmatpush1.bf16.msra.mxu0 %v3230
  %3517 = vmatprep.subr.bf16.mxu0 %v3238
  %3518 = vmatpush1.bf16.msra.mxu0 %v3237
  %3519 = vmatprep.subr.bf16.mxu0 %v3245
  %3520 = vmatpush1.bf16.msra.mxu0 %v3244
  %3521 = vmatprep.subr.bf16.mxu0 %v3252
  %3522 = vmatpush1.bf16.msra.mxu0 %v3251
  %3523 = vmatprep.subr.bf16.mxu0 %v3259
  %3524 = vmatpush1.bf16.msra.mxu0 %v3258
  %3525 = vmatprep.subr.bf16.mxu0 %v3266
  %3526 = vmatpush1.bf16.msra.mxu0 %v3265
  %3527 = vmatprep.mubr.bf16.mxu0 %v2579
  %3528 = vmatmul.mubr.bf16.gmra.mrb[0].mxu0 %v2578
  %v3529 = vpop.f32.mrb[0].mxu0
  %v3530 = vadd.f32 %v2738, %v3529
  %v3531 = vpop.f32.mrb[0].mxu0
  %v3532 = vadd.f32 %v2742, %v3531
  %v3533 = vpop.f32.mrb[0].mxu0
  %v3534 = vpop.f32.mrb[0].mxu0
  %3535 = vdwg.mxu0
  %3536 = vmatprep.subr.bf16.mxu0 %v3273
  %3537 = vmatpush1.bf16.msra.mxu0 %v3272
  %3538 = vmatprep.subr.bf16.mxu0 %v3280
  %3539 = vmatpush1.bf16.msra.mxu0 %v3279
  %3540 = vmatprep.subr.bf16.mxu0 0
  %3541 = vmatpush1.bf16.msra.mxu0 0
  %3542 = vmatprep.subr.bf16.mxu0 0
  %3543 = vmatpush1.bf16.msra.mxu0 0
  %3544 = vmatprep.subr.bf16.mxu0 0
  %3545 = vmatpush1.bf16.msra.mxu0 0
  %3546 = vmatprep.subr.bf16.mxu0 0
  %3547 = vmatpush1.bf16.msra.mxu0 0
  %3548 = vmatprep.subr.bf16.mxu0 0
  %3549 = vmatpush1.bf16.msra.mxu0 0
  %3550 = vmatprep.subr.bf16.mxu0 0
  %3551 = vmatpush1.bf16.msra.mxu0 0
  %3552 = vmatprep.subr.bf16.mxu0 0
  %3553 = vmatpush1.bf16.msra.mxu0 0
  %3554 = vmatprep.subr.bf16.mxu0 0
  %3555 = vmatpush1.bf16.msra.mxu0 0
  %3556 = vmatprep.subr.bf16.mxu0 0
  %3557 = vmatpush1.bf16.msra.mxu0 0
  %3558 = vmatprep.subr.bf16.mxu0 0
  %3559 = vmatpush1.bf16.msra.mxu0 0
  %3560 = vmatprep.subr.bf16.mxu0 0
  %3561 = vmatpush1.bf16.msra.mxu0 0
  %3562 = vmatprep.subr.bf16.mxu0 0
  %3563 = vmatpush1.bf16.msra.mxu0 0
  %3564 = vmatprep.subr.bf16.mxu0 0
  %3565 = vmatpush1.bf16.msra.mxu0 0
  %3566 = vmatprep.subr.bf16.mxu0 0
  %3567 = vmatpush1.bf16.msra.mxu0 0
  %3568 = vmatprep.mubr.bf16.mxu0 0
  %3569 = vmatmul.mubr.bf16.gmra.mrb[0].mxu0 %v3411
  %v3570 = vpop.f32.mrb[0].mxu0
  %v3571 = vadd.f32 %v3530, %v3570
  %v3572 = vpop.f32.mrb[0].mxu0
  %v3573 = vadd.f32 %v3532, %v3572
  %v3574 = vpop.f32.mrb[0].mxu0
  %v3575 = vpop.f32.mrb[0].mxu0
  %3576 = vdwg.mxu0
  %3577 = vmatprep.subr.bf16.mxu0 %v3163
  %3578 = vmatpush1.bf16.msra.mxu0 %v3162
  %3579 = vmatprep.subr.bf16.mxu0 %v3170
  %3580 = vmatpush1.bf16.msra.mxu0 %v3169
  %3581 = vmatprep.subr.bf16.mxu0 %v3177
  %3582 = vmatpush1.bf16.msra.mxu0 %v3176
  %3583 = vmatprep.subr.bf16.mxu0 %v3184
  %3584 = vmatpush1.bf16.msra.mxu0 %v3183
  %3585 = vmatprep.subr.bf16.mxu0 %v3191
  %3586 = vmatpush1.bf16.msra.mxu0 %v3190
  %3587 = vmatprep.subr.bf16.mxu0 %v3198
  %3588 = vmatpush1.bf16.msra.mxu0 %v3197
  %3589 = vmatprep.subr.bf16.mxu0 %v3205
  %3590 = vmatpush1.bf16.msra.mxu0 %v3204
  %3591 = vmatprep.subr.bf16.mxu0 %v3212
  %3592 = vmatpush1.bf16.msra.mxu0 %v3211
  %3593 = vmatprep.subr.bf16.mxu0 %v3219
  %3594 = vmatpush1.bf16.msra.mxu0 %v3218
  %3595 = vmatprep.subr.bf16.mxu0 %v3226
  %3596 = vmatpush1.bf16.msra.mxu0 %v3225
  %3597 = vmatprep.subr.bf16.mxu0 %v3233
  %3598 = vmatpush1.bf16.msra.mxu0 %v3232
  %3599 = vmatprep.subr.bf16.mxu0 %v3240
  %3600 = vmatpush1.bf16.msra.mxu0 %v3239
  %3601 = vmatprep.subr.bf16.mxu0 %v3247
  %3602 = vmatpush1.bf16.msra.mxu0 %v3246
  %3603 = vmatprep.subr.bf16.mxu0 %v3254
  %3604 = vmatpush1.bf16.msra.mxu0 %v3253
  %3605 = vmatprep.subr.bf16.mxu0 %v3261
  %3606 = vmatpush1.bf16.msra.mxu0 %v3260
  %3607 = vmatprep.subr.bf16.mxu0 %v3268
  %3608 = vmatpush1.bf16.msra.mxu0 %v3267
  %3609 = vmatprep.mubr.bf16.mxu0 %v2579
  %3610 = vmatmul.mubr.bf16.gmra.mrb[0].mxu0 %v2578
  %v3611 = vpop.f32.mrb[0].mxu0
  %v3612 = vadd.f32 %v2746, %v3611
  %v3613 = vpop.f32.mrb[0].mxu0
  %v3614 = vadd.f32 %v2750, %v3613
  %v3615 = vpop.f32.mrb[0].mxu0
  %v3616 = vpop.f32.mrb[0].mxu0
  %3617 = vdwg.mxu0
  %3618 = vmatprep.subr.bf16.mxu0 %v3275
  %3619 = vmatpush1.bf16.msra.mxu0 %v3274
  %3620 = vmatprep.subr.bf16.mxu0 %v3282
  %3621 = vmatpush1.bf16.msra.mxu0 %v3281
  %3622 = vmatprep.subr.bf16.mxu0 0
  %3623 = vmatpush1.bf16.msra.mxu0 0
  %3624 = vmatprep.subr.bf16.mxu0 0
  %3625 = vmatpush1.bf16.msra.mxu0 0
  %3626 = vmatprep.subr.bf16.mxu0 0
  %3627 = vmatpush1.bf16.msra.mxu0 0
  %3628 = vmatprep.subr.bf16.mxu0 0
  %3629 = vmatpush1.bf16.msra.mxu0 0
  %3630 = vmatprep.subr.bf16.mxu0 0
  %3631 = vmatpush1.bf16.msra.mxu0 0
  %3632 = vmatprep.subr.bf16.mxu0 0
  %3633 = vmatpush1.bf16.msra.mxu0 0
  %3634 = vmatprep.subr.bf16.mxu0 0
  %3635 = vmatpush1.bf16.msra.mxu0 0
  %3636 = vmatprep.subr.bf16.mxu0 0
  %3637 = vmatpush1.bf16.msra.mxu0 0
  %3638 = vmatprep.subr.bf16.mxu0 0
  %3639 = vmatpush1.bf16.msra.mxu0 0
  %3640 = vmatprep.subr.bf16.mxu0 0
  %3641 = vmatpush1.bf16.msra.mxu0 0
  %3642 = vmatprep.subr.bf16.mxu0 0
  %3643 = vmatpush1.bf16.msra.mxu0 0
  %3644 = vmatprep.subr.bf16.mxu0 0
  %3645 = vmatpush1.bf16.msra.mxu0 0
  %3646 = vmatprep.subr.bf16.mxu0 0
  %3647 = vmatpush1.bf16.msra.mxu0 0
  %3648 = vmatprep.subr.bf16.mxu0 0
  %3649 = vmatpush1.bf16.msra.mxu0 0
  %3650 = vmatprep.mubr.bf16.mxu0 0
  %3651 = vmatmul.mubr.bf16.gmra.mrb[0].mxu0 %v3411
  %v3652 = vpop.f32.mrb[0].mxu0
  %v3653 = vadd.f32 %v3612, %v3652
  %v3654 = vpop.f32.mrb[0].mxu0
  %v3655 = vadd.f32 %v3614, %v3654
  %v3656 = vpop.f32.mrb[0].mxu0
  %v3657 = vpop.f32.mrb[0].mxu0
  %3658 = vdwg.mxu0
  %3659 = vmatprep.subr.bf16.mxu0 0
  %3660 = vmatpush1.bf16.msra.mxu0 %v3164
  %3661 = vmatprep.subr.bf16.mxu0 0
  %3662 = vmatpush1.bf16.msra.mxu0 %v3171
  %3663 = vmatprep.subr.bf16.mxu0 0
  %3664 = vmatpush1.bf16.msra.mxu0 %v3178
  %3665 = vmatprep.subr.bf16.mxu0 0
  %3666 = vmatpush1.bf16.msra.mxu0 %v3185
  %3667 = vmatprep.subr.bf16.mxu0 0
  %3668 = vmatpush1.bf16.msra.mxu0 %v3192
  %3669 = vmatprep.subr.bf16.mxu0 0
  %3670 = vmatpush1.bf16.msra.mxu0 %v3199
  %3671 = vmatprep.subr.bf16.mxu0 0
  %3672 = vmatpush1.bf16.msra.mxu0 %v3206
  %3673 = vmatprep.subr.bf16.mxu0 0
  %3674 = vmatpush1.bf16.msra.mxu0 %v3213
  %3675 = vmatprep.subr.bf16.mxu0 0
  %3676 = vmatpush1.bf16.msra.mxu0 %v3220
  %3677 = vmatprep.subr.bf16.mxu0 0
  %3678 = vmatpush1.bf16.msra.mxu0 %v3227
  %3679 = vmatprep.subr.bf16.mxu0 0
  %3680 = vmatpush1.bf16.msra.mxu0 %v3234
  %3681 = vmatprep.subr.bf16.mxu0 0
  %3682 = vmatpush1.bf16.msra.mxu0 %v3241
  %3683 = vmatprep.subr.bf16.mxu0 0
  %3684 = vmatpush1.bf16.msra.mxu0 %v3248
  %3685 = vmatprep.subr.bf16.mxu0 0
  %3686 = vmatpush1.bf16.msra.mxu0 %v3255
  %3687 = vmatprep.subr.bf16.mxu0 0
  %3688 = vmatpush1.bf16.msra.mxu0 %v3262
  %3689 = vmatprep.subr.bf16.mxu0 0
  %3690 = vmatpush1.bf16.msra.mxu0 %v3269
  %3691 = vmatprep.mubr.bf16.mxu0 %v2579
  %3692 = vmatmul.mubr.bf16.gmra.mrb[0].mxu0 %v2578
  %v3693 = vpop.f32.mrb[0].mxu0
  %v3694 = vadd.f32 %v2754, %v3693
  %v3695 = vpop.f32.mrb[0].mxu0
  %v3696 = vpop.f32.mrb[0].mxu0
  %v3697 = vpop.f32.mrb[0].mxu0
  %3698 = vdwg.mxu0
  %3699 = vmatprep.subr.bf16.mxu0 0
  %3700 = vmatpush1.bf16.msra.mxu0 %v3276
  %3701 = vmatprep.subr.bf16.mxu0 0
  %3702 = vmatpush1.bf16.msra.mxu0 %v3283
  %3703 = vmatprep.subr.bf16.mxu0 0
  %3704 = vmatpush1.bf16.msra.mxu0 0
  %3705 = vmatprep.subr.bf16.mxu0 0
  %3706 = vmatpush1.bf16.msra.mxu0 0
  %3707 = vmatprep.subr.bf16.mxu0 0
  %3708 = vmatpush1.bf16.msra.mxu0 0
  %3709 = vmatprep.subr.bf16.mxu0 0
  %3710 = vmatpush1.bf16.msra.mxu0 0
  %3711 = vmatprep.subr.bf16.mxu0 0
  %3712 = vmatpush1.bf16.msra.mxu0 0
  %3713 = vmatprep.subr.bf16.mxu0 0
  %3714 = vmatpush1.bf16.msra.mxu0 0
  %3715 = vmatprep.subr.bf16.mxu0 0
  %3716 = vmatpush1.bf16.msra.mxu0 0
  %3717 = vmatprep.subr.bf16.mxu0 0
  %3718 = vmatpush1.bf16.msra.mxu0 0
  %3719 = vmatprep.subr.bf16.mxu0 0
  %3720 = vmatpush1.bf16.msra.mxu0 0
  %3721 = vmatprep.subr.bf16.mxu0 0
  %3722 = vmatpush1.bf16.msra.mxu0 0
  %3723 = vmatprep.subr.bf16.mxu0 0
  %3724 = vmatpush1.bf16.msra.mxu0 0
  %3725 = vmatprep.subr.bf16.mxu0 0
  %3726 = vmatpush1.bf16.msra.mxu0 0
  %3727 = vmatprep.subr.bf16.mxu0 0
  %3728 = vmatpush1.bf16.msra.mxu0 0
  %3729 = vmatprep.subr.bf16.mxu0 0
  %3730 = vmatpush1.bf16.msra.mxu0 0
  %3731 = vmatprep.mubr.bf16.mxu0 0
  %3732 = vmatmul.mubr.bf16.gmra.mrb[0].mxu0 %v3411
  %v3733 = vpop.f32.mrb[0].mxu0
  %v3734 = vadd.f32 %v3694, %v3733
  %v3735 = vpop.f32.mrb[0].mxu0
  %v3736 = vpop.f32.mrb[0].mxu0
  %v3737 = vpop.f32.mrb[0].mxu0
  %3738 = vdwg.mxu0
  %v3739 = vmax.f32 %v3489, 0.0
  %v3740 = vmax.f32 %v3491, 0.0
  %v3741 = vmax.f32 %v3571, 0.0
  %v3742 = vmax.f32 %v3573, 0.0
  %v3743 = vmax.f32 %v3653, 0.0
  %v3744 = vmax.f32 %v3655, 0.0
  %v3745 = vmax.f32 %v3734, 0.0
  %v3752 = vcombine.low %v3739, %v3740
  %v3753 = vcombine.low %v3741, %v3742
  %v3754 = vcombine.low %v3743, %v3744
  %3758 = vst [vmem:[%s21] sm:$0xff] %v3752
  %3759 = vst [vmem:[%s21 + $0x8] sm:$0xff] %v3753
  %3760 = vst [vmem:[%s21 + $0x10] sm:$0xff] %v3754
  %vm3761 = vcmask 125952
  %3762 = vst.msk [vmem:[%s21 + $0x18] sm:$0xf] %vm3761, %v3745
  // Predicated region
  $region86: #{autoencoder_forward.1} parent=0 // pred_check
    _
  $region87: #{autoencoder_forward.1} parent=0 // pred_check_branch
    %3764 = sbr.rel (0) target = $region89
  $region88: #{autoencoder_forward.1} parent=0 // pred_region
    _
  $region89: #{autoencoder_forward.1} parent=0 // pred_fallthru
    _
  // Predicated region
  $region90: #{autoencoder_forward.1} parent=0 // pred_check
    _
  $region91: #{autoencoder_forward.1} parent=0 // pred_check_branch
    %3766 = sbr.rel (0) target = $region93
  $region92: #{autoencoder_forward.1} parent=0 // pred_region
    _
  $region93: #{autoencoder_forward.1} parent=0 // pred_fallthru
    _

</llo_original>
